<compile_context>
chip_gen: v5e
topology: v5e:2x2
jax: 0.10.0
libtpu: 0.0.40
codegen_flags: <defaults>
</compile_context>

<pallas_src>
import math
from functools import partial

import jax
import jax.numpy as jnp
from jax import lax
from jax.experimental import pallas as pl
from jax.experimental.pallas import tpu as pltpu

IN_DIM   = 48
IN_PAD   = 128                 # zero-padded contraction dim (lane aligned)
HIDDEN   = 256
OUT_DIM  = 128
NHEAD    = 2
HEAD_DIM = HIDDEN // NHEAD     # 128 -> exactly one lane-width per head
FF_DIM   = 256
NLAYERS  = 2
EPS      = 1e-5
NEG_MASK = -1e9                # finite "minus infinity" for cross-batch masking
MIN_SPLIT_ROWS = 128           # only add grid steps if each step keeps >= this many rows

# ---- packed-parameter slab layout -------------------------------------------
# bf16 weight slab (NUM_W, HIDDEN, HIDDEN); per-layer order: wq, wk, wv, wo, w1, w2
W_ENC = 0
W_OUT = 1 + 6 * NLAYERS        # 13
NUM_W = W_OUT + 1              # 14
# f32 bias/LayerNorm slab (NUM_B, HIDDEN); per-layer row order:
#   bq, bk, bv, bo, ln1w, ln1b, b1, b2, ln2w, ln2b
B_PER_LAYER = 10
B_OUT = NLAYERS * B_PER_LAYER  # 20
NUM_B = 24                     # padded up to a multiple of 8 sublanes


def _layernorm(x, w, b):
    # one-pass: var = E[x^2] - mu^2 (saves a full subtract pass per LN)
    mu = jnp.mean(x, axis=-1, keepdims=True)
    ms = jnp.mean(x * x, axis=-1, keepdims=True)
    var = ms - mu * mu
    return (x - mu) * lax.rsqrt(var + EPS) * w + b


def social_transformer_kernel(x_ref, mask_ref, w_ref, b_ref, o_ref):
    bf, f32 = jnp.bfloat16, jnp.float32
    x = x_ref[...]                      # (R, IN_PAD) bf16, zero-padded 48->128
    mask = mask_ref[...]                # (R, R) f32 block-diagonal additive mask

    def brow(i):                        # (1, HIDDEN) f32 bias / LN row
        return b_ref[i:i + 1, :]

    # encode_past: Linear(48 -> 256, no bias), bf16 operands, f32 accumulation.
    h = jnp.dot(x, w_ref[W_ENC][:IN_PAD, :], preferred_element_type=f32)

    y = h
    for l in range(NLAYERS):
        wb = 1 + 6 * l
        bb = B_PER_LAYER * l

        # ---- multi-head self-attention (1/sqrt(d) already folded into wq/bq) ----
        y_bf = y.astype(bf)
        q = (jnp.dot(y_bf, w_ref[wb + 0], preferred_element_type=f32)
             + brow(bb + 0)).astype(bf)
        k = (jnp.dot(y_bf, w_ref[wb + 1], preferred_element_type=f32)
             + brow(bb + 1)).astype(bf)
        v = (jnp.dot(y_bf, w_ref[wb + 2], preferred_element_type=f32)
             + brow(bb + 2)).astype(bf)
        wo = w_ref[wb + 3]

        attn = brow(bb + 3)             # bo; per-head partials accumulate on top
        for hd in range(NHEAD):
            sl = slice(hd * HEAD_DIM, (hd + 1) * HEAD_DIM)
            s = lax.dot_general(q[:, sl], k[:, sl], (((1,), (1,)), ((), ())),
                                preferred_element_type=f32) + mask
            s = s - jnp.max(s, axis=-1, keepdims=True)
            p = jnp.exp(s)
            p = p * pl.reciprocal(jnp.sum(p, axis=-1, keepdims=True), approx=True)
            ho = jnp.dot(p.astype(bf), v[:, sl], preferred_element_type=f32)
            attn = attn + jnp.dot(ho.astype(bf), wo[sl, :],
                                  preferred_element_type=f32)
        y = _layernorm(y + attn, brow(bb + 4), brow(bb + 5))     # post-LN

        # ---- feed forward (relu) ----
        ff = jnp.maximum(
            jnp.dot(y.astype(bf), w_ref[wb + 4], preferred_element_type=f32)
            + brow(bb + 6), 0.0)
        ff = jnp.dot(ff.astype(bf), w_ref[wb + 5], preferred_element_type=f32) \
            + brow(bb + 7)
        y = _layernorm(y + ff, brow(bb + 8), brow(bb + 9))

    # residual around the whole encoder, then mlp_out
    feat = (h + y).astype(bf)
    out = jnp.dot(feat, w_ref[W_OUT][:, :OUT_DIM], preferred_element_type=f32) \
        + brow(B_OUT)[:, :OUT_DIM]
    o_ref[...] = out.astype(o_ref.dtype)


# --------------------------- parameter preparation ---------------------------
def make_params(key):
    ks = jax.random.split(key, 11)
    init = lambda k, shape, scale: jax.random.normal(k, shape, jnp.float32) * scale
    p = {}
    p['w_enc'] = init(ks[0],  (IN_DIM, HIDDEN),              IN_DIM ** -0.5)
    p['wqkv']  = init(ks[1],  (NLAYERS, HIDDEN, 3 * HIDDEN), HIDDEN ** -0.5)
    p['bqkv']  = init(ks[2],  (NLAYERS, 1, 3 * HIDDEN),      0.02)
    p['wo']    = init(ks[3],  (NLAYERS, HIDDEN, HIDDEN),     HIDDEN ** -0.5)
    p['bo']    = init(ks[4],  (NLAYERS, 1, HIDDEN),          0.02)
    p['ln1w']  = jnp.ones((NLAYERS, 1, HIDDEN), jnp.float32)
    p['ln1b']  = jnp.zeros((NLAYERS, 1, HIDDEN), jnp.float32)
    p['ln2w']  = jnp.ones((NLAYERS, 1, HIDDEN), jnp.float32)
    p['ln2b']  = jnp.zeros((NLAYERS, 1, HIDDEN), jnp.float32)
    p['w1']    = init(ks[5],  (NLAYERS, HIDDEN, FF_DIM),     HIDDEN ** -0.5)
    p['b1']    = init(ks[6],  (NLAYERS, 1, FF_DIM),          0.02)
    p['w2']    = init(ks[7],  (NLAYERS, FF_DIM, HIDDEN),     FF_DIM ** -0.5)
    p['b2']    = init(ks[8],  (NLAYERS, 1, HIDDEN),          0.02)
    p['w_out'] = init(ks[9],  (HIDDEN, OUT_DIM),             HIDDEN ** -0.5)
    p['b_out'] = init(ks[10], (1, OUT_DIM),                  0.02)
    return p


def pack_params(params):
    """Call ONCE per model: pack all weights/biases into 2 slabs, fold the
    attention scale into the Q projection, cast weights to bf16."""
    scale = 1.0 / math.sqrt(HEAD_DIM)

    w_slots = [jnp.pad(params['w_enc'], ((0, HIDDEN - IN_DIM), (0, 0)))]
    for l in range(NLAYERS):
        wqkv = params['wqkv'][l]
        w_slots += [wqkv[:, :HIDDEN] * scale,            # wq (scale folded)
                    wqkv[:, HIDDEN:2 * HIDDEN],          # wk
                    wqkv[:, 2 * HIDDEN:],                # wv
                    params['wo'][l], params['w1'][l], params['w2'][l]]
    w_slots.append(jnp.pad(params['w_out'], ((0, 0), (0, HIDDEN - OUT_DIM))))
    w_slab = jnp.stack(w_slots).astype(jnp.bfloat16)     # (NUM_W, 256, 256)

    b_rows = []
    for l in range(NLAYERS):
        bqkv = params['bqkv'][l][0]
        b_rows += [bqkv[:HIDDEN] * scale,                # bq (scale folded)
                   bqkv[HIDDEN:2 * HIDDEN],              # bk
                   bqkv[2 * HIDDEN:],                    # bv
                   params['bo'][l][0],
                   params['ln1w'][l][0], params['ln1b'][l][0],
                   params['b1'][l][0], params['b2'][l][0],
                   params['ln2w'][l][0], params['ln2b'][l][0]]
    b_rows.append(jnp.pad(params['b_out'][0], (0, HIDDEN - OUT_DIM)))
    b_slab = jnp.stack(b_rows).astype(jnp.float32)       # (21, 256)
    b_slab = jnp.pad(b_slab, ((0, NUM_B - b_slab.shape[0]), (0, 0)))
    return w_slab, b_slab


# ------------------------------- pallas driver --------------------------------
def _run_pallas(x2d, big_mask, w_slab, b_slab):
    n_rows, in_pad = x2d.shape           # n_rows = Bp * A
    R = big_mask.shape[0]                # rows per grid step (TB * A)
    n_blocks = n_rows // R

    def full_spec(arr):
        zeros = (0,) * arr.ndim
        # Grid-invariant operands: constant index_map -> DMA'd once, no re-fetch.
        return pl.BlockSpec(arr.shape, lambda b, z=zeros: z)

    in_specs = [pl.BlockSpec((R, in_pad), lambda b: (b, 0)),   # activations / block
                full_spec(big_mask), full_spec(w_slab), full_spec(b_slab)]
    out_specs = pl.BlockSpec((R, OUT_DIM), lambda b: (b, 0))

    # ---- advisory cost estimate (static python ints) ----
    per_row = 2 * (in_pad * HIDDEN
                   + NLAYERS * (3 * HIDDEN * HIDDEN + HIDDEN * HIDDEN
                                + HIDDEN * FF_DIM + FF_DIM * HIDDEN)
                   + HIDDEN * OUT_DIM)
    proj_flops = n_rows * per_row
    attn_flops = NLAYERS * NHEAD * n_blocks * (2 * R * R * HEAD_DIM) * 2
    transc = NLAYERS * NHEAD * n_blocks * R * (R + 1) + 4 * NLAYERS * n_rows
    bytes_acc = (n_rows * in_pad * 2 + R * R * 4
                 + int(w_slab.size) * 2 + int(b_slab.size) * 4
                 + n_rows * OUT_DIM * 4)
    cost = pl.CostEstimate(flops=int(proj_flops + attn_flops),
                           transcendentals=int(transc),
                           bytes_accessed=int(bytes_acc))

    return pl.pallas_call(
        social_transformer_kernel,
        out_shape=jax.ShapeDtypeStruct((n_rows, OUT_DIM), jnp.float32),
        grid_spec=pltpu.PrefetchScalarGridSpec(
            num_scalar_prefetch=0,
            grid=(n_blocks,),
            in_specs=in_specs,
            out_specs=out_specs),
        compiler_params=pltpu.CompilerParams(
            dimension_semantics=("parallel",),     # megacore-shardable grid axis
            vmem_limit_bytes=32 << 20),            # v7x-safe (64 MiB physical/TC)
        cost_estimate=cost,
    )(x2d, big_mask, w_slab, b_slab)


@partial(jax.jit, static_argnames=('TB',))
def _forward_jit(past_traj, mask, w_slab, b_slab, *, TB):
    """Entire hot path under one jit: pad/cast input, build block-diag mask,
    run the Pallas kernel, slice the padding back off."""
    B, A, P, D = past_traj.shape
    x = past_traj.reshape(B, A, P * D).astype(jnp.bfloat16)
    x = jnp.pad(x, ((0, 0), (0, 0), (0, IN_PAD - IN_DIM)))
    Bp = -(-B // TB) * TB
    if Bp > B:
        x = jnp.pad(x, ((0, Bp - B), (0, 0), (0, 0)))
    R = TB * A

    if mask is None:
        m = jnp.zeros((A, A), jnp.float32)
    else:
        m = mask.astype(jnp.float32)
    # Block-diagonal additive mask: user mask on per-batch diagonal blocks,
    # large negative off-diagonal so folded batches never attend to each other.
    blockdiag = jnp.kron(jnp.eye(TB, dtype=jnp.float32),
                         jnp.ones((A, A), jnp.float32))
    big_mask = jnp.where(blockdiag > 0, jnp.tile(m, (TB, TB)),
                         jnp.float32(NEG_MASK))

    x2d = x.reshape(Bp * A, IN_PAD)
    out = _run_pallas(x2d, big_mask, w_slab, b_slab)
    return out.reshape(Bp, A, OUT_DIM)[:B]


def _default_target_rows():
    # v5e is MXU-bound: a smaller fold halves the wasted cross-batch attention
    # FLOPs.  v6e/v7x keep 256 rows so the ~0.35us/step overhead stays amortized.
    try:
        kind = jax.devices()[0].device_kind.lower()
    except Exception:
        return 256
    if 'v5e' in kind or 'v5 lite' in kind or 'v5lite' in kind:
        return 128
    return 256


def social_transformer(past_traj, mask, packed_params, target_rows=None):
    """past_traj: [B, A, P, D]; mask: None or additive [A, A] float attention mask;
    packed_params: output of pack_params()."""
    w_slab, b_slab = packed_params
    B, A, P, D = past_traj.shape
    assert P * D == IN_DIM, f"P*D must equal in_dim={IN_DIM}"

    if target_rows is None:
        target_rows = _default_target_rows()

    # Fold TB batch elements per grid step so TB*A ~= target_rows MXU rows;
    # keep TB*A a multiple of 16 (bf16 sublane tile on the activation block).
    unit = 16 // math.gcd(A, 16)
    TB = max(1, target_rows // A)
    TB = max(unit, (TB // unit) * unit)
    Bu = -(-B // unit) * unit
    TB = min(TB, Bu)
    # Prefer >= 2 grid steps (keeps v7x's 2nd TensorCore busy) when the batch is
    # large enough that each step still gets >= MIN_SPLIT_ROWS rows of MXU work.
    half = (B // (2 * unit)) * unit
    if half >= unit and half * A >= MIN_SPLIT_ROWS:
        TB = min(TB, half)

    return _forward_jit(past_traj, mask, w_slab, b_slab, TB=TB)


# ------------------------- pure-JAX reference (f32) -------------------------
def reference(past_traj, mask, params):
    B, A, P, D = past_traj.shape
    x = past_traj.reshape(B, A, P * D).astype(jnp.float32)
    if mask is None:
        mask = jnp.zeros((A, A), jnp.float32)
    h = x @ params['w_enc']
    y = h
    scale = 1.0 / (HEAD_DIM ** 0.5)
    for l in range(NLAYERS):
        qkv = y @ params['wqkv'][l] + params['bqkv'][l]
        q, k, v = jnp.split(qkv, 3, axis=-1)
        qh = q.reshape(B, A, NHEAD, HEAD_DIM).transpose(0, 2, 1, 3)
        kh = k.reshape(B, A, NHEAD, HEAD_DIM).transpose(0, 2, 1, 3)
        vh = v.reshape(B, A, NHEAD, HEAD_DIM).transpose(0, 2, 1, 3)
        s = jnp.einsum('bhqd,bhkd->bhqk', qh, kh) * scale + mask
        p = jax.nn.softmax(s, axis=-1)
        attn = jnp.einsum('bhqk,bhkd->bhqd', p, vh).transpose(0, 2, 1, 3)
        attn = attn.reshape(B, A, HIDDEN) @ params['wo'][l] + params['bo'][l]
        y = _layernorm(y + attn, params['ln1w'][l], params['ln1b'][l])
        ff = jax.nn.relu(y @ params['w1'][l] + params['b1'][l])
        ff = ff @ params['w2'][l] + params['b2'][l]
        y = _layernorm(y + ff, params['ln2w'][l], params['ln2b'][l])
    feat = h + y
    return feat @ params['w_out'] + params['b_out']


if __name__ == "__main__":
    key = jax.random.PRNGKey(0)
    kp, kx = jax.random.split(key)
    params = make_params(kp)
    packed = pack_params(params)          # once per model: cast/pad/scale-fold

    # Small shapes consistent with the module: in_dim = P*D = 48.
    B, A, P, D = 2, 8, 8, 6
    past_traj = jax.random.normal(kx, (B, A, P, D), jnp.float32)
    mask = None   # same as an all-zeros [A, A] additive attention mask

    out = social_transformer(past_traj, mask, packed)
    out = jax.block_until_ready(out)

    ref = reference(past_traj, mask, params)
    assert out.shape == (B, A, OUT_DIM), out.shape
    # Tolerance accounts for bf16 matmul operands / activations (f32 accumulation)
    # and the approximate softmax reciprocal.
    assert jnp.allclose(out, ref, atol=1e-1, rtol=1e-1), \
        float(jnp.max(jnp.abs(out - ref)))
    print("KERNEL_OK")
</pallas_src>

<mosaic_0001>
module attributes {stable_mosaic.version = 11 : i64} {
  func.func @social_transformer_kernel(%arg0: i32, %arg1: memref<16x128xbf16, #tpu.memory_space<vmem>>, %arg2: memref<16x16xf32, #tpu.memory_space<vmem>>, %arg3: memref<14x256x256xbf16, #tpu.memory_space<vmem>>, %arg4: memref<24x256xf32, #tpu.memory_space<vmem>>, %arg5: memref<16x128xf32, #tpu.memory_space<vmem>>) attributes {dimension_semantics = [#tpu.dimension_semantics<parallel>], iteration_bounds = array<i64: 1>, scalar_prefetch = 0 : i64, scratch_operands = 0 : i64, tpu.core_type = #tpu.core_type<tc>, window_params = [{transform_indices = @transform_0, window_bounds = array<i64: 16, 128>}, {pipeline_mode = #tpu.pipeline_mode<synchronous>, transform_indices = @transform_1, window_bounds = array<i64: 16, 16>}, {pipeline_mode = #tpu.pipeline_mode<synchronous>, transform_indices = @transform_2, window_bounds = array<i64: 14, 256, 256>}, {pipeline_mode = #tpu.pipeline_mode<synchronous>, transform_indices = @transform_3, window_bounds = array<i64: 24, 256>}, {transform_indices = @transform_4, window_bounds = array<i64: 16, 128>}]} {
    %c0 = arith.constant 0 : index
    %c0_0 = arith.constant 0 : index
    %0 = vector.load %arg1[%c0, %c0_0] : memref<16x128xbf16, #tpu.memory_space<vmem>>, vector<16x128xbf16>
    %c0_1 = arith.constant 0 : index
    %c0_2 = arith.constant 0 : index
    %1 = vector.load %arg2[%c0_1, %c0_2] : memref<16x16xf32, #tpu.memory_space<vmem>>, vector<16x16xf32>
    %c0_3 = arith.constant 0 : index
    %c0_4 = arith.constant 0 : index
    %c0_5 = arith.constant 0 : index
    %2 = vector.load %arg3[%c0_3, %c0_4, %c0_5] : memref<14x256x256xbf16, #tpu.memory_space<vmem>>, vector<1x256x256xbf16>
    %3 = vector.shape_cast %2 : vector<1x256x256xbf16> to vector<256x256xbf16>
    %4 = vector.extract_strided_slice %3 {offsets = [0, 0], sizes = [128, 256], strides = [1, 1]} : vector<256x256xbf16> to vector<128x256xbf16>
    %cst = arith.constant dense<0.000000e+00> : vector<16x256xf32>
    %5 = tpu.matmul %0, %4, %cst {dimension_numbers = #tpu.dot_dimension_numbers<[1], [0], [0], [1], [0, 0, 1, 1], [], []>} : vector<16x128xbf16>, vector<128x256xbf16>, vector<16x256xf32> -> vector<16x256xf32>
    %6 = arith.truncf %5 : vector<16x256xf32> to vector<16x256xbf16>
    %c1 = arith.constant 1 : index
    %c0_6 = arith.constant 0 : index
    %c0_7 = arith.constant 0 : index
    %7 = vector.load %arg3[%c1, %c0_6, %c0_7] : memref<14x256x256xbf16, #tpu.memory_space<vmem>>, vector<1x256x256xbf16>
    %8 = vector.shape_cast %7 : vector<1x256x256xbf16> to vector<256x256xbf16>
    %cst_8 = arith.constant dense<0.000000e+00> : vector<16x256xf32>
    %9 = tpu.matmul %6, %8, %cst_8 {dimension_numbers = #tpu.dot_dimension_numbers<[1], [0], [0], [1], [0, 0, 1, 1], [], []>} : vector<16x256xbf16>, vector<256x256xbf16>, vector<16x256xf32> -> vector<16x256xf32>
    %c0_9 = arith.constant 0 : index
    %c0_10 = arith.constant 0 : index
    %10 = vector.load %arg4[%c0_9, %c0_10] : memref<24x256xf32, #tpu.memory_space<vmem>>, vector<1x256xf32>
    %11 = vector.broadcast %10 : vector<1x256xf32> to vector<16x256xf32>
    %12 = arith.addf %9, %11 : vector<16x256xf32>
    %13 = arith.truncf %12 : vector<16x256xf32> to vector<16x256xbf16>
    %c2 = arith.constant 2 : index
    %c0_11 = arith.constant 0 : index
    %c0_12 = arith.constant 0 : index
    %14 = vector.load %arg3[%c2, %c0_11, %c0_12] : memref<14x256x256xbf16, #tpu.memory_space<vmem>>, vector<1x256x256xbf16>
    %15 = vector.shape_cast %14 : vector<1x256x256xbf16> to vector<256x256xbf16>
    %cst_13 = arith.constant dense<0.000000e+00> : vector<16x256xf32>
    %16 = tpu.matmul %6, %15, %cst_13 {dimension_numbers = #tpu.dot_dimension_numbers<[1], [0], [0], [1], [0, 0, 1, 1], [], []>} : vector<16x256xbf16>, vector<256x256xbf16>, vector<16x256xf32> -> vector<16x256xf32>
    %c1_14 = arith.constant 1 : index
    %c0_15 = arith.constant 0 : index
    %17 = vector.load %arg4[%c1_14, %c0_15] : memref<24x256xf32, #tpu.memory_space<vmem>>, vector<1x256xf32>
    %18 = vector.broadcast %17 : vector<1x256xf32> to vector<16x256xf32>
    %19 = arith.addf %16, %18 : vector<16x256xf32>
    %20 = arith.truncf %19 : vector<16x256xf32> to vector<16x256xbf16>
    %c3 = arith.constant 3 : index
    %c0_16 = arith.constant 0 : index
    %c0_17 = arith.constant 0 : index
    %21 = vector.load %arg3[%c3, %c0_16, %c0_17] : memref<14x256x256xbf16, #tpu.memory_space<vmem>>, vector<1x256x256xbf16>
    %22 = vector.shape_cast %21 : vector<1x256x256xbf16> to vector<256x256xbf16>
    %cst_18 = arith.constant dense<0.000000e+00> : vector<16x256xf32>
    %23 = tpu.matmul %6, %22, %cst_18 {dimension_numbers = #tpu.dot_dimension_numbers<[1], [0], [0], [1], [0, 0, 1, 1], [], []>} : vector<16x256xbf16>, vector<256x256xbf16>, vector<16x256xf32> -> vector<16x256xf32>
    %c2_19 = arith.constant 2 : index
    %c0_20 = arith.constant 0 : index
    %24 = vector.load %arg4[%c2_19, %c0_20] : memref<24x256xf32, #tpu.memory_space<vmem>>, vector<1x256xf32>
    %25 = vector.broadcast %24 : vector<1x256xf32> to vector<16x256xf32>
    %26 = arith.addf %23, %25 : vector<16x256xf32>
    %27 = arith.truncf %26 : vector<16x256xf32> to vector<16x256xbf16>
    %c4 = arith.constant 4 : index
    %c0_21 = arith.constant 0 : index
    %c0_22 = arith.constant 0 : index
    %28 = vector.load %arg3[%c4, %c0_21, %c0_22] : memref<14x256x256xbf16, #tpu.memory_space<vmem>>, vector<1x256x256xbf16>
    %29 = vector.shape_cast %28 : vector<1x256x256xbf16> to vector<256x256xbf16>
    %c3_23 = arith.constant 3 : index
    %c0_24 = arith.constant 0 : index
    %30 = vector.load %arg4[%c3_23, %c0_24] : memref<24x256xf32, #tpu.memory_space<vmem>>, vector<1x256xf32>
    %31 = vector.extract_strided_slice %13 {offsets = [0, 0], sizes = [16, 128], strides = [1, 1]} : vector<16x256xbf16> to vector<16x128xbf16>
    %32 = vector.extract_strided_slice %20 {offsets = [0, 0], sizes = [16, 128], strides = [1, 1]} : vector<16x256xbf16> to vector<16x128xbf16>
    %cst_25 = arith.constant dense<0.000000e+00> : vector<16x16xf32>
    %33 = tpu.matmul %31, %32, %cst_25 {dimension_numbers = #tpu.dot_dimension_numbers<[1], [1], [0], [0], [0, 0, 1, 0], [], []>} : vector<16x128xbf16>, vector<16x128xbf16>, vector<16x16xf32> -> vector<16x16xf32>
    %34 = arith.addf %33, %1 : vector<16x16xf32>
    %cst_26 = arith.constant dense<0xFF800000> : vector<16xf32>
    %35 = vector.multi_reduction <maximumf>, %34, %cst_26 [1] : vector<16x16xf32> to vector<16xf32>
    %36 = vector.shape_cast %35 : vector<16xf32> to vector<16x1xf32>
    %37 = vector.broadcast %36 : vector<16x1xf32> to vector<16x16xf32>
    %38 = arith.subf %34, %37 : vector<16x16xf32>
    %39 = math.exp %38 : vector<16x16xf32>
    %cst_27 = arith.constant dense<0.000000e+00> : vector<16xf32>
    %40 = vector.multi_reduction <add>, %39, %cst_27 [1] : vector<16x16xf32> to vector<16xf32>
    %41 = vector.shape_cast %40 : vector<16xf32> to vector<16x1xf32>
    %42 = tpu.reciprocal %41 {approx = true} : vector<16x1xf32> -> vector<16x1xf32>
    %43 = vector.broadcast %42 : vector<16x1xf32> to vector<16x16xf32>
    %44 = arith.mulf %39, %43 : vector<16x16xf32>
    %45 = arith.truncf %44 : vector<16x16xf32> to vector<16x16xbf16>
    %46 = vector.extract_strided_slice %27 {offsets = [0, 0], sizes = [16, 128], strides = [1, 1]} : vector<16x256xbf16> to vector<16x128xbf16>
    %cst_28 = arith.constant dense<0.000000e+00> : vector<16x128xf32>
    %47 = tpu.matmul %45, %46, %cst_28 {dimension_numbers = #tpu.dot_dimension_numbers<[1], [0], [0], [1], [0, 0, 1, 1], [], []>} : vector<16x16xbf16>, vector<16x128xbf16>, vector<16x128xf32> -> vector<16x128xf32>
    %48 = arith.truncf %47 : vector<16x128xf32> to vector<16x128xbf16>
    %49 = vector.extract_strided_slice %29 {offsets = [0, 0], sizes = [128, 256], strides = [1, 1]} : vector<256x256xbf16> to vector<128x256xbf16>
    %cst_29 = arith.constant dense<0.000000e+00> : vector<16x256xf32>
    %50 = tpu.matmul %48, %49, %cst_29 {dimension_numbers = #tpu.dot_dimension_numbers<[1], [0], [0], [1], [0, 0, 1, 1], [], []>} : vector<16x128xbf16>, vector<128x256xbf16>, vector<16x256xf32> -> vector<16x256xf32>
    %51 = vector.broadcast %30 : vector<1x256xf32> to vector<16x256xf32>
    %52 = arith.addf %51, %50 : vector<16x256xf32>
    %53 = vector.extract_strided_slice %13 {offsets = [0, 128], sizes = [16, 128], strides = [1, 1]} : vector<16x256xbf16> to vector<16x128xbf16>
    %54 = vector.extract_strided_slice %20 {offsets = [0, 128], sizes = [16, 128], strides = [1, 1]} : vector<16x256xbf16> to vector<16x128xbf16>
    %cst_30 = arith.constant dense<0.000000e+00> : vector<16x16xf32>
    %55 = tpu.matmul %53, %54, %cst_30 {dimension_numbers = #tpu.dot_dimension_numbers<[1], [1], [0], [0], [0, 0, 1, 0], [], []>} : vector<16x128xbf16>, vector<16x128xbf16>, vector<16x16xf32> -> vector<16x16xf32>
    %56 = arith.addf %55, %1 : vector<16x16xf32>
    %cst_31 = arith.constant dense<0xFF800000> : vector<16xf32>
    %57 = vector.multi_reduction <maximumf>, %56, %cst_31 [1] : vector<16x16xf32> to vector<16xf32>
    %58 = vector.shape_cast %57 : vector<16xf32> to vector<16x1xf32>
    %59 = vector.broadcast %58 : vector<16x1xf32> to vector<16x16xf32>
    %60 = arith.subf %56, %59 : vector<16x16xf32>
    %61 = math.exp %60 : vector<16x16xf32>
    %cst_32 = arith.constant dense<0.000000e+00> : vector<16xf32>
    %62 = vector.multi_reduction <add>, %61, %cst_32 [1] : vector<16x16xf32> to vector<16xf32>
    %63 = vector.shape_cast %62 : vector<16xf32> to vector<16x1xf32>
    %64 = tpu.reciprocal %63 {approx = true} : vector<16x1xf32> -> vector<16x1xf32>
    %65 = vector.broadcast %64 : vector<16x1xf32> to vector<16x16xf32>
    %66 = arith.mulf %61, %65 : vector<16x16xf32>
    %67 = arith.truncf %66 : vector<16x16xf32> to vector<16x16xbf16>
    %68 = vector.extract_strided_slice %27 {offsets = [0, 128], sizes = [16, 128], strides = [1, 1]} : vector<16x256xbf16> to vector<16x128xbf16>
    %cst_33 = arith.constant dense<0.000000e+00> : vector<16x128xf32>
    %69 = tpu.matmul %67, %68, %cst_33 {dimension_numbers = #tpu.dot_dimension_numbers<[1], [0], [0], [1], [0, 0, 1, 1], [], []>} : vector<16x16xbf16>, vector<16x128xbf16>, vector<16x128xf32> -> vector<16x128xf32>
    %70 = arith.truncf %69 : vector<16x128xf32> to vector<16x128xbf16>
    %71 = vector.extract_strided_slice %29 {offsets = [128, 0], sizes = [128, 256], strides = [1, 1]} : vector<256x256xbf16> to vector<128x256xbf16>
    %cst_34 = arith.constant dense<0.000000e+00> : vector<16x256xf32>
    %72 = tpu.matmul %70, %71, %cst_34 {dimension_numbers = #tpu.dot_dimension_numbers<[1], [0], [0], [1], [0, 0, 1, 1], [], []>} : vector<16x128xbf16>, vector<128x256xbf16>, vector<16x256xf32> -> vector<16x256xf32>
    %73 = arith.addf %52, %72 : vector<16x256xf32>
    %74 = arith.addf %5, %73 : vector<16x256xf32>
    %c4_35 = arith.constant 4 : index
    %c0_36 = arith.constant 0 : index
    %75 = vector.load %arg4[%c4_35, %c0_36] : memref<24x256xf32, #tpu.memory_space<vmem>>, vector<1x256xf32>
    %c5 = arith.constant 5 : index
    %c0_37 = arith.constant 0 : index
    %76 = vector.load %arg4[%c5, %c0_37] : memref<24x256xf32, #tpu.memory_space<vmem>>, vector<1x256xf32>
    %cst_38 = arith.constant dense<0.000000e+00> : vector<16xf32>
    %77 = vector.multi_reduction <add>, %74, %cst_38 [1] : vector<16x256xf32> to vector<16xf32>
    %78 = vector.shape_cast %77 : vector<16xf32> to vector<16x1xf32>
    %cst_39 = arith.constant 2.560000e+02 : f32
    %79 = vector.broadcast %cst_39 : f32 to vector<16x1xf32>
    %80 = arith.divf %78, %79 : vector<16x1xf32>
    %81 = arith.mulf %74, %74 : vector<16x256xf32>
    %cst_40 = arith.constant dense<0.000000e+00> : vector<16xf32>
    %82 = vector.multi_reduction <add>, %81, %cst_40 [1] : vector<16x256xf32> to vector<16xf32>
    %83 = vector.shape_cast %82 : vector<16xf32> to vector<16x1xf32>
    %cst_41 = arith.constant 2.560000e+02 : f32
    %84 = vector.broadcast %cst_41 : f32 to vector<16x1xf32>
    %85 = arith.divf %83, %84 : vector<16x1xf32>
    %86 = arith.mulf %80, %80 : vector<16x1xf32>
    %87 = arith.subf %85, %86 : vector<16x1xf32>
    %88 = vector.broadcast %80 : vector<16x1xf32> to vector<16x256xf32>
    %89 = arith.subf %74, %88 : vector<16x256xf32>
    %cst_42 = arith.constant 9.99999974E-6 : f32
    %90 = vector.broadcast %cst_42 : f32 to vector<16x1xf32>
    %91 = arith.addf %87, %90 : vector<16x1xf32>
    %92 = math.rsqrt %91 : vector<16x1xf32>
    %93 = vector.broadcast %92 : vector<16x1xf32> to vector<16x256xf32>
    %94 = arith.mulf %89, %93 : vector<16x256xf32>
    %95 = vector.broadcast %75 : vector<1x256xf32> to vector<16x256xf32>
    %96 = arith.mulf %94, %95 : vector<16x256xf32>
    %97 = vector.broadcast %76 : vector<1x256xf32> to vector<16x256xf32>
    %98 = arith.addf %96, %97 : vector<16x256xf32>
    %99 = arith.truncf %98 : vector<16x256xf32> to vector<16x256xbf16>
    %c5_43 = arith.constant 5 : index
    %c0_44 = arith.constant 0 : index
    %c0_45 = arith.constant 0 : index
    %100 = vector.load %arg3[%c5_43, %c0_44, %c0_45] : memref<14x256x256xbf16, #tpu.memory_space<vmem>>, vector<1x256x256xbf16>
    %101 = vector.shape_cast %100 : vector<1x256x256xbf16> to vector<256x256xbf16>
    %cst_46 = arith.constant dense<0.000000e+00> : vector<16x256xf32>
    %102 = tpu.matmul %99, %101, %cst_46 {dimension_numbers = #tpu.dot_dimension_numbers<[1], [0], [0], [1], [0, 0, 1, 1], [], []>} : vector<16x256xbf16>, vector<256x256xbf16>, vector<16x256xf32> -> vector<16x256xf32>
    %c6 = arith.constant 6 : index
    %c0_47 = arith.constant 0 : index
    %103 = vector.load %arg4[%c6, %c0_47] : memref<24x256xf32, #tpu.memory_space<vmem>>, vector<1x256xf32>
    %104 = vector.broadcast %103 : vector<1x256xf32> to vector<16x256xf32>
    %105 = arith.addf %102, %104 : vector<16x256xf32>
    %cst_48 = arith.constant 0.000000e+00 : f32
    %106 = vector.broadcast %cst_48 : f32 to vector<16x256xf32>
    %107 = arith.maximumf %105, %106 : vector<16x256xf32>
    %108 = arith.truncf %107 : vector<16x256xf32> to vector<16x256xbf16>
    %c6_49 = arith.constant 6 : index
    %c0_50 = arith.constant 0 : index
    %c0_51 = arith.constant 0 : index
    %109 = vector.load %arg3[%c6_49, %c0_50, %c0_51] : memref<14x256x256xbf16, #tpu.memory_space<vmem>>, vector<1x256x256xbf16>
    %110 = vector.shape_cast %109 : vector<1x256x256xbf16> to vector<256x256xbf16>
    %cst_52 = arith.constant dense<0.000000e+00> : vector<16x256xf32>
    %111 = tpu.matmul %108, %110, %cst_52 {dimension_numbers = #tpu.dot_dimension_numbers<[1], [0], [0], [1], [0, 0, 1, 1], [], []>} : vector<16x256xbf16>, vector<256x256xbf16>, vector<16x256xf32> -> vector<16x256xf32>
    %c7 = arith.constant 7 : index
    %c0_53 = arith.constant 0 : index
    %112 = vector.load %arg4[%c7, %c0_53] : memref<24x256xf32, #tpu.memory_space<vmem>>, vector<1x256xf32>
    %113 = vector.broadcast %112 : vector<1x256xf32> to vector<16x256xf32>
    %114 = arith.addf %111, %113 : vector<16x256xf32>
    %115 = arith.addf %98, %114 : vector<16x256xf32>
    %c8 = arith.constant 8 : index
    %c0_54 = arith.constant 0 : index
    %116 = vector.load %arg4[%c8, %c0_54] : memref<24x256xf32, #tpu.memory_space<vmem>>, vector<1x256xf32>
    %c9 = arith.constant 9 : index
    %c0_55 = arith.constant 0 : index
    %117 = vector.load %arg4[%c9, %c0_55] : memref<24x256xf32, #tpu.memory_space<vmem>>, vector<1x256xf32>
    %cst_56 = arith.constant dense<0.000000e+00> : vector<16xf32>
    %118 = vector.multi_reduction <add>, %115, %cst_56 [1] : vector<16x256xf32> to vector<16xf32>
    %119 = vector.shape_cast %118 : vector<16xf32> to vector<16x1xf32>
    %cst_57 = arith.constant 2.560000e+02 : f32
    %120 = vector.broadcast %cst_57 : f32 to vector<16x1xf32>
    %121 = arith.divf %119, %120 : vector<16x1xf32>
    %122 = arith.mulf %115, %115 : vector<16x256xf32>
    %cst_58 = arith.constant dense<0.000000e+00> : vector<16xf32>
    %123 = vector.multi_reduction <add>, %122, %cst_58 [1] : vector<16x256xf32> to vector<16xf32>
    %124 = vector.shape_cast %123 : vector<16xf32> to vector<16x1xf32>
    %cst_59 = arith.constant 2.560000e+02 : f32
    %125 = vector.broadcast %cst_59 : f32 to vector<16x1xf32>
    %126 = arith.divf %124, %125 : vector<16x1xf32>
    %127 = arith.mulf %121, %121 : vector<16x1xf32>
    %128 = arith.subf %126, %127 : vector<16x1xf32>
    %129 = vector.broadcast %121 : vector<16x1xf32> to vector<16x256xf32>
    %130 = arith.subf %115, %129 : vector<16x256xf32>
    %cst_60 = arith.constant 9.99999974E-6 : f32
    %131 = vector.broadcast %cst_60 : f32 to vector<16x1xf32>
    %132 = arith.addf %128, %131 : vector<16x1xf32>
    %133 = math.rsqrt %132 : vector<16x1xf32>
    %134 = vector.broadcast %133 : vector<16x1xf32> to vector<16x256xf32>
    %135 = arith.mulf %130, %134 : vector<16x256xf32>
    %136 = vector.broadcast %116 : vector<1x256xf32> to vector<16x256xf32>
    %137 = arith.mulf %135, %136 : vector<16x256xf32>
    %138 = vector.broadcast %117 : vector<1x256xf32> to vector<16x256xf32>
    %139 = arith.addf %137, %138 : vector<16x256xf32>
    %140 = arith.truncf %139 : vector<16x256xf32> to vector<16x256xbf16>
    %c7_61 = arith.constant 7 : index
    %c0_62 = arith.constant 0 : index
    %c0_63 = arith.constant 0 : index
    %141 = vector.load %arg3[%c7_61, %c0_62, %c0_63] : memref<14x256x256xbf16, #tpu.memory_space<vmem>>, vector<1x256x256xbf16>
    %142 = vector.shape_cast %141 : vector<1x256x256xbf16> to vector<256x256xbf16>
    %cst_64 = arith.constant dense<0.000000e+00> : vector<16x256xf32>
    %143 = tpu.matmul %140, %142, %cst_64 {dimension_numbers = #tpu.dot_dimension_numbers<[1], [0], [0], [1], [0, 0, 1, 1], [], []>} : vector<16x256xbf16>, vector<256x256xbf16>, vector<16x256xf32> -> vector<16x256xf32>
    %c10 = arith.constant 10 : index
    %c0_65 = arith.constant 0 : index
    %144 = vector.load %arg4[%c10, %c0_65] : memref<24x256xf32, #tpu.memory_space<vmem>>, vector<1x256xf32>
    %145 = vector.broadcast %144 : vector<1x256xf32> to vector<16x256xf32>
    %146 = arith.addf %143, %145 : vector<16x256xf32>
    %147 = arith.truncf %146 : vector<16x256xf32> to vector<16x256xbf16>
    %c8_66 = arith.constant 8 : index
    %c0_67 = arith.constant 0 : index
    %c0_68 = arith.constant 0 : index
    %148 = vector.load %arg3[%c8_66, %c0_67, %c0_68] : memref<14x256x256xbf16, #tpu.memory_space<vmem>>, vector<1x256x256xbf16>
    %149 = vector.shape_cast %148 : vector<1x256x256xbf16> to vector<256x256xbf16>
    %cst_69 = arith.constant dense<0.000000e+00> : vector<16x256xf32>
    %150 = tpu.matmul %140, %149, %cst_69 {dimension_numbers = #tpu.dot_dimension_numbers<[1], [0], [0], [1], [0, 0, 1, 1], [], []>} : vector<16x256xbf16>, vector<256x256xbf16>, vector<16x256xf32> -> vector<16x256xf32>
    %c11 = arith.constant 11 : index
    %c0_70 = arith.constant 0 : index
    %151 = vector.load %arg4[%c11, %c0_70] : memref<24x256xf32, #tpu.memory_space<vmem>>, vector<1x256xf32>
    %152 = vector.broadcast %151 : vector<1x256xf32> to vector<16x256xf32>
    %153 = arith.addf %150, %152 : vector<16x256xf32>
    %154 = arith.truncf %153 : vector<16x256xf32> to vector<16x256xbf16>
    %c9_71 = arith.constant 9 : index
    %c0_72 = arith.constant 0 : index
    %c0_73 = arith.constant 0 : index
    %155 = vector.load %arg3[%c9_71, %c0_72, %c0_73] : memref<14x256x256xbf16, #tpu.memory_space<vmem>>, vector<1x256x256xbf16>
    %156 = vector.shape_cast %155 : vector<1x256x256xbf16> to vector<256x256xbf16>
    %cst_74 = arith.constant dense<0.000000e+00> : vector<16x256xf32>
    %157 = tpu.matmul %140, %156, %cst_74 {dimension_numbers = #tpu.dot_dimension_numbers<[1], [0], [0], [1], [0, 0, 1, 1], [], []>} : vector<16x256xbf16>, vector<256x256xbf16>, vector<16x256xf32> -> vector<16x256xf32>
    %c12 = arith.constant 12 : index
    %c0_75 = arith.constant 0 : index
    %158 = vector.load %arg4[%c12, %c0_75] : memref<24x256xf32, #tpu.memory_space<vmem>>, vector<1x256xf32>
    %159 = vector.broadcast %158 : vector<1x256xf32> to vector<16x256xf32>
    %160 = arith.addf %157, %159 : vector<16x256xf32>
    %161 = arith.truncf %160 : vector<16x256xf32> to vector<16x256xbf16>
    %c10_76 = arith.constant 10 : index
    %c0_77 = arith.constant 0 : index
    %c0_78 = arith.constant 0 : index
    %162 = vector.load %arg3[%c10_76, %c0_77, %c0_78] : memref<14x256x256xbf16, #tpu.memory_space<vmem>>, vector<1x256x256xbf16>
    %163 = vector.shape_cast %162 : vector<1x256x256xbf16> to vector<256x256xbf16>
    %c13 = arith.constant 13 : index
    %c0_79 = arith.constant 0 : index
    %164 = vector.load %arg4[%c13, %c0_79] : memref<24x256xf32, #tpu.memory_space<vmem>>, vector<1x256xf32>
    %165 = vector.extract_strided_slice %147 {offsets = [0, 0], sizes = [16, 128], strides = [1, 1]} : vector<16x256xbf16> to vector<16x128xbf16>
    %166 = vector.extract_strided_slice %154 {offsets = [0, 0], sizes = [16, 128], strides = [1, 1]} : vector<16x256xbf16> to vector<16x128xbf16>
    %cst_80 = arith.constant dense<0.000000e+00> : vector<16x16xf32>
    %167 = tpu.matmul %165, %166, %cst_80 {dimension_numbers = #tpu.dot_dimension_numbers<[1], [1], [0], [0], [0, 0, 1, 0], [], []>} : vector<16x128xbf16>, vector<16x128xbf16>, vector<16x16xf32> -> vector<16x16xf32>
    %168 = arith.addf %167, %1 : vector<16x16xf32>
    %cst_81 = arith.constant dense<0xFF800000> : vector<16xf32>
    %169 = vector.multi_reduction <maximumf>, %168, %cst_81 [1] : vector<16x16xf32> to vector<16xf32>
    %170 = vector.shape_cast %169 : vector<16xf32> to vector<16x1xf32>
    %171 = vector.broadcast %170 : vector<16x1xf32> to vector<16x16xf32>
    %172 = arith.subf %168, %171 : vector<16x16xf32>
    %173 = math.exp %172 : vector<16x16xf32>
    %cst_82 = arith.constant dense<0.000000e+00> : vector<16xf32>
    %174 = vector.multi_reduction <add>, %173, %cst_82 [1] : vector<16x16xf32> to vector<16xf32>
    %175 = vector.shape_cast %174 : vector<16xf32> to vector<16x1xf32>
    %176 = tpu.reciprocal %175 {approx = true} : vector<16x1xf32> -> vector<16x1xf32>
    %177 = vector.broadcast %176 : vector<16x1xf32> to vector<16x16xf32>
    %178 = arith.mulf %173, %177 : vector<16x16xf32>
    %179 = arith.truncf %178 : vector<16x16xf32> to vector<16x16xbf16>
    %180 = vector.extract_strided_slice %161 {offsets = [0, 0], sizes = [16, 128], strides = [1, 1]} : vector<16x256xbf16> to vector<16x128xbf16>
    %cst_83 = arith.constant dense<0.000000e+00> : vector<16x128xf32>
    %181 = tpu.matmul %179, %180, %cst_83 {dimension_numbers = #tpu.dot_dimension_numbers<[1], [0], [0], [1], [0, 0, 1, 1], [], []>} : vector<16x16xbf16>, vector<16x128xbf16>, vector<16x128xf32> -> vector<16x128xf32>
    %182 = arith.truncf %181 : vector<16x128xf32> to vector<16x128xbf16>
    %183 = vector.extract_strided_slice %163 {offsets = [0, 0], sizes = [128, 256], strides = [1, 1]} : vector<256x256xbf16> to vector<128x256xbf16>
    %cst_84 = arith.constant dense<0.000000e+00> : vector<16x256xf32>
    %184 = tpu.matmul %182, %183, %cst_84 {dimension_numbers = #tpu.dot_dimension_numbers<[1], [0], [0], [1], [0, 0, 1, 1], [], []>} : vector<16x128xbf16>, vector<128x256xbf16>, vector<16x256xf32> -> vector<16x256xf32>
    %185 = vector.broadcast %164 : vector<1x256xf32> to vector<16x256xf32>
    %186 = arith.addf %185, %184 : vector<16x256xf32>
    %187 = vector.extract_strided_slice %147 {offsets = [0, 128], sizes = [16, 128], strides = [1, 1]} : vector<16x256xbf16> to vector<16x128xbf16>
    %188 = vector.extract_strided_slice %154 {offsets = [0, 128], sizes = [16, 128], strides = [1, 1]} : vector<16x256xbf16> to vector<16x128xbf16>
    %cst_85 = arith.constant dense<0.000000e+00> : vector<16x16xf32>
    %189 = tpu.matmul %187, %188, %cst_85 {dimension_numbers = #tpu.dot_dimension_numbers<[1], [1], [0], [0], [0, 0, 1, 0], [], []>} : vector<16x128xbf16>, vector<16x128xbf16>, vector<16x16xf32> -> vector<16x16xf32>
    %190 = arith.addf %189, %1 : vector<16x16xf32>
    %cst_86 = arith.constant dense<0xFF800000> : vector<16xf32>
    %191 = vector.multi_reduction <maximumf>, %190, %cst_86 [1] : vector<16x16xf32> to vector<16xf32>
    %192 = vector.shape_cast %191 : vector<16xf32> to vector<16x1xf32>
    %193 = vector.broadcast %192 : vector<16x1xf32> to vector<16x16xf32>
    %194 = arith.subf %190, %193 : vector<16x16xf32>
    %195 = math.exp %194 : vector<16x16xf32>
    %cst_87 = arith.constant dense<0.000000e+00> : vector<16xf32>
    %196 = vector.multi_reduction <add>, %195, %cst_87 [1] : vector<16x16xf32> to vector<16xf32>
    %197 = vector.shape_cast %196 : vector<16xf32> to vector<16x1xf32>
    %198 = tpu.reciprocal %197 {approx = true} : vector<16x1xf32> -> vector<16x1xf32>
    %199 = vector.broadcast %198 : vector<16x1xf32> to vector<16x16xf32>
    %200 = arith.mulf %195, %199 : vector<16x16xf32>
    %201 = arith.truncf %200 : vector<16x16xf32> to vector<16x16xbf16>
    %202 = vector.extract_strided_slice %161 {offsets = [0, 128], sizes = [16, 128], strides = [1, 1]} : vector<16x256xbf16> to vector<16x128xbf16>
    %cst_88 = arith.constant dense<0.000000e+00> : vector<16x128xf32>
    %203 = tpu.matmul %201, %202, %cst_88 {dimension_numbers = #tpu.dot_dimension_numbers<[1], [0], [0], [1], [0, 0, 1, 1], [], []>} : vector<16x16xbf16>, vector<16x128xbf16>, vector<16x128xf32> -> vector<16x128xf32>
    %204 = arith.truncf %203 : vector<16x128xf32> to vector<16x128xbf16>
    %205 = vector.extract_strided_slice %163 {offsets = [128, 0], sizes = [128, 256], strides = [1, 1]} : vector<256x256xbf16> to vector<128x256xbf16>
    %cst_89 = arith.constant dense<0.000000e+00> : vector<16x256xf32>
    %206 = tpu.matmul %204, %205, %cst_89 {dimension_numbers = #tpu.dot_dimension_numbers<[1], [0], [0], [1], [0, 0, 1, 1], [], []>} : vector<16x128xbf16>, vector<128x256xbf16>, vector<16x256xf32> -> vector<16x256xf32>
    %207 = arith.addf %186, %206 : vector<16x256xf32>
    %208 = arith.addf %139, %207 : vector<16x256xf32>
    %c14 = arith.constant 14 : index
    %c0_90 = arith.constant 0 : index
    %209 = vector.load %arg4[%c14, %c0_90] : memref<24x256xf32, #tpu.memory_space<vmem>>, vector<1x256xf32>
    %c15 = arith.constant 15 : index
    %c0_91 = arith.constant 0 : index
    %210 = vector.load %arg4[%c15, %c0_91] : memref<24x256xf32, #tpu.memory_space<vmem>>, vector<1x256xf32>
    %cst_92 = arith.constant dense<0.000000e+00> : vector<16xf32>
    %211 = vector.multi_reduction <add>, %208, %cst_92 [1] : vector<16x256xf32> to vector<16xf32>
    %212 = vector.shape_cast %211 : vector<16xf32> to vector<16x1xf32>
    %cst_93 = arith.constant 2.560000e+02 : f32
    %213 = vector.broadcast %cst_93 : f32 to vector<16x1xf32>
    %214 = arith.divf %212, %213 : vector<16x1xf32>
    %215 = arith.mulf %208, %208 : vector<16x256xf32>
    %cst_94 = arith.constant dense<0.000000e+00> : vector<16xf32>
    %216 = vector.multi_reduction <add>, %215, %cst_94 [1] : vector<16x256xf32> to vector<16xf32>
    %217 = vector.shape_cast %216 : vector<16xf32> to vector<16x1xf32>
    %cst_95 = arith.constant 2.560000e+02 : f32
    %218 = vector.broadcast %cst_95 : f32 to vector<16x1xf32>
    %219 = arith.divf %217, %218 : vector<16x1xf32>
    %220 = arith.mulf %214, %214 : vector<16x1xf32>
    %221 = arith.subf %219, %220 : vector<16x1xf32>
    %222 = vector.broadcast %214 : vector<16x1xf32> to vector<16x256xf32>
    %223 = arith.subf %208, %222 : vector<16x256xf32>
    %cst_96 = arith.constant 9.99999974E-6 : f32
    %224 = vector.broadcast %cst_96 : f32 to vector<16x1xf32>
    %225 = arith.addf %221, %224 : vector<16x1xf32>
    %226 = math.rsqrt %225 : vector<16x1xf32>
    %227 = vector.broadcast %226 : vector<16x1xf32> to vector<16x256xf32>
    %228 = arith.mulf %223, %227 : vector<16x256xf32>
    %229 = vector.broadcast %209 : vector<1x256xf32> to vector<16x256xf32>
    %230 = arith.mulf %228, %229 : vector<16x256xf32>
    %231 = vector.broadcast %210 : vector<1x256xf32> to vector<16x256xf32>
    %232 = arith.addf %230, %231 : vector<16x256xf32>
    %233 = arith.truncf %232 : vector<16x256xf32> to vector<16x256xbf16>
    %c11_97 = arith.constant 11 : index
    %c0_98 = arith.constant 0 : index
    %c0_99 = arith.constant 0 : index
    %234 = vector.load %arg3[%c11_97, %c0_98, %c0_99] : memref<14x256x256xbf16, #tpu.memory_space<vmem>>, vector<1x256x256xbf16>
    %235 = vector.shape_cast %234 : vector<1x256x256xbf16> to vector<256x256xbf16>
    %cst_100 = arith.constant dense<0.000000e+00> : vector<16x256xf32>
    %236 = tpu.matmul %233, %235, %cst_100 {dimension_numbers = #tpu.dot_dimension_numbers<[1], [0], [0], [1], [0, 0, 1, 1], [], []>} : vector<16x256xbf16>, vector<256x256xbf16>, vector<16x256xf32> -> vector<16x256xf32>
    %c16 = arith.constant 16 : index
    %c0_101 = arith.constant 0 : index
    %237 = vector.load %arg4[%c16, %c0_101] : memref<24x256xf32, #tpu.memory_space<vmem>>, vector<1x256xf32>
    %238 = vector.broadcast %237 : vector<1x256xf32> to vector<16x256xf32>
    %239 = arith.addf %236, %238 : vector<16x256xf32>
    %cst_102 = arith.constant 0.000000e+00 : f32
    %240 = vector.broadcast %cst_102 : f32 to vector<16x256xf32>
    %241 = arith.maximumf %239, %240 : vector<16x256xf32>
    %242 = arith.truncf %241 : vector<16x256xf32> to vector<16x256xbf16>
    %c12_103 = arith.constant 12 : index
    %c0_104 = arith.constant 0 : index
    %c0_105 = arith.constant 0 : index
    %243 = vector.load %arg3[%c12_103, %c0_104, %c0_105] : memref<14x256x256xbf16, #tpu.memory_space<vmem>>, vector<1x256x256xbf16>
    %244 = vector.shape_cast %243 : vector<1x256x256xbf16> to vector<256x256xbf16>
    %cst_106 = arith.constant dense<0.000000e+00> : vector<16x256xf32>
    %245 = tpu.matmul %242, %244, %cst_106 {dimension_numbers = #tpu.dot_dimension_numbers<[1], [0], [0], [1], [0, 0, 1, 1], [], []>} : vector<16x256xbf16>, vector<256x256xbf16>, vector<16x256xf32> -> vector<16x256xf32>
    %c17 = arith.constant 17 : index
    %c0_107 = arith.constant 0 : index
    %246 = vector.load %arg4[%c17, %c0_107] : memref<24x256xf32, #tpu.memory_space<vmem>>, vector<1x256xf32>
    %247 = vector.broadcast %246 : vector<1x256xf32> to vector<16x256xf32>
    %248 = arith.addf %245, %247 : vector<16x256xf32>
    %249 = arith.addf %232, %248 : vector<16x256xf32>
    %c18 = arith.constant 18 : index
    %c0_108 = arith.constant 0 : index
    %250 = vector.load %arg4[%c18, %c0_108] : memref<24x256xf32, #tpu.memory_space<vmem>>, vector<1x256xf32>
    %c19 = arith.constant 19 : index
    %c0_109 = arith.constant 0 : index
    %251 = vector.load %arg4[%c19, %c0_109] : memref<24x256xf32, #tpu.memory_space<vmem>>, vector<1x256xf32>
    %cst_110 = arith.constant dense<0.000000e+00> : vector<16xf32>
    %252 = vector.multi_reduction <add>, %249, %cst_110 [1] : vector<16x256xf32> to vector<16xf32>
    %253 = vector.shape_cast %252 : vector<16xf32> to vector<16x1xf32>
    %cst_111 = arith.constant 2.560000e+02 : f32
    %254 = vector.broadcast %cst_111 : f32 to vector<16x1xf32>
    %255 = arith.divf %253, %254 : vector<16x1xf32>
    %256 = arith.mulf %249, %249 : vector<16x256xf32>
    %cst_112 = arith.constant dense<0.000000e+00> : vector<16xf32>
    %257 = vector.multi_reduction <add>, %256, %cst_112 [1] : vector<16x256xf32> to vector<16xf32>
    %258 = vector.shape_cast %257 : vector<16xf32> to vector<16x1xf32>
    %cst_113 = arith.constant 2.560000e+02 : f32
    %259 = vector.broadcast %cst_113 : f32 to vector<16x1xf32>
    %260 = arith.divf %258, %259 : vector<16x1xf32>
    %261 = arith.mulf %255, %255 : vector<16x1xf32>
    %262 = arith.subf %260, %261 : vector<16x1xf32>
    %263 = vector.broadcast %255 : vector<16x1xf32> to vector<16x256xf32>
    %264 = arith.subf %249, %263 : vector<16x256xf32>
    %cst_114 = arith.constant 9.99999974E-6 : f32
    %265 = vector.broadcast %cst_114 : f32 to vector<16x1xf32>
    %266 = arith.addf %262, %265 : vector<16x1xf32>
    %267 = math.rsqrt %266 : vector<16x1xf32>
    %268 = vector.broadcast %267 : vector<16x1xf32> to vector<16x256xf32>
    %269 = arith.mulf %264, %268 : vector<16x256xf32>
    %270 = vector.broadcast %250 : vector<1x256xf32> to vector<16x256xf32>
    %271 = arith.mulf %269, %270 : vector<16x256xf32>
    %272 = vector.broadcast %251 : vector<1x256xf32> to vector<16x256xf32>
    %273 = arith.addf %271, %272 : vector<16x256xf32>
    %274 = arith.addf %5, %273 : vector<16x256xf32>
    %275 = arith.truncf %274 : vector<16x256xf32> to vector<16x256xbf16>
    %c13_115 = arith.constant 13 : index
    %c0_116 = arith.constant 0 : index
    %c0_117 = arith.constant 0 : index
    %276 = vector.load %arg3[%c13_115, %c0_116, %c0_117] : memref<14x256x256xbf16, #tpu.memory_space<vmem>>, vector<1x256x256xbf16>
    %277 = vector.shape_cast %276 : vector<1x256x256xbf16> to vector<256x256xbf16>
    %278 = vector.extract_strided_slice %277 {offsets = [0, 0], sizes = [256, 128], strides = [1, 1]} : vector<256x256xbf16> to vector<256x128xbf16>
    %cst_118 = arith.constant dense<0.000000e+00> : vector<16x128xf32>
    %279 = tpu.matmul %275, %278, %cst_118 {dimension_numbers = #tpu.dot_dimension_numbers<[1], [0], [0], [1], [0, 0, 1, 1], [], []>} : vector<16x256xbf16>, vector<256x128xbf16>, vector<16x128xf32> -> vector<16x128xf32>
    %c20 = arith.constant 20 : index
    %c0_119 = arith.constant 0 : index
    %280 = vector.load %arg4[%c20, %c0_119] : memref<24x256xf32, #tpu.memory_space<vmem>>, vector<1x256xf32>
    %281 = vector.extract_strided_slice %280 {offsets = [0, 0], sizes = [1, 128], strides = [1, 1]} : vector<1x256xf32> to vector<1x128xf32>
    %282 = vector.broadcast %281 : vector<1x128xf32> to vector<16x128xf32>
    %283 = arith.addf %279, %282 : vector<16x128xf32>
    %c0_120 = arith.constant 0 : index
    %c0_121 = arith.constant 0 : index
    %284 = vector.load %arg5[%c0_120, %c0_121] : memref<16x128xf32, #tpu.memory_space<vmem>>, vector<16x128xf32>
    tpu.vector_store %arg5[%c0_120, %c0_121], %283 {strides = array<i32>} : memref<16x128xf32, #tpu.memory_space<vmem>>, vector<16x128xf32>,
    return
  }
  func.func @transform_0(%arg0: i32) -> (i32, i32) {
    %c0_i32 = arith.constant 0 : i32
    %c0_i32_0 = arith.constant 0 : i32
    return %arg0, %c0_i32 : i32, i32
  }
  func.func @transform_1(%arg0: i32) -> (i32, i32) {
    %c0_i32 = arith.constant 0 : i32
    %c0_i32_0 = arith.constant 0 : i32
    %c0_i32_1 = arith.constant 0 : i32
    return %c0_i32, %c0_i32_0 : i32, i32
  }
  func.func @transform_2(%arg0: i32) -> (i32, i32, i32) {
    %c0_i32 = arith.constant 0 : i32
    %c0_i32_0 = arith.constant 0 : i32
    %c0_i32_1 = arith.constant 0 : i32
    %c0_i32_2 = arith.constant 0 : i32
    return %c0_i32, %c0_i32_0, %c0_i32_1 : i32, i32, i32
  }
  func.func @transform_3(%arg0: i32) -> (i32, i32) {
    %c0_i32 = arith.constant 0 : i32
    %c0_i32_0 = arith.constant 0 : i32
    %c0_i32_1 = arith.constant 0 : i32
    return %c0_i32, %c0_i32_0 : i32, i32
  }
  func.func @transform_4(%arg0: i32) -> (i32, i32) {
    %c0_i32 = arith.constant 0 : i32
    %c0_i32_0 = arith.constant 0 : i32
    return %arg0, %c0_i32 : i32, i32
  }
}

</mosaic_0001>

<llo_original>
// kernel: _forward_jit.1
$region0: #{_forward_jit.1}
  #allocation0 [shape = 'u32[]', space=smem, size = 0x4, offset = 0x4, fixed_abs, tag = 'smem constant byte address 0x4 - core index']
  #allocation1 [shape = 'u32[72,128]{1,0:T(1,128)}', space=vmem, size = 0x9000, scoped, tag = 'internal scratch']
  %s0 = inlined_call_operand.vmem [shape: bf16[16,128], index: 0, kind: input, shape index: {}]
  %s1 = inlined_call_operand.vmem [shape: f32[16,16], index: 1, kind: input, shape index: {}]
  %s2 = inlined_call_operand.hbm [shape: bf16[14,256,256], index: 2, kind: input, shape index: {}]
  %s3 = inlined_call_operand.hbm [shape: f32[24,256], index: 3, kind: input, shape index: {}]
  %s4 = inlined_call_operand.hbm [shape: f32[16,128], index: 4, kind: output, shape index: {}]
  %s5 = sld [smem:[#allocation0]]
  $region34: #{_forward_jit.1} parent=0
    _
  %s7 = ssub.s32 1, %s5
  %s8 = scalar_select 0, %s7, %s5
  $region1: #{_forward_jit.1} parent=0
    #allocation2 [shape = 'u8[1835008]{0}', space=vmem, size = 0x1c0000, scoped, tag = 'input window, operand 2, single buffered']
    #allocation3 [shape = 's32[1]{0}', space=sflag, size = 0x4, scoped, tag = 'scoped memory for _forward_jit.1']
    #allocation4 [shape = 's32[1]{0}', space=sflag, size = 0x4, scoped, tag = 'scoped memory for _forward_jit.1']
    #allocation5 [shape = 'u8[24576]{0}', space=vmem, size = 0x6000, scoped, tag = 'input window, operand 3, single buffered']
    #allocation6 [shape = 's32[1]{0}', space=sflag, size = 0x4, scoped, tag = 'scoped memory for _forward_jit.1']
    #allocation7 [shape = 'u8[8192]{0}', space=vmem, size = 0x2000, scoped, tag = 'output window, operand 0, single buffered']
    %9 = vsyncpa [#allocation3], 0
    %10 = vsyncpa [#allocation6], 0
    %11 = vsyncpa [#allocation4], 0
    // Predicated region
    $region2: #{_forward_jit.1} parent=1 // pred_check
      _
    $region3: #{_forward_jit.1} parent=1 // pred_check_branch
      %13 = sbr.rel (0) target = $region5
    $region4: #{_forward_jit.1} parent=1 // pred_region
      _
    $region5: #{_forward_jit.1} parent=1 // pred_fallthru
      _
    // Predicated region
    $region6: #{_forward_jit.1} parent=1 // pred_check
      _
    $region7: #{_forward_jit.1} parent=1 // pred_check_branch
      %15 = sbr.rel (0) target = $region9
    $region8: #{_forward_jit.1} parent=1 // pred_region
      _
    $region9: #{_forward_jit.1} parent=1 // pred_fallthru
      _
    // Predicated region
    $region10: #{_forward_jit.1} parent=1 // pred_check
      _
    $region11: #{_forward_jit.1} parent=1 // pred_check_branch
      %17 = sbr.rel (0) target = $region13
    $region12: #{_forward_jit.1} parent=1 // pred_region
      %19 = vsyncadd [#allocation3], 0
      %s20 = sshll.u32 %s2, 4
      %s21 = int_to_ptr.hbm [resolvable:$true] %s20
      %s22 = sshll.u32 [#allocation2], 4
      %s23 = int_to_ptr.vmem [resolvable:$true] %s22
      %28 = dma.hbm_to_vmem [thread:$0]  %s21, 57344, %s23, [#allocation3], 128, 128, 8
    $region13: #{_forward_jit.1} parent=1 // pred_fallthru
      _
    // Predicated region
    $region14: #{_forward_jit.1} parent=1 // pred_check
      _
    $region15: #{_forward_jit.1} parent=1 // pred_check_branch
      %30 = sbr.rel (0) target = $region17
    $region16: #{_forward_jit.1} parent=1 // pred_region
      %32 = vsyncadd [#allocation6], 0
      %s33 = sshll.u32 %s3, 4
      %s34 = int_to_ptr.hbm [resolvable:$true] %s33
      %s35 = sshll.u32 [#allocation5], 4
      %s36 = int_to_ptr.vmem [resolvable:$true] %s35
      %41 = dma.hbm_to_vmem [thread:$0]  %s34, 768, %s36, [#allocation6], 256, 256, 16
    $region17: #{_forward_jit.1} parent=1 // pred_fallthru
      _
    // Predicated region
    $region18: #{_forward_jit.1} parent=1 // pred_check
      _
    $region19: #{_forward_jit.1} parent=1 // pred_check_branch
      %43 = sbr.rel (0) target = $region21
    $region20: #{_forward_jit.1} parent=1 // pred_region
      %45 = dma.done [#allocation3], 57344
    $region21: #{_forward_jit.1} parent=1 // pred_fallthru
      _
    // Predicated region
    $region22: #{_forward_jit.1} parent=1 // pred_check
      _
    $region23: #{_forward_jit.1} parent=1 // pred_check_branch
      %47 = sbr.rel (0) target = $region25
    $region24: #{_forward_jit.1} parent=1 // pred_region
      %49 = dma.done [#allocation6], 768
    $region25: #{_forward_jit.1} parent=1 // pred_fallthru
      _
    %v51 = vld [vmem:[%s0] sm:$0xf]
    %v52 = vld [vmem:[%s0 + $0x4] sm:$0xf]
    %v53 = vld [vmem:[%s1] sm:$0xff]
    %v54 = vld [vmem:[%s1 + $0x8] sm:$0xff]
    %v55 = vld [vmem:[#allocation2] sm:$0xff]
    %v56 = vld [vmem:[#allocation2 + $0x8] sm:$0xff]
    %v57 = vld [vmem:[#allocation2 + $0x10] sm:$0xff]
    %v58 = vld [vmem:[#allocation2 + $0x18] sm:$0xff]
    %v59 = vld [vmem:[#allocation2 + $0x20] sm:$0xff]
    %v60 = vld [vmem:[#allocation2 + $0x28] sm:$0xff]
    %v61 = vld [vmem:[#allocation2 + $0x30] sm:$0xff]
    %v62 = vld [vmem:[#allocation2 + $0x38] sm:$0xff]
    %v63 = vld [vmem:[#allocation2 + $0x40] sm:$0xff]
    %v64 = vld [vmem:[#allocation2 + $0x48] sm:$0xff]
    %v65 = vld [vmem:[#allocation2 + $0x50] sm:$0xff]
    %v66 = vld [vmem:[#allocation2 + $0x58] sm:$0xff]
    %v67 = vld [vmem:[#allocation2 + $0x60] sm:$0xff]
    %v68 = vld [vmem:[#allocation2 + $0x68] sm:$0xff]
    %v69 = vld [vmem:[#allocation2 + $0x70] sm:$0xff]
    %v70 = vld [vmem:[#allocation2 + $0x78] sm:$0xff]
    %v73 = vunpack.c.l.b16 %v51
    %v74 = vunpack.c.l.b16 %v52
    %v75 = vpack.c.b16 %v74, %v73
    %v93 = vunpack.c.l.b16 %v55
    %v94 = vunpack.c.h.b16 %v55
    %v95 = vunpack.c.l.b16 %v56
    %v96 = vunpack.c.h.b16 %v56
    %v97 = vunpack.c.l.b16 %v57
    %v98 = vunpack.c.h.b16 %v57
    %v99 = vunpack.c.l.b16 %v58
    %v100 = vunpack.c.h.b16 %v58
    %v101 = vunpack.c.l.b16 %v59
    %v102 = vunpack.c.h.b16 %v59
    %v103 = vunpack.c.l.b16 %v60
    %v104 = vunpack.c.h.b16 %v60
    %v105 = vunpack.c.l.b16 %v61
    %v106 = vunpack.c.h.b16 %v61
    %v107 = vunpack.c.l.b16 %v62
    %v108 = vunpack.c.h.b16 %v62
    %v109 = vunpack.c.l.b16 %v63
    %v110 = vunpack.c.h.b16 %v63
    %v111 = vunpack.c.l.b16 %v64
    %v112 = vunpack.c.h.b16 %v64
    %v113 = vunpack.c.l.b16 %v65
    %v114 = vunpack.c.h.b16 %v65
    %v115 = vunpack.c.l.b16 %v66
    %v116 = vunpack.c.h.b16 %v66
    %v117 = vunpack.c.l.b16 %v67
    %v118 = vunpack.c.h.b16 %v67
    %v119 = vunpack.c.l.b16 %v68
    %v120 = vunpack.c.h.b16 %v68
    %v121 = vunpack.c.l.b16 %v69
    %v122 = vunpack.c.h.b16 %v69
    %v123 = vunpack.c.l.b16 %v70
    %v124 = vunpack.c.h.b16 %v70
    %v125 = vpack.c.b16 %v95, %v93
    %v126 = vpack.c.b16 %v96, %v94
    %v127 = vpack.c.b16 %v99, %v97
    %v128 = vpack.c.b16 %v100, %v98
    %v129 = vpack.c.b16 %v103, %v101
    %v130 = vpack.c.b16 %v104, %v102
    %v131 = vpack.c.b16 %v107, %v105
    %v132 = vpack.c.b16 %v108, %v106
    %v133 = vpack.c.b16 %v111, %v109
    %v134 = vpack.c.b16 %v112, %v110
    %v135 = vpack.c.b16 %v115, %v113
    %v136 = vpack.c.b16 %v116, %v114
    %v137 = vpack.c.b16 %v119, %v117
    %v138 = vpack.c.b16 %v120, %v118
    %v139 = vpack.c.b16 %v123, %v121
    %v140 = vpack.c.b16 %v124, %v122
    %157 = vmatpush.bf16.msra.mxu0 %v139
    %158 = vmatpush.bf16.msra.mxu0 %v137
    %159 = vmatpush.bf16.msra.mxu0 %v135
    %160 = vmatpush.bf16.msra.mxu0 %v133
    %161 = vmatpush.bf16.msra.mxu0 %v131
    %162 = vmatpush.bf16.msra.mxu0 %v129
    %163 = vmatpush.bf16.msra.mxu0 %v127
    %164 = vmatpush.bf16.msra.mxu0 %v125
    %165 = vmatmul.bf16.gmra.mxu0 %v75
    %v166 = vpop.f32.mrf.mxu0
    %v167 = vadd.f32 0.0, %v166
    %v168 = vpop.f32.mrf.mxu0
    %v169 = vadd.f32 0.0, %v168
    %170 = vdwg.mxu0
    %171 = vmatpush.bf16.msra.mxu0 %v140
    %172 = vmatpush.bf16.msra.mxu0 %v138
    %173 = vmatpush.bf16.msra.mxu0 %v136
    %174 = vmatpush.bf16.msra.mxu0 %v134
    %175 = vmatpush.bf16.msra.mxu0 %v132
    %176 = vmatpush.bf16.msra.mxu0 %v130
    %177 = vmatpush.bf16.msra.mxu0 %v128
    %178 = vmatpush.bf16.msra.mxu0 %v126
    %179 = vmatmul.bf16.gmra.mxu0 %v75
    %v180 = vpop.f32.mrf.mxu0
    %v181 = vadd.f32 0.0, %v180
    %v182 = vpop.f32.mrf.mxu0
    %v183 = vadd.f32 0.0, %v182
    %184 = vdwg.mxu0
    %v185 = vpack.c.bf16 %v169, %v167
    %v186 = vpack.c.bf16 %v183, %v181
    %s187 = scalar_lea.vmem [#allocation2], 256
    %v188 = vld [vmem:[%s187] sm:$0xff]
    %v189 = vld [vmem:[%s187 + $0x8] sm:$0xff]
    %v190 = vld [vmem:[%s187 + $0x10] sm:$0xff]
    %v191 = vld [vmem:[%s187 + $0x18] sm:$0xff]
    %v192 = vld [vmem:[%s187 + $0x20] sm:$0xff]
    %v193 = vld [vmem:[%s187 + $0x28] sm:$0xff]
    %v194 = vld [vmem:[%s187 + $0x30] sm:$0xff]
    %v195 = vld [vmem:[%s187 + $0x38] sm:$0xff]
    %v196 = vld [vmem:[%s187 + $0x40] sm:$0xff]
    %v197 = vld [vmem:[%s187 + $0x48] sm:$0xff]
    %v198 = vld [vmem:[%s187 + $0x50] sm:$0xff]
    %v199 = vld [vmem:[%s187 + $0x58] sm:$0xff]
    %v200 = vld [vmem:[%s187 + $0x60] sm:$0xff]
    %v201 = vld [vmem:[%s187 + $0x68] sm:$0xff]
    %v202 = vld [vmem:[%s187 + $0x70] sm:$0xff]
    %v203 = vld [vmem:[%s187 + $0x78] sm:$0xff]
    %v204 = vld [vmem:[%s187 + $0x80] sm:$0xff]
    %v205 = vld [vmem:[%s187 + $0x88] sm:$0xff]
    %v206 = vld [vmem:[%s187 + $0x90] sm:$0xff]
    %v207 = vld [vmem:[%s187 + $0x98] sm:$0xff]
    %v208 = vld [vmem:[%s187 + $0xa0] sm:$0xff]
    %v209 = vld [vmem:[%s187 + $0xa8] sm:$0xff]
    %v210 = vld [vmem:[%s187 + $0xb0] sm:$0xff]
    %v211 = vld [vmem:[%s187 + $0xb8] sm:$0xff]
    %v212 = vld [vmem:[%s187 + $0xc0] sm:$0xff]
    %v213 = vld [vmem:[%s187 + $0xc8] sm:$0xff]
    %v214 = vld [vmem:[%s187 + $0xd0] sm:$0xff]
    %v215 = vld [vmem:[%s187 + $0xd8] sm:$0xff]
    %v216 = vld [vmem:[%s187 + $0xe0] sm:$0xff]
    %v217 = vld [vmem:[%s187 + $0xe8] sm:$0xff]
    %v218 = vld [vmem:[%s187 + $0xf0] sm:$0xff]
    %v219 = vld [vmem:[%s187 + $0xf8] sm:$0xff]
    %v220 = vld [vmem:[#allocation5] ss:$8 sm:$0x3]
    %v222 = vperm.slane %v220, 0
    %v223 = vperm.slane %v220, 1
    %v258 = vunpack.c.l.b16 %v188
    %v259 = vunpack.c.h.b16 %v188
    %v260 = vunpack.c.l.b16 %v189
    %v261 = vunpack.c.h.b16 %v189
    %v262 = vunpack.c.l.b16 %v190
    %v263 = vunpack.c.h.b16 %v190
    %v264 = vunpack.c.l.b16 %v191
    %v265 = vunpack.c.h.b16 %v191
    %v266 = vunpack.c.l.b16 %v192
    %v267 = vunpack.c.h.b16 %v192
    %v268 = vunpack.c.l.b16 %v193
    %v269 = vunpack.c.h.b16 %v193
    %v270 = vunpack.c.l.b16 %v194
    %v271 = vunpack.c.h.b16 %v194
    %v272 = vunpack.c.l.b16 %v195
    %v273 = vunpack.c.h.b16 %v195
    %v274 = vunpack.c.l.b16 %v196
    %v275 = vunpack.c.h.b16 %v196
    %v276 = vunpack.c.l.b16 %v197
    %v277 = vunpack.c.h.b16 %v197
    %v278 = vunpack.c.l.b16 %v198
    %v279 = vunpack.c.h.b16 %v198
    %v280 = vunpack.c.l.b16 %v199
    %v281 = vunpack.c.h.b16 %v199
    %v282 = vunpack.c.l.b16 %v200
    %v283 = vunpack.c.h.b16 %v200
    %v284 = vunpack.c.l.b16 %v201
    %v285 = vunpack.c.h.b16 %v201
    %v286 = vunpack.c.l.b16 %v202
    %v287 = vunpack.c.h.b16 %v202
    %v288 = vunpack.c.l.b16 %v203
    %v289 = vunpack.c.h.b16 %v203
    %v290 = vunpack.c.l.b16 %v204
    %v291 = vunpack.c.h.b16 %v204
    %v292 = vunpack.c.l.b16 %v205
    %v293 = vunpack.c.h.b16 %v205
    %v294 = vunpack.c.l.b16 %v206
    %v295 = vunpack.c.h.b16 %v206
    %v296 = vunpack.c.l.b16 %v207
    %v297 = vunpack.c.h.b16 %v207
    %v298 = vunpack.c.l.b16 %v208
    %v299 = vunpack.c.h.b16 %v208
    %v300 = vunpack.c.l.b16 %v209
    %v301 = vunpack.c.h.b16 %v209
    %v302 = vunpack.c.l.b16 %v210
    %v303 = vunpack.c.h.b16 %v210
    %v304 = vunpack.c.l.b16 %v211
    %v305 = vunpack.c.h.b16 %v211
    %v306 = vunpack.c.l.b16 %v212
    %v307 = vunpack.c.h.b16 %v212
    %v308 = vunpack.c.l.b16 %v213
    %v309 = vunpack.c.h.b16 %v213
    %v310 = vunpack.c.l.b16 %v214
    %v311 = vunpack.c.h.b16 %v214
    %v312 = vunpack.c.l.b16 %v215
    %v313 = vunpack.c.h.b16 %v215
    %v314 = vunpack.c.l.b16 %v216
    %v315 = vunpack.c.h.b16 %v216
    %v316 = vunpack.c.l.b16 %v217
    %v317 = vunpack.c.h.b16 %v217
    %v318 = vunpack.c.l.b16 %v218
    %v319 = vunpack.c.h.b16 %v218
    %v320 = vunpack.c.l.b16 %v219
    %v321 = vunpack.c.h.b16 %v219
    %v322 = vpack.c.b16 %v260, %v258
    %v323 = vpack.c.b16 %v261, %v259
    %v324 = vpack.c.b16 %v264, %v262
    %v325 = vpack.c.b16 %v265, %v263
    %v326 = vpack.c.b16 %v268, %v266
    %v327 = vpack.c.b16 %v269, %v267
    %v328 = vpack.c.b16 %v272, %v270
    %v329 = vpack.c.b16 %v273, %v271
    %v330 = vpack.c.b16 %v276, %v274
    %v331 = vpack.c.b16 %v277, %v275
    %v332 = vpack.c.b16 %v280, %v278
    %v333 = vpack.c.b16 %v281, %v279
    %v334 = vpack.c.b16 %v284, %v282
    %v335 = vpack.c.b16 %v285, %v283
    %v336 = vpack.c.b16 %v288, %v286
    %v337 = vpack.c.b16 %v289, %v287
    %v338 = vpack.c.b16 %v292, %v290
    %v339 = vpack.c.b16 %v293, %v291
    %v340 = vpack.c.b16 %v296, %v294
    %v341 = vpack.c.b16 %v297, %v295
    %v342 = vpack.c.b16 %v300, %v298
    %v343 = vpack.c.b16 %v301, %v299
    %v344 = vpack.c.b16 %v304, %v302
    %v345 = vpack.c.b16 %v305, %v303
    %v346 = vpack.c.b16 %v308, %v306
    %v347 = vpack.c.b16 %v309, %v307
    %v348 = vpack.c.b16 %v312, %v310
    %v349 = vpack.c.b16 %v313, %v311
    %v350 = vpack.c.b16 %v316, %v314
    %v351 = vpack.c.b16 %v317, %v315
    %v352 = vpack.c.b16 %v320, %v318
    %v353 = vpack.c.b16 %v321, %v319
    %386 = vmatpush.bf16.msra.mxu0 %v336
    %387 = vmatpush.bf16.msra.mxu0 %v334
    %388 = vmatpush.bf16.msra.mxu0 %v332
    %389 = vmatpush.bf16.msra.mxu0 %v330
    %390 = vmatpush.bf16.msra.mxu0 %v328
    %391 = vmatpush.bf16.msra.mxu0 %v326
    %392 = vmatpush.bf16.msra.mxu0 %v324
    %393 = vmatpush.bf16.msra.mxu0 %v322
    %394 = vmatmul.bf16.gmra.mxu0 %v185
    %v395 = vpop.f32.mrf.mxu0
    %v396 = vadd.f32 %v222, %v395
    %v397 = vpop.f32.mrf.mxu0
    %v398 = vadd.f32 %v222, %v397
    %399 = vdwg.mxu0
    %400 = vmatpush.bf16.msra.mxu0 %v352
    %401 = vmatpush.bf16.msra.mxu0 %v350
    %402 = vmatpush.bf16.msra.mxu0 %v348
    %403 = vmatpush.bf16.msra.mxu0 %v346
    %404 = vmatpush.bf16.msra.mxu0 %v344
    %405 = vmatpush.bf16.msra.mxu0 %v342
    %406 = vmatpush.bf16.msra.mxu0 %v340
    %407 = vmatpush.bf16.msra.mxu0 %v338
    %408 = vmatmul.bf16.gmra.mxu0 %v186
    %v409 = vpop.f32.mrf.mxu0
    %v410 = vadd.f32 %v396, %v409
    %v411 = vpop.f32.mrf.mxu0
    %v412 = vadd.f32 %v398, %v411
    %413 = vdwg.mxu0
    %414 = vmatpush.bf16.msra.mxu0 %v337
    %415 = vmatpush.bf16.msra.mxu0 %v335
    %416 = vmatpush.bf16.msra.mxu0 %v333
    %417 = vmatpush.bf16.msra.mxu0 %v331
    %418 = vmatpush.bf16.msra.mxu0 %v329
    %419 = vmatpush.bf16.msra.mxu0 %v327
    %420 = vmatpush.bf16.msra.mxu0 %v325
    %421 = vmatpush.bf16.msra.mxu0 %v323
    %422 = vmatmul.bf16.gmra.mxu0 %v185
    %v423 = vpop.f32.mrf.mxu0
    %v424 = vadd.f32 %v223, %v423
    %v425 = vpop.f32.mrf.mxu0
    %v426 = vadd.f32 %v223, %v425
    %427 = vdwg.mxu0
    %428 = vmatpush.bf16.msra.mxu0 %v353
    %429 = vmatpush.bf16.msra.mxu0 %v351
    %430 = vmatpush.bf16.msra.mxu0 %v349
    %431 = vmatpush.bf16.msra.mxu0 %v347
    %432 = vmatpush.bf16.msra.mxu0 %v345
    %433 = vmatpush.bf16.msra.mxu0 %v343
    %434 = vmatpush.bf16.msra.mxu0 %v341
    %435 = vmatpush.bf16.msra.mxu0 %v339
    %436 = vmatmul.bf16.gmra.mxu0 %v186
    %v437 = vpop.f32.mrf.mxu0
    %v438 = vadd.f32 %v424, %v437
    %v439 = vpop.f32.mrf.mxu0
    %v440 = vadd.f32 %v426, %v439
    %441 = vdwg.mxu0
    %v442 = vpack.c.bf16 %v438, %v410
    %v443 = vpack.c.bf16 %v440, %v412
    %s444 = scalar_lea.vmem [#allocation2], 512
    %v445 = vld [vmem:[%s444] sm:$0xff]
    %v446 = vld [vmem:[%s444 + $0x8] sm:$0xff]
    %v447 = vld [vmem:[%s444 + $0x10] sm:$0xff]
    %v448 = vld [vmem:[%s444 + $0x18] sm:$0xff]
    %v449 = vld [vmem:[%s444 + $0x20] sm:$0xff]
    %v450 = vld [vmem:[%s444 + $0x28] sm:$0xff]
    %v451 = vld [vmem:[%s444 + $0x30] sm:$0xff]
    %v452 = vld [vmem:[%s444 + $0x38] sm:$0xff]
    %v453 = vld [vmem:[%s444 + $0x40] sm:$0xff]
    %v454 = vld [vmem:[%s444 + $0x48] sm:$0xff]
    %v455 = vld [vmem:[%s444 + $0x50] sm:$0xff]
    %v456 = vld [vmem:[%s444 + $0x58] sm:$0xff]
    %v457 = vld [vmem:[%s444 + $0x60] sm:$0xff]
    %v458 = vld [vmem:[%s444 + $0x68] sm:$0xff]
    %v459 = vld [vmem:[%s444 + $0x70] sm:$0xff]
    %v460 = vld [vmem:[%s444 + $0x78] sm:$0xff]
    %v461 = vld [vmem:[%s444 + $0x80] sm:$0xff]
    %v462 = vld [vmem:[%s444 + $0x88] sm:$0xff]
    %v463 = vld [vmem:[%s444 + $0x90] sm:$0xff]
    %v464 = vld [vmem:[%s444 + $0x98] sm:$0xff]
    %v465 = vld [vmem:[%s444 + $0xa0] sm:$0xff]
    %v466 = vld [vmem:[%s444 + $0xa8] sm:$0xff]
    %v467 = vld [vmem:[%s444 + $0xb0] sm:$0xff]
    %v468 = vld [vmem:[%s444 + $0xb8] sm:$0xff]
    %v469 = vld [vmem:[%s444 + $0xc0] sm:$0xff]
    %v470 = vld [vmem:[%s444 + $0xc8] sm:$0xff]
    %v471 = vld [vmem:[%s444 + $0xd0] sm:$0xff]
    %v472 = vld [vmem:[%s444 + $0xd8] sm:$0xff]
    %v473 = vld [vmem:[%s444 + $0xe0] sm:$0xff]
    %v474 = vld [vmem:[%s444 + $0xe8] sm:$0xff]
    %v475 = vld [vmem:[%s444 + $0xf0] sm:$0xff]
    %v476 = vld [vmem:[%s444 + $0xf8] sm:$0xff]
    %s477 = scalar_lea.vmem [#allocation5], 1
    %v478 = vld [vmem:[%s477] ss:$8 sm:$0x3]
    %v480 = vperm.slane %v478, 0
    %v481 = vperm.slane %v478, 1
    %v516 = vunpack.c.l.b16 %v445
    %v517 = vunpack.c.h.b16 %v445
    %v518 = vunpack.c.l.b16 %v446
    %v519 = vunpack.c.h.b16 %v446
    %v520 = vunpack.c.l.b16 %v447
    %v521 = vunpack.c.h.b16 %v447
    %v522 = vunpack.c.l.b16 %v448
    %v523 = vunpack.c.h.b16 %v448
    %v524 = vunpack.c.l.b16 %v449
    %v525 = vunpack.c.h.b16 %v449
    %v526 = vunpack.c.l.b16 %v450
    %v527 = vunpack.c.h.b16 %v450
    %v528 = vunpack.c.l.b16 %v451
    %v529 = vunpack.c.h.b16 %v451
    %v530 = vunpack.c.l.b16 %v452
    %v531 = vunpack.c.h.b16 %v452
    %v532 = vunpack.c.l.b16 %v453
    %v533 = vunpack.c.h.b16 %v453
    %v534 = vunpack.c.l.b16 %v454
    %v535 = vunpack.c.h.b16 %v454
    %v536 = vunpack.c.l.b16 %v455
    %v537 = vunpack.c.h.b16 %v455
    %v538 = vunpack.c.l.b16 %v456
    %v539 = vunpack.c.h.b16 %v456
    %v540 = vunpack.c.l.b16 %v457
    %v541 = vunpack.c.h.b16 %v457
    %v542 = vunpack.c.l.b16 %v458
    %v543 = vunpack.c.h.b16 %v458
    %v544 = vunpack.c.l.b16 %v459
    %v545 = vunpack.c.h.b16 %v459
    %v546 = vunpack.c.l.b16 %v460
    %v547 = vunpack.c.h.b16 %v460
    %v548 = vunpack.c.l.b16 %v461
    %v549 = vunpack.c.h.b16 %v461
    %v550 = vunpack.c.l.b16 %v462
    %v551 = vunpack.c.h.b16 %v462
    %v552 = vunpack.c.l.b16 %v463
    %v553 = vunpack.c.h.b16 %v463
    %v554 = vunpack.c.l.b16 %v464
    %v555 = vunpack.c.h.b16 %v464
    %v556 = vunpack.c.l.b16 %v465
    %v557 = vunpack.c.h.b16 %v465
    %v558 = vunpack.c.l.b16 %v466
    %v559 = vunpack.c.h.b16 %v466
    %v560 = vunpack.c.l.b16 %v467
    %v561 = vunpack.c.h.b16 %v467
    %v562 = vunpack.c.l.b16 %v468
    %v563 = vunpack.c.h.b16 %v468
    %v564 = vunpack.c.l.b16 %v469
    %v565 = vunpack.c.h.b16 %v469
    %v566 = vunpack.c.l.b16 %v470
    %v567 = vunpack.c.h.b16 %v470
    %v568 = vunpack.c.l.b16 %v471
    %v569 = vunpack.c.h.b16 %v471
    %v570 = vunpack.c.l.b16 %v472
    %v571 = vunpack.c.h.b16 %v472
    %v572 = vunpack.c.l.b16 %v473
    %v573 = vunpack.c.h.b16 %v473
    %v574 = vunpack.c.l.b16 %v474
    %v575 = vunpack.c.h.b16 %v474
    %v576 = vunpack.c.l.b16 %v475
    %v577 = vunpack.c.h.b16 %v475
    %v578 = vunpack.c.l.b16 %v476
    %v579 = vunpack.c.h.b16 %v476
    %v580 = vpack.c.b16 %v518, %v516
    %v581 = vpack.c.b16 %v519, %v517
    %v582 = vpack.c.b16 %v522, %v520
    %v583 = vpack.c.b16 %v523, %v521
    %v584 = vpack.c.b16 %v526, %v524
    %v585 = vpack.c.b16 %v527, %v525
    %v586 = vpack.c.b16 %v530, %v528
    %v587 = vpack.c.b16 %v531, %v529
    %v588 = vpack.c.b16 %v534, %v532
    %v589 = vpack.c.b16 %v535, %v533
    %v590 = vpack.c.b16 %v538, %v536
    %v591 = vpack.c.b16 %v539, %v537
    %v592 = vpack.c.b16 %v542, %v540
    %v593 = vpack.c.b16 %v543, %v541
    %v594 = vpack.c.b16 %v546, %v544
    %v595 = vpack.c.b16 %v547, %v545
    %v596 = vpack.c.b16 %v550, %v548
    %v597 = vpack.c.b16 %v551, %v549
    %v598 = vpack.c.b16 %v554, %v552
    %v599 = vpack.c.b16 %v555, %v553
    %v600 = vpack.c.b16 %v558, %v556
    %v601 = vpack.c.b16 %v559, %v557
    %v602 = vpack.c.b16 %v562, %v560
    %v603 = vpack.c.b16 %v563, %v561
    %v604 = vpack.c.b16 %v566, %v564
    %v605 = vpack.c.b16 %v567, %v565
    %v606 = vpack.c.b16 %v570, %v568
    %v607 = vpack.c.b16 %v571, %v569
    %v608 = vpack.c.b16 %v574, %v572
    %v609 = vpack.c.b16 %v575, %v573
    %v610 = vpack.c.b16 %v578, %v576
    %v611 = vpack.c.b16 %v579, %v577
    %644 = vmatpush.bf16.msra.mxu0 %v594
    %645 = vmatpush.bf16.msra.mxu0 %v592
    %646 = vmatpush.bf16.msra.mxu0 %v590
    %647 = vmatpush.bf16.msra.mxu0 %v588
    %648 = vmatpush.bf16.msra.mxu0 %v586
    %649 = vmatpush.bf16.msra.mxu0 %v584
    %650 = vmatpush.bf16.msra.mxu0 %v582
    %651 = vmatpush.bf16.msra.mxu0 %v580
    %652 = vmatmul.bf16.gmra.mxu0 %v185
    %v653 = vpop.f32.mrf.mxu0
    %v654 = vadd.f32 %v480, %v653
    %v655 = vpop.f32.mrf.mxu0
    %v656 = vadd.f32 %v480, %v655
    %657 = vdwg.mxu0
    %658 = vmatpush.bf16.msra.mxu0 %v610
    %659 = vmatpush.bf16.msra.mxu0 %v608
    %660 = vmatpush.bf16.msra.mxu0 %v606
    %661 = vmatpush.bf16.msra.mxu0 %v604
    %662 = vmatpush.bf16.msra.mxu0 %v602
    %663 = vmatpush.bf16.msra.mxu0 %v600
    %664 = vmatpush.bf16.msra.mxu0 %v598
    %665 = vmatpush.bf16.msra.mxu0 %v596
    %666 = vmatmul.bf16.gmra.mxu0 %v186
    %v667 = vpop.f32.mrf.mxu0
    %v668 = vadd.f32 %v654, %v667
    %v669 = vpop.f32.mrf.mxu0
    %v670 = vadd.f32 %v656, %v669
    %671 = vdwg.mxu0
    %672 = vmatpush.bf16.msra.mxu0 %v595
    %673 = vmatpush.bf16.msra.mxu0 %v593
    %674 = vmatpush.bf16.msra.mxu0 %v591
    %675 = vmatpush.bf16.msra.mxu0 %v589
    %676 = vmatpush.bf16.msra.mxu0 %v587
    %677 = vmatpush.bf16.msra.mxu0 %v585
    %678 = vmatpush.bf16.msra.mxu0 %v583
    %679 = vmatpush.bf16.msra.mxu0 %v581
    %680 = vmatmul.bf16.gmra.mxu0 %v185
    %v681 = vpop.f32.mrf.mxu0
    %v682 = vadd.f32 %v481, %v681
    %v683 = vpop.f32.mrf.mxu0
    %v684 = vadd.f32 %v481, %v683
    %685 = vdwg.mxu0
    %686 = vmatpush.bf16.msra.mxu0 %v611
    %687 = vmatpush.bf16.msra.mxu0 %v609
    %688 = vmatpush.bf16.msra.mxu0 %v607
    %689 = vmatpush.bf16.msra.mxu0 %v605
    %690 = vmatpush.bf16.msra.mxu0 %v603
    %691 = vmatpush.bf16.msra.mxu0 %v601
    %692 = vmatpush.bf16.msra.mxu0 %v599
    %693 = vmatpush.bf16.msra.mxu0 %v597
    %694 = vmatmul.bf16.gmra.mxu0 %v186
    %v695 = vpop.f32.mrf.mxu0
    %v696 = vadd.f32 %v682, %v695
    %v697 = vpop.f32.mrf.mxu0
    %v698 = vadd.f32 %v684, %v697
    %699 = vdwg.mxu0
    %v700 = vpack.c.bf16 %v696, %v668
    %v701 = vpack.c.bf16 %v698, %v670
    %s702 = scalar_lea.vmem [#allocation2], 768
    %v703 = vld [vmem:[%s702] sm:$0xff]
    %v704 = vld [vmem:[%s702 + $0x8] sm:$0xff]
    %v705 = vld [vmem:[%s702 + $0x10] sm:$0xff]
    %v706 = vld [vmem:[%s702 + $0x18] sm:$0xff]
    %v707 = vld [vmem:[%s702 + $0x20] sm:$0xff]
    %v708 = vld [vmem:[%s702 + $0x28] sm:$0xff]
    %v709 = vld [vmem:[%s702 + $0x30] sm:$0xff]
    %v710 = vld [vmem:[%s702 + $0x38] sm:$0xff]
    %v711 = vld [vmem:[%s702 + $0x40] sm:$0xff]
    %v712 = vld [vmem:[%s702 + $0x48] sm:$0xff]
    %v713 = vld [vmem:[%s702 + $0x50] sm:$0xff]
    %v714 = vld [vmem:[%s702 + $0x58] sm:$0xff]
    %v715 = vld [vmem:[%s702 + $0x60] sm:$0xff]
    %v716 = vld [vmem:[%s702 + $0x68] sm:$0xff]
    %v717 = vld [vmem:[%s702 + $0x70] sm:$0xff]
    %v718 = vld [vmem:[%s702 + $0x78] sm:$0xff]
    %v719 = vld [vmem:[%s702 + $0x80] sm:$0xff]
    %v720 = vld [vmem:[%s702 + $0x88] sm:$0xff]
    %v721 = vld [vmem:[%s702 + $0x90] sm:$0xff]
    %v722 = vld [vmem:[%s702 + $0x98] sm:$0xff]
    %v723 = vld [vmem:[%s702 + $0xa0] sm:$0xff]
    %v724 = vld [vmem:[%s702 + $0xa8] sm:$0xff]
    %v725 = vld [vmem:[%s702 + $0xb0] sm:$0xff]
    %v726 = vld [vmem:[%s702 + $0xb8] sm:$0xff]
    %v727 = vld [vmem:[%s702 + $0xc0] sm:$0xff]
    %v728 = vld [vmem:[%s702 + $0xc8] sm:$0xff]
    %v729 = vld [vmem:[%s702 + $0xd0] sm:$0xff]
    %v730 = vld [vmem:[%s702 + $0xd8] sm:$0xff]
    %v731 = vld [vmem:[%s702 + $0xe0] sm:$0xff]
    %v732 = vld [vmem:[%s702 + $0xe8] sm:$0xff]
    %v733 = vld [vmem:[%s702 + $0xf0] sm:$0xff]
    %v734 = vld [vmem:[%s702 + $0xf8] sm:$0xff]
    %s735 = scalar_lea.vmem [#allocation5], 2
    %v736 = vld [vmem:[%s735] ss:$8 sm:$0x3]
    %v738 = vperm.slane %v736, 0
    %v739 = vperm.slane %v736, 1
    %v774 = vunpack.c.l.b16 %v703
    %v775 = vunpack.c.h.b16 %v703
    %v776 = vunpack.c.l.b16 %v704
    %v777 = vunpack.c.h.b16 %v704
    %v778 = vunpack.c.l.b16 %v705
    %v779 = vunpack.c.h.b16 %v705
    %v780 = vunpack.c.l.b16 %v706
    %v781 = vunpack.c.h.b16 %v706
    %v782 = vunpack.c.l.b16 %v707
    %v783 = vunpack.c.h.b16 %v707
    %v784 = vunpack.c.l.b16 %v708
    %v785 = vunpack.c.h.b16 %v708
    %v786 = vunpack.c.l.b16 %v709
    %v787 = vunpack.c.h.b16 %v709
    %v788 = vunpack.c.l.b16 %v710
    %v789 = vunpack.c.h.b16 %v710
    %v790 = vunpack.c.l.b16 %v711
    %v791 = vunpack.c.h.b16 %v711
    %v792 = vunpack.c.l.b16 %v712
    %v793 = vunpack.c.h.b16 %v712
    %v794 = vunpack.c.l.b16 %v713
    %v795 = vunpack.c.h.b16 %v713
    %v796 = vunpack.c.l.b16 %v714
    %v797 = vunpack.c.h.b16 %v714
    %v798 = vunpack.c.l.b16 %v715
    %v799 = vunpack.c.h.b16 %v715
    %v800 = vunpack.c.l.b16 %v716
    %v801 = vunpack.c.h.b16 %v716
    %v802 = vunpack.c.l.b16 %v717
    %v803 = vunpack.c.h.b16 %v717
    %v804 = vunpack.c.l.b16 %v718
    %v805 = vunpack.c.h.b16 %v718
    %v806 = vunpack.c.l.b16 %v719
    %v807 = vunpack.c.h.b16 %v719
    %v808 = vunpack.c.l.b16 %v720
    %v809 = vunpack.c.h.b16 %v720
    %v810 = vunpack.c.l.b16 %v721
    %v811 = vunpack.c.h.b16 %v721
    %v812 = vunpack.c.l.b16 %v722
    %v813 = vunpack.c.h.b16 %v722
    %v814 = vunpack.c.l.b16 %v723
    %v815 = vunpack.c.h.b16 %v723
    %v816 = vunpack.c.l.b16 %v724
    %v817 = vunpack.c.h.b16 %v724
    %v818 = vunpack.c.l.b16 %v725
    %v819 = vunpack.c.h.b16 %v725
    %v820 = vunpack.c.l.b16 %v726
    %v821 = vunpack.c.h.b16 %v726
    %v822 = vunpack.c.l.b16 %v727
    %v823 = vunpack.c.h.b16 %v727
    %v824 = vunpack.c.l.b16 %v728
    %v825 = vunpack.c.h.b16 %v728
    %v826 = vunpack.c.l.b16 %v729
    %v827 = vunpack.c.h.b16 %v729
    %v828 = vunpack.c.l.b16 %v730
    %v829 = vunpack.c.h.b16 %v730
    %v830 = vunpack.c.l.b16 %v731
    %v831 = vunpack.c.h.b16 %v731
    %v832 = vunpack.c.l.b16 %v732
    %v833 = vunpack.c.h.b16 %v732
    %v834 = vunpack.c.l.b16 %v733
    %v835 = vunpack.c.h.b16 %v733
    %v836 = vunpack.c.l.b16 %v734
    %v837 = vunpack.c.h.b16 %v734
    %v838 = vpack.c.b16 %v776, %v774
    %v839 = vpack.c.b16 %v777, %v775
    %v840 = vpack.c.b16 %v780, %v778
    %v841 = vpack.c.b16 %v781, %v779
    %v842 = vpack.c.b16 %v784, %v782
    %v843 = vpack.c.b16 %v785, %v783
    %v844 = vpack.c.b16 %v788, %v786
    %v845 = vpack.c.b16 %v789, %v787
    %v846 = vpack.c.b16 %v792, %v790
    %v847 = vpack.c.b16 %v793, %v791
    %v848 = vpack.c.b16 %v796, %v794
    %v849 = vpack.c.b16 %v797, %v795
    %v850 = vpack.c.b16 %v800, %v798
    %v851 = vpack.c.b16 %v801, %v799
    %v852 = vpack.c.b16 %v804, %v802
    %v853 = vpack.c.b16 %v805, %v803
    %v854 = vpack.c.b16 %v808, %v806
    %v855 = vpack.c.b16 %v809, %v807
    %v856 = vpack.c.b16 %v812, %v810
    %v857 = vpack.c.b16 %v813, %v811
    %v858 = vpack.c.b16 %v816, %v814
    %v859 = vpack.c.b16 %v817, %v815
    %v860 = vpack.c.b16 %v820, %v818
    %v861 = vpack.c.b16 %v821, %v819
    %v862 = vpack.c.b16 %v824, %v822
    %v863 = vpack.c.b16 %v825, %v823
    %v864 = vpack.c.b16 %v828, %v826
    %v865 = vpack.c.b16 %v829, %v827
    %v866 = vpack.c.b16 %v832, %v830
    %v867 = vpack.c.b16 %v833, %v831
    %v868 = vpack.c.b16 %v836, %v834
    %v869 = vpack.c.b16 %v837, %v835
    %902 = vmatpush.bf16.msra.mxu0 %v852
    %903 = vmatpush.bf16.msra.mxu0 %v850
    %904 = vmatpush.bf16.msra.mxu0 %v848
    %905 = vmatpush.bf16.msra.mxu0 %v846
    %906 = vmatpush.bf16.msra.mxu0 %v844
    %907 = vmatpush.bf16.msra.mxu0 %v842
    %908 = vmatpush.bf16.msra.mxu0 %v840
    %909 = vmatpush.bf16.msra.mxu0 %v838
    %910 = vmatmul.bf16.gmra.mxu0 %v185
    %v911 = vpop.f32.mrf.mxu0
    %v912 = vadd.f32 %v738, %v911
    %v913 = vpop.f32.mrf.mxu0
    %v914 = vadd.f32 %v738, %v913
    %915 = vdwg.mxu0
    %916 = vmatpush.bf16.msra.mxu0 %v868
    %917 = vmatpush.bf16.msra.mxu0 %v866
    %918 = vmatpush.bf16.msra.mxu0 %v864
    %919 = vmatpush.bf16.msra.mxu0 %v862
    %920 = vmatpush.bf16.msra.mxu0 %v860
    %921 = vmatpush.bf16.msra.mxu0 %v858
    %922 = vmatpush.bf16.msra.mxu0 %v856
    %923 = vmatpush.bf16.msra.mxu0 %v854
    %924 = vmatmul.bf16.gmra.mxu0 %v186
    %v925 = vpop.f32.mrf.mxu0
    %v926 = vadd.f32 %v912, %v925
    %v927 = vpop.f32.mrf.mxu0
    %v928 = vadd.f32 %v914, %v927
    %929 = vdwg.mxu0
    %930 = vmatpush.bf16.msra.mxu0 %v853
    %931 = vmatpush.bf16.msra.mxu0 %v851
    %932 = vmatpush.bf16.msra.mxu0 %v849
    %933 = vmatpush.bf16.msra.mxu0 %v847
    %934 = vmatpush.bf16.msra.mxu0 %v845
    %935 = vmatpush.bf16.msra.mxu0 %v843
    %936 = vmatpush.bf16.msra.mxu0 %v841
    %937 = vmatpush.bf16.msra.mxu0 %v839
    %938 = vmatmul.bf16.gmra.mxu0 %v185
    %v939 = vpop.f32.mrf.mxu0
    %v940 = vadd.f32 %v739, %v939
    %v941 = vpop.f32.mrf.mxu0
    %v942 = vadd.f32 %v739, %v941
    %943 = vdwg.mxu0
    %944 = vmatpush.bf16.msra.mxu0 %v869
    %945 = vmatpush.bf16.msra.mxu0 %v867
    %946 = vmatpush.bf16.msra.mxu0 %v865
    %947 = vmatpush.bf16.msra.mxu0 %v863
    %948 = vmatpush.bf16.msra.mxu0 %v861
    %949 = vmatpush.bf16.msra.mxu0 %v859
    %950 = vmatpush.bf16.msra.mxu0 %v857
    %951 = vmatpush.bf16.msra.mxu0 %v855
    %952 = vmatmul.bf16.gmra.mxu0 %v186
    %v953 = vpop.f32.mrf.mxu0
    %v954 = vadd.f32 %v940, %v953
    %v955 = vpop.f32.mrf.mxu0
    %v956 = vadd.f32 %v942, %v955
    %957 = vdwg.mxu0
    %v958 = vpack.c.bf16 %v954, %v926
    %v959 = vpack.c.bf16 %v956, %v928
    %s960 = scalar_lea.vmem [#allocation2], 1024
    %v961 = vld [vmem:[%s960] sm:$0xff]
    %v962 = vld [vmem:[%s960 + $0x8] sm:$0xff]
    %v963 = vld [vmem:[%s960 + $0x10] sm:$0xff]
    %v964 = vld [vmem:[%s960 + $0x18] sm:$0xff]
    %v965 = vld [vmem:[%s960 + $0x20] sm:$0xff]
    %v966 = vld [vmem:[%s960 + $0x28] sm:$0xff]
    %v967 = vld [vmem:[%s960 + $0x30] sm:$0xff]
    %v968 = vld [vmem:[%s960 + $0x38] sm:$0xff]
    %v969 = vld [vmem:[%s960 + $0x40] sm:$0xff]
    %v970 = vld [vmem:[%s960 + $0x48] sm:$0xff]
    %v971 = vld [vmem:[%s960 + $0x50] sm:$0xff]
    %v972 = vld [vmem:[%s960 + $0x58] sm:$0xff]
    %v973 = vld [vmem:[%s960 + $0x60] sm:$0xff]
    %v974 = vld [vmem:[%s960 + $0x68] sm:$0xff]
    %v975 = vld [vmem:[%s960 + $0x70] sm:$0xff]
    %v976 = vld [vmem:[%s960 + $0x78] sm:$0xff]
    %v977 = vld [vmem:[%s960 + $0x80] sm:$0xff]
    %v978 = vld [vmem:[%s960 + $0x88] sm:$0xff]
    %v979 = vld [vmem:[%s960 + $0x90] sm:$0xff]
    %v980 = vld [vmem:[%s960 + $0x98] sm:$0xff]
    %v981 = vld [vmem:[%s960 + $0xa0] sm:$0xff]
    %v982 = vld [vmem:[%s960 + $0xa8] sm:$0xff]
    %v983 = vld [vmem:[%s960 + $0xb0] sm:$0xff]
    %v984 = vld [vmem:[%s960 + $0xb8] sm:$0xff]
    %v985 = vld [vmem:[%s960 + $0xc0] sm:$0xff]
    %v986 = vld [vmem:[%s960 + $0xc8] sm:$0xff]
    %v987 = vld [vmem:[%s960 + $0xd0] sm:$0xff]
    %v988 = vld [vmem:[%s960 + $0xd8] sm:$0xff]
    %v989 = vld [vmem:[%s960 + $0xe0] sm:$0xff]
    %v990 = vld [vmem:[%s960 + $0xe8] sm:$0xff]
    %v991 = vld [vmem:[%s960 + $0xf0] sm:$0xff]
    %v992 = vld [vmem:[%s960 + $0xf8] sm:$0xff]
    %s993 = scalar_lea.vmem [#allocation5], 3
    %v994 = vld [vmem:[%s993] ss:$8 sm:$0x3]
    %v997 = vunpack.c.l.b16 %v442
    %v998 = vunpack.c.l.b16 %v443
    %v999 = vpack.c.b16 %v998, %v997
    %v1003 = vunpack.c.l.b16 %v700
    %v1004 = vunpack.c.l.b16 %v701
    %v1005 = vpack.c.b16 %v1004, %v1003
    %1007 = vmatpush.bf16.xpose.msra.mxu0 0
    %1008 = vmatpush.bf16.xpose.msra.mxu0 0
    %1009 = vmatpush.bf16.xpose.msra.mxu0 0
    %1010 = vmatpush.bf16.xpose.msra.mxu0 0
    %1011 = vmatpush.bf16.xpose.msra.mxu0 0
    %1012 = vmatpush.bf16.xpose.msra.mxu0 0
    %1013 = vmatpush.bf16.xpose.msra.mxu0 0
    %1014 = vmatpush.bf16.xpose.msra.mxu0 %v1005
    %1015 = vmatmul.bf16.gmra.mxu0 %v999
    %v1016 = vpop.f32.mrf.mxu0
    %v1017 = vadd.f32 %v53, %v1016
    %v1018 = vpop.f32.mrf.mxu0
    %v1019 = vadd.f32 %v54, %v1018
    %1020 = vdwg.mxu0
    %vm1021 = vcmask 130048
    %v1022 = vsel %vm1021, %v1017, -inf
    %1023 = vmax.xlane.f32.xlu0 %v1022
    %v1024 = vpop.xlane.xlu0 %1023
    %v1025 = vsel %vm1021, %v1019, -inf
    %1026 = vmax.xlane.f32.xlu0 %v1025
    %v1027 = vpop.xlane.xlu0 %1026
    %v1028 = vsub.f32 %v1017, %v1024
    %v1029 = vsub.f32 %v1019, %v1027
    %v1030 = vmul.f32 %v1028, 1.442695
    %v1031 = vpow.pop %v1030
    %v1032 = vmul.f32 %v1029, 1.442695
    %v1033 = vpow.pop %v1032
    %v1034 = vsel %vm1021, %v1031, 0.0
    %1035 = vadd.xlane.f32.xlu0 %v1034
    %v1036 = vpop.xlane.xlu0 %1035
    %v1037 = vsel %vm1021, %v1033, 0.0
    %1038 = vadd.xlane.f32.xlu0 %v1037
    %v1039 = vpop.xlane.xlu0 %1038
    %v1040 = vrcp.pop %v1036
    %v1041 = vrcp.pop %v1039
    %v1042 = vmul.f32 %v1031, %v1040
    %v1043 = vmul.f32 %v1033, %v1041
    %v1044 = vpack.c.bf16 %v1043, %v1042
    %v1047 = vunpack.c.l.b16 %v958
    %v1048 = vunpack.c.l.b16 %v959
    %v1049 = vpack.c.b16 %v1048, %v1047
    %v1052 = vsel %vm1021, %v1044, 0
    %1054 = vmatpush.bf16.msra.mxu0 0
    %1055 = vmatpush.bf16.msra.mxu0 0
    %1056 = vmatpush.bf16.msra.mxu0 0
    %1057 = vmatpush.bf16.msra.mxu0 0
    %1058 = vmatpush.bf16.msra.mxu0 0
    %1059 = vmatpush.bf16.msra.mxu0 0
    %1060 = vmatpush.bf16.msra.mxu0 0
    %1061 = vmatpush.bf16.msra.mxu0 %v1049
    %1062 = vmatmul.bf16.gmra.mxu0 %v1052
    %v1063 = vpop.f32.mrf.mxu0
    %v1064 = vadd.f32 0.0, %v1063
    %v1065 = vpop.f32.mrf.mxu0
    %v1066 = vadd.f32 0.0, %v1065
    %1067 = vdwg.mxu0
    %v1068 = vpack.c.bf16 %v1066, %v1064
    %v1085 = vunpack.c.l.b16 %v961
    %v1086 = vunpack.c.h.b16 %v961
    %v1087 = vunpack.c.l.b16 %v962
    %v1088 = vunpack.c.h.b16 %v962
    %v1089 = vunpack.c.l.b16 %v963
    %v1090 = vunpack.c.h.b16 %v963
    %v1091 = vunpack.c.l.b16 %v964
    %v1092 = vunpack.c.h.b16 %v964
    %v1093 = vunpack.c.l.b16 %v965
    %v1094 = vunpack.c.h.b16 %v965
    %v1095 = vunpack.c.l.b16 %v966
    %v1096 = vunpack.c.h.b16 %v966
    %v1097 = vunpack.c.l.b16 %v967
    %v1098 = vunpack.c.h.b16 %v967
    %v1099 = vunpack.c.l.b16 %v968
    %v1100 = vunpack.c.h.b16 %v968
    %v1101 = vunpack.c.l.b16 %v969
    %v1102 = vunpack.c.h.b16 %v969
    %v1103 = vunpack.c.l.b16 %v970
    %v1104 = vunpack.c.h.b16 %v970
    %v1105 = vunpack.c.l.b16 %v971
    %v1106 = vunpack.c.h.b16 %v971
    %v1107 = vunpack.c.l.b16 %v972
    %v1108 = vunpack.c.h.b16 %v972
    %v1109 = vunpack.c.l.b16 %v973
    %v1110 = vunpack.c.h.b16 %v973
    %v1111 = vunpack.c.l.b16 %v974
    %v1112 = vunpack.c.h.b16 %v974
    %v1113 = vunpack.c.l.b16 %v975
    %v1114 = vunpack.c.h.b16 %v975
    %v1115 = vunpack.c.l.b16 %v976
    %v1116 = vunpack.c.h.b16 %v976
    %v1117 = vpack.c.b16 %v1087, %v1085
    %v1118 = vpack.c.b16 %v1088, %v1086
    %v1119 = vpack.c.b16 %v1091, %v1089
    %v1120 = vpack.c.b16 %v1092, %v1090
    %v1121 = vpack.c.b16 %v1095, %v1093
    %v1122 = vpack.c.b16 %v1096, %v1094
    %v1123 = vpack.c.b16 %v1099, %v1097
    %v1124 = vpack.c.b16 %v1100, %v1098
    %v1125 = vpack.c.b16 %v1103, %v1101
    %v1126 = vpack.c.b16 %v1104, %v1102
    %v1127 = vpack.c.b16 %v1107, %v1105
    %v1128 = vpack.c.b16 %v1108, %v1106
    %v1129 = vpack.c.b16 %v1111, %v1109
    %v1130 = vpack.c.b16 %v1112, %v1110
    %v1131 = vpack.c.b16 %v1115, %v1113
    %v1132 = vpack.c.b16 %v1116, %v1114
    %1149 = vmatpush.bf16.msra.mxu0 %v1131
    %1150 = vmatpush.bf16.msra.mxu0 %v1129
    %1151 = vmatpush.bf16.msra.mxu0 %v1127
    %1152 = vmatpush.bf16.msra.mxu0 %v1125
    %1153 = vmatpush.bf16.msra.mxu0 %v1123
    %1154 = vmatpush.bf16.msra.mxu0 %v1121
    %1155 = vmatpush.bf16.msra.mxu0 %v1119
    %1156 = vmatpush.bf16.msra.mxu0 %v1117
    %1157 = vmatmul.bf16.gmra.mxu0 %v1068
    %v1158 = vpop.f32.mrf.mxu0
    %v1159 = vadd.f32 0.0, %v1158
    %v1160 = vpop.f32.mrf.mxu0
    %v1161 = vadd.f32 0.0, %v1160
    %1162 = vdwg.mxu0
    %1163 = vmatpush.bf16.msra.mxu0 %v1132
    %1164 = vmatpush.bf16.msra.mxu0 %v1130
    %1165 = vmatpush.bf16.msra.mxu0 %v1128
    %1166 = vmatpush.bf16.msra.mxu0 %v1126
    %1167 = vmatpush.bf16.msra.mxu0 %v1124
    %1168 = vmatpush.bf16.msra.mxu0 %v1122
    %1169 = vmatpush.bf16.msra.mxu0 %v1120
    %1170 = vmatpush.bf16.msra.mxu0 %v1118
    %1171 = vmatmul.bf16.gmra.mxu0 %v1068
    %v1172 = vpop.f32.mrf.mxu0
    %v1173 = vadd.f32 0.0, %v1172
    %v1174 = vpop.f32.mrf.mxu0
    %v1175 = vadd.f32 0.0, %v1174
    %1176 = vdwg.mxu0
    %v1178 = vperm.slane %v994, 0
    %v1179 = vperm.slane %v994, 1
    %v1182 = vadd.f32 %v1178, %v1159
    %v1183 = vadd.f32 %v1179, %v1173
    %v1184 = vadd.f32 %v1178, %v1161
    %v1185 = vadd.f32 %v1179, %v1175
    %v1186 = vunpack.c.h.b16 %v442
    %v1187 = vunpack.c.h.b16 %v443
    %v1188 = vpack.c.b16 %v1187, %v1186
    %v1190 = vunpack.c.h.b16 %v700
    %v1191 = vunpack.c.h.b16 %v701
    %v1192 = vpack.c.b16 %v1191, %v1190
    %1194 = vmatpush.bf16.xpose.msra.mxu0 0
    %1195 = vmatpush.bf16.xpose.msra.mxu0 0
    %1196 = vmatpush.bf16.xpose.msra.mxu0 0
    %1197 = vmatpush.bf16.xpose.msra.mxu0 0
    %1198 = vmatpush.bf16.xpose.msra.mxu0 0
    %1199 = vmatpush.bf16.xpose.msra.mxu0 0
    %1200 = vmatpush.bf16.xpose.msra.mxu0 0
    %1201 = vmatpush.bf16.xpose.msra.mxu0 %v1192
    %1202 = vmatmul.bf16.gmra.mxu0 %v1188
    %v1203 = vpop.f32.mrf.mxu0
    %v1204 = vadd.f32 %v53, %v1203
    %v1205 = vpop.f32.mrf.mxu0
    %v1206 = vadd.f32 %v54, %v1205
    %1207 = vdwg.mxu0
    %v1208 = vsel %vm1021, %v1204, -inf
    %1209 = vmax.xlane.f32.xlu0 %v1208
    %v1210 = vpop.xlane.xlu0 %1209
    %v1211 = vsel %vm1021, %v1206, -inf
    %1212 = vmax.xlane.f32.xlu0 %v1211
    %v1213 = vpop.xlane.xlu0 %1212
    %v1214 = vsub.f32 %v1204, %v1210
    %v1215 = vsub.f32 %v1206, %v1213
    %v1216 = vmul.f32 %v1214, 1.442695
    %v1217 = vpow.pop %v1216
    %v1218 = vmul.f32 %v1215, 1.442695
    %v1219 = vpow.pop %v1218
    %v1220 = vsel %vm1021, %v1217, 0.0
    %1221 = vadd.xlane.f32.xlu0 %v1220
    %v1222 = vpop.xlane.xlu0 %1221
    %v1223 = vsel %vm1021, %v1219, 0.0
    %1224 = vadd.xlane.f32.xlu0 %v1223
    %v1225 = vpop.xlane.xlu0 %1224
    %v1226 = vrcp.pop %v1222
    %v1227 = vrcp.pop %v1225
    %v1228 = vmul.f32 %v1217, %v1226
    %v1229 = vmul.f32 %v1219, %v1227
    %v1230 = vpack.c.bf16 %v1229, %v1228
    %v1231 = vunpack.c.h.b16 %v958
    %v1232 = vunpack.c.h.b16 %v959
    %v1233 = vpack.c.b16 %v1232, %v1231
    %v1236 = vsel %vm1021, %v1230, 0
    %1238 = vmatpush.bf16.msra.mxu0 0
    %1239 = vmatpush.bf16.msra.mxu0 0
    %1240 = vmatpush.bf16.msra.mxu0 0
    %1241 = vmatpush.bf16.msra.mxu0 0
    %1242 = vmatpush.bf16.msra.mxu0 0
    %1243 = vmatpush.bf16.msra.mxu0 0
    %1244 = vmatpush.bf16.msra.mxu0 0
    %1245 = vmatpush.bf16.msra.mxu0 %v1233
    %1246 = vmatmul.bf16.gmra.mxu0 %v1236
    %v1247 = vpop.f32.mrf.mxu0
    %v1248 = vadd.f32 0.0, %v1247
    %v1249 = vpop.f32.mrf.mxu0
    %v1250 = vadd.f32 0.0, %v1249
    %1251 = vdwg.mxu0
    %v1252 = vpack.c.bf16 %v1250, %v1248
    %v1269 = vunpack.c.l.b16 %v977
    %v1270 = vunpack.c.h.b16 %v977
    %v1271 = vunpack.c.l.b16 %v978
    %v1272 = vunpack.c.h.b16 %v978
    %v1273 = vunpack.c.l.b16 %v979
    %v1274 = vunpack.c.h.b16 %v979
    %v1275 = vunpack.c.l.b16 %v980
    %v1276 = vunpack.c.h.b16 %v980
    %v1277 = vunpack.c.l.b16 %v981
    %v1278 = vunpack.c.h.b16 %v981
    %v1279 = vunpack.c.l.b16 %v982
    %v1280 = vunpack.c.h.b16 %v982
    %v1281 = vunpack.c.l.b16 %v983
    %v1282 = vunpack.c.h.b16 %v983
    %v1283 = vunpack.c.l.b16 %v984
    %v1284 = vunpack.c.h.b16 %v984
    %v1285 = vunpack.c.l.b16 %v985
    %v1286 = vunpack.c.h.b16 %v985
    %v1287 = vunpack.c.l.b16 %v986
    %v1288 = vunpack.c.h.b16 %v986
    %v1289 = vunpack.c.l.b16 %v987
    %v1290 = vunpack.c.h.b16 %v987
    %v1291 = vunpack.c.l.b16 %v988
    %v1292 = vunpack.c.h.b16 %v988
    %v1293 = vunpack.c.l.b16 %v989
    %v1294 = vunpack.c.h.b16 %v989
    %v1295 = vunpack.c.l.b16 %v990
    %v1296 = vunpack.c.h.b16 %v990
    %v1297 = vunpack.c.l.b16 %v991
    %v1298 = vunpack.c.h.b16 %v991
    %v1299 = vunpack.c.l.b16 %v992
    %v1300 = vunpack.c.h.b16 %v992
    %v1301 = vpack.c.b16 %v1271, %v1269
    %v1302 = vpack.c.b16 %v1272, %v1270
    %v1303 = vpack.c.b16 %v1275, %v1273
    %v1304 = vpack.c.b16 %v1276, %v1274
    %v1305 = vpack.c.b16 %v1279, %v1277
    %v1306 = vpack.c.b16 %v1280, %v1278
    %v1307 = vpack.c.b16 %v1283, %v1281
    %v1308 = vpack.c.b16 %v1284, %v1282
    %v1309 = vpack.c.b16 %v1287, %v1285
    %v1310 = vpack.c.b16 %v1288, %v1286
    %v1311 = vpack.c.b16 %v1291, %v1289
    %v1312 = vpack.c.b16 %v1292, %v1290
    %v1313 = vpack.c.b16 %v1295, %v1293
    %v1314 = vpack.c.b16 %v1296, %v1294
    %v1315 = vpack.c.b16 %v1299, %v1297
    %v1316 = vpack.c.b16 %v1300, %v1298
    %1333 = vmatpush.bf16.msra.mxu0 %v1315
    %1334 = vmatpush.bf16.msra.mxu0 %v1313
    %1335 = vmatpush.bf16.msra.mxu0 %v1311
    %1336 = vmatpush.bf16.msra.mxu0 %v1309
    %1337 = vmatpush.bf16.msra.mxu0 %v1307
    %1338 = vmatpush.bf16.msra.mxu0 %v1305
    %1339 = vmatpush.bf16.msra.mxu0 %v1303
    %1340 = vmatpush.bf16.msra.mxu0 %v1301
    %1341 = vmatmul.bf16.gmra.mxu0 %v1252
    %v1342 = vpop.f32.mrf.mxu0
    %v1343 = vadd.f32 0.0, %v1342
    %v1344 = vpop.f32.mrf.mxu0
    %v1345 = vadd.f32 0.0, %v1344
    %1346 = vdwg.mxu0
    %1347 = vmatpush.bf16.msra.mxu0 %v1316
    %1348 = vmatpush.bf16.msra.mxu0 %v1314
    %1349 = vmatpush.bf16.msra.mxu0 %v1312
    %1350 = vmatpush.bf16.msra.mxu0 %v1310
    %1351 = vmatpush.bf16.msra.mxu0 %v1308
    %1352 = vmatpush.bf16.msra.mxu0 %v1306
    %1353 = vmatpush.bf16.msra.mxu0 %v1304
    %1354 = vmatpush.bf16.msra.mxu0 %v1302
    %1355 = vmatmul.bf16.gmra.mxu0 %v1252
    %v1356 = vpop.f32.mrf.mxu0
    %v1357 = vadd.f32 0.0, %v1356
    %v1358 = vpop.f32.mrf.mxu0
    %v1359 = vadd.f32 0.0, %v1358
    %1360 = vdwg.mxu0
    %v1361 = vadd.f32 %v1182, %v1343
    %v1362 = vadd.f32 %v1183, %v1357
    %v1363 = vadd.f32 %v1184, %v1345
    %v1364 = vadd.f32 %v1185, %v1359
    %v1365 = vadd.f32 %v167, %v1361
    %v1366 = vadd.f32 %v181, %v1362
    %v1367 = vadd.f32 %v169, %v1363
    %v1368 = vadd.f32 %v183, %v1364
    %s1369 = scalar_lea.vmem [#allocation5], 4
    %v1370 = vld [vmem:[%s1369] ss:$8 sm:$0x3]
    %s1371 = scalar_lea.vmem [#allocation5], 5
    %v1372 = vld [vmem:[%s1371] ss:$8 sm:$0x3]
    %v1373 = vadd.f32 %v1365, %v1366
    %1374 = vadd.xlane.f32.xlu0 %v1373
    %v1375 = vpop.xlane.xlu0 %1374
    %v1376 = vadd.f32 %v1367, %v1368
    %1377 = vadd.xlane.f32.xlu0 %v1376
    %v1378 = vpop.xlane.xlu0 %1377
    %v1379 = vrcp.pop 256.0
    %v1380 = vmul.f32 256.0, %v1379
    %v1381 = vsub.f32 1.0, %v1380
    %v1382 = vmul.f32 %v1379, %v1381
    %v1383 = vadd.f32 %v1379, %v1382
    %vm1384 = vweird.f32 %v1379
    %v1385 = vsel %vm1384, %v1379, %v1383
    %v1386 = vmul.f32 %v1375, %v1385
    %v1387 = vmul.f32 %v1378, %v1385
    %v1388 = vmul.f32 %v1365, %v1365
    %v1389 = vmul.f32 %v1366, %v1366
    %v1390 = vmul.f32 %v1367, %v1367
    %v1391 = vmul.f32 %v1368, %v1368
    %v1392 = vadd.f32 %v1388, %v1389
    %1393 = vadd.xlane.f32.xlu0 %v1392
    %v1394 = vpop.xlane.xlu0 %1393
    %v1395 = vadd.f32 %v1390, %v1391
    %1396 = vadd.xlane.f32.xlu0 %v1395
    %v1397 = vpop.xlane.xlu0 %1396
    %v1398 = vmul.f32 %v1394, %v1385
    %v1399 = vmul.f32 %v1397, %v1385
    %v1400 = vmul.f32 %v1386, %v1386
    %v1401 = vmul.f32 %v1387, %v1387
    %v1402 = vsub.f32 %v1398, %v1400
    %v1403 = vsub.f32 %v1399, %v1401
    %v1404 = vsub.f32 %v1365, %v1386
    %v1405 = vsub.f32 %v1366, %v1386
    %v1406 = vsub.f32 %v1367, %v1387
    %v1407 = vsub.f32 %v1368, %v1387
    %v1408 = vadd.f32 %v1402, 1e-05
    %v1409 = vadd.f32 %v1403, 1e-05
    %v1410 = vrsqrt.pop %v1408
    %v1411 = vmul.f32 %v1410, %v1408
    %v1412 = vmul.f32 %v1411, %v1410
    %v1413 = vmul.f32 0.5, %v1412
    %v1414 = vsub.f32 1.5, %v1413
    %v1415 = vmul.f32 %v1410, %v1414
    %vm1416 = vweird.f32 %v1408
    %vm1417 = vweird.f32 %v1410
    %vm1418 = vmor %vm1416, %vm1417
    %v1419 = vsel %vm1418, %v1410, %v1415
    %v1420 = vrsqrt.pop %v1409
    %v1421 = vmul.f32 %v1420, %v1409
    %v1422 = vmul.f32 %v1421, %v1420
    %v1423 = vmul.f32 0.5, %v1422
    %v1424 = vsub.f32 1.5, %v1423
    %v1425 = vmul.f32 %v1420, %v1424
    %vm1426 = vweird.f32 %v1409
    %vm1427 = vweird.f32 %v1420
    %vm1428 = vmor %vm1426, %vm1427
    %v1429 = vsel %vm1428, %v1420, %v1425
    %v1430 = vmul.f32 %v1404, %v1419
    %v1431 = vmul.f32 %v1405, %v1419
    %v1432 = vmul.f32 %v1406, %v1429
    %v1433 = vmul.f32 %v1407, %v1429
    %v1435 = vperm.slane %v1370, 0
    %v1436 = vperm.slane %v1370, 1
    %v1439 = vmul.f32 %v1430, %v1435
    %v1440 = vmul.f32 %v1431, %v1436
    %v1441 = vmul.f32 %v1432, %v1435
    %v1442 = vmul.f32 %v1433, %v1436
    %v1444 = vperm.slane %v1372, 0
    %v1445 = vperm.slane %v1372, 1
    %v1448 = vadd.f32 %v1439, %v1444
    %v1449 = vadd.f32 %v1440, %v1445
    %v1450 = vadd.f32 %v1441, %v1444
    %v1451 = vadd.f32 %v1442, %v1445
    %v1452 = vpack.c.bf16 %v1450, %v1448
    %v1453 = vpack.c.bf16 %v1451, %v1449
    %s1454 = scalar_lea.vmem [#allocation2], 1280
    %v1455 = vld [vmem:[%s1454] sm:$0xff]
    %v1456 = vld [vmem:[%s1454 + $0x8] sm:$0xff]
    %v1457 = vld [vmem:[%s1454 + $0x10] sm:$0xff]
    %v1458 = vld [vmem:[%s1454 + $0x18] sm:$0xff]
    %v1459 = vld [vmem:[%s1454 + $0x20] sm:$0xff]
    %v1460 = vld [vmem:[%s1454 + $0x28] sm:$0xff]
    %v1461 = vld [vmem:[%s1454 + $0x30] sm:$0xff]
    %v1462 = vld [vmem:[%s1454 + $0x38] sm:$0xff]
    %v1463 = vld [vmem:[%s1454 + $0x40] sm:$0xff]
    %v1464 = vld [vmem:[%s1454 + $0x48] sm:$0xff]
    %v1465 = vld [vmem:[%s1454 + $0x50] sm:$0xff]
    %v1466 = vld [vmem:[%s1454 + $0x58] sm:$0xff]
    %v1467 = vld [vmem:[%s1454 + $0x60] sm:$0xff]
    %v1468 = vld [vmem:[%s1454 + $0x68] sm:$0xff]
    %v1469 = vld [vmem:[%s1454 + $0x70] sm:$0xff]
    %v1470 = vld [vmem:[%s1454 + $0x78] sm:$0xff]
    %v1471 = vld [vmem:[%s1454 + $0x80] sm:$0xff]
    %v1472 = vld [vmem:[%s1454 + $0x88] sm:$0xff]
    %v1473 = vld [vmem:[%s1454 + $0x90] sm:$0xff]
    %v1474 = vld [vmem:[%s1454 + $0x98] sm:$0xff]
    %v1475 = vld [vmem:[%s1454 + $0xa0] sm:$0xff]
    %v1476 = vld [vmem:[%s1454 + $0xa8] sm:$0xff]
    %v1477 = vld [vmem:[%s1454 + $0xb0] sm:$0xff]
    %v1478 = vld [vmem:[%s1454 + $0xb8] sm:$0xff]
    %v1479 = vld [vmem:[%s1454 + $0xc0] sm:$0xff]
    %v1480 = vld [vmem:[%s1454 + $0xc8] sm:$0xff]
    %v1481 = vld [vmem:[%s1454 + $0xd0] sm:$0xff]
    %v1482 = vld [vmem:[%s1454 + $0xd8] sm:$0xff]
    %v1483 = vld [vmem:[%s1454 + $0xe0] sm:$0xff]
    %v1484 = vld [vmem:[%s1454 + $0xe8] sm:$0xff]
    %v1485 = vld [vmem:[%s1454 + $0xf0] sm:$0xff]
    %v1486 = vld [vmem:[%s1454 + $0xf8] sm:$0xff]
    %s1487 = scalar_lea.vmem [#allocation5], 6
    %v1488 = vld [vmem:[%s1487] ss:$8 sm:$0x3]
    %v1490 = vperm.slane %v1488, 0
    %v1491 = vperm.slane %v1488, 1
    %v1526 = vunpack.c.l.b16 %v1455
    %v1527 = vunpack.c.h.b16 %v1455
    %v1528 = vunpack.c.l.b16 %v1456
    %v1529 = vunpack.c.h.b16 %v1456
    %v1530 = vunpack.c.l.b16 %v1457
    %v1531 = vunpack.c.h.b16 %v1457
    %v1532 = vunpack.c.l.b16 %v1458
    %v1533 = vunpack.c.h.b16 %v1458
    %v1534 = vunpack.c.l.b16 %v1459
    %v1535 = vunpack.c.h.b16 %v1459
    %v1536 = vunpack.c.l.b16 %v1460
    %v1537 = vunpack.c.h.b16 %v1460
    %v1538 = vunpack.c.l.b16 %v1461
    %v1539 = vunpack.c.h.b16 %v1461
    %v1540 = vunpack.c.l.b16 %v1462
    %v1541 = vunpack.c.h.b16 %v1462
    %v1542 = vunpack.c.l.b16 %v1463
    %v1543 = vunpack.c.h.b16 %v1463
    %v1544 = vunpack.c.l.b16 %v1464
    %v1545 = vunpack.c.h.b16 %v1464
    %v1546 = vunpack.c.l.b16 %v1465
    %v1547 = vunpack.c.h.b16 %v1465
    %v1548 = vunpack.c.l.b16 %v1466
    %v1549 = vunpack.c.h.b16 %v1466
    %v1550 = vunpack.c.l.b16 %v1467
    %v1551 = vunpack.c.h.b16 %v1467
    %v1552 = vunpack.c.l.b16 %v1468
    %v1553 = vunpack.c.h.b16 %v1468
    %v1554 = vunpack.c.l.b16 %v1469
    %v1555 = vunpack.c.h.b16 %v1469
    %v1556 = vunpack.c.l.b16 %v1470
    %v1557 = vunpack.c.h.b16 %v1470
    %v1558 = vunpack.c.l.b16 %v1471
    %v1559 = vunpack.c.h.b16 %v1471
    %v1560 = vunpack.c.l.b16 %v1472
    %v1561 = vunpack.c.h.b16 %v1472
    %v1562 = vunpack.c.l.b16 %v1473
    %v1563 = vunpack.c.h.b16 %v1473
    %v1564 = vunpack.c.l.b16 %v1474
    %v1565 = vunpack.c.h.b16 %v1474
    %v1566 = vunpack.c.l.b16 %v1475
    %v1567 = vunpack.c.h.b16 %v1475
    %v1568 = vunpack.c.l.b16 %v1476
    %v1569 = vunpack.c.h.b16 %v1476
    %v1570 = vunpack.c.l.b16 %v1477
    %v1571 = vunpack.c.h.b16 %v1477
    %v1572 = vunpack.c.l.b16 %v1478
    %v1573 = vunpack.c.h.b16 %v1478
    %v1574 = vunpack.c.l.b16 %v1479
    %v1575 = vunpack.c.h.b16 %v1479
    %v1576 = vunpack.c.l.b16 %v1480
    %v1577 = vunpack.c.h.b16 %v1480
    %v1578 = vunpack.c.l.b16 %v1481
    %v1579 = vunpack.c.h.b16 %v1481
    %v1580 = vunpack.c.l.b16 %v1482
    %v1581 = vunpack.c.h.b16 %v1482
    %v1582 = vunpack.c.l.b16 %v1483
    %v1583 = vunpack.c.h.b16 %v1483
    %v1584 = vunpack.c.l.b16 %v1484
    %v1585 = vunpack.c.h.b16 %v1484
    %v1586 = vunpack.c.l.b16 %v1485
    %v1587 = vunpack.c.h.b16 %v1485
    %v1588 = vunpack.c.l.b16 %v1486
    %v1589 = vunpack.c.h.b16 %v1486
    %v1590 = vpack.c.b16 %v1528, %v1526
    %v1591 = vpack.c.b16 %v1529, %v1527
    %v1592 = vpack.c.b16 %v1532, %v1530
    %v1593 = vpack.c.b16 %v1533, %v1531
    %v1594 = vpack.c.b16 %v1536, %v1534
    %v1595 = vpack.c.b16 %v1537, %v1535
    %v1596 = vpack.c.b16 %v1540, %v1538
    %v1597 = vpack.c.b16 %v1541, %v1539
    %v1598 = vpack.c.b16 %v1544, %v1542
    %v1599 = vpack.c.b16 %v1545, %v1543
    %v1600 = vpack.c.b16 %v1548, %v1546
    %v1601 = vpack.c.b16 %v1549, %v1547
    %v1602 = vpack.c.b16 %v1552, %v1550
    %v1603 = vpack.c.b16 %v1553, %v1551
    %v1604 = vpack.c.b16 %v1556, %v1554
    %v1605 = vpack.c.b16 %v1557, %v1555
    %v1606 = vpack.c.b16 %v1560, %v1558
    %v1607 = vpack.c.b16 %v1561, %v1559
    %v1608 = vpack.c.b16 %v1564, %v1562
    %v1609 = vpack.c.b16 %v1565, %v1563
    %v1610 = vpack.c.b16 %v1568, %v1566
    %v1611 = vpack.c.b16 %v1569, %v1567
    %v1612 = vpack.c.b16 %v1572, %v1570
    %v1613 = vpack.c.b16 %v1573, %v1571
    %v1614 = vpack.c.b16 %v1576, %v1574
    %v1615 = vpack.c.b16 %v1577, %v1575
    %v1616 = vpack.c.b16 %v1580, %v1578
    %v1617 = vpack.c.b16 %v1581, %v1579
    %v1618 = vpack.c.b16 %v1584, %v1582
    %v1619 = vpack.c.b16 %v1585, %v1583
    %v1620 = vpack.c.b16 %v1588, %v1586
    %v1621 = vpack.c.b16 %v1589, %v1587
    %1654 = vmatpush.bf16.msra.mxu0 %v1604
    %1655 = vmatpush.bf16.msra.mxu0 %v1602
    %1656 = vmatpush.bf16.msra.mxu0 %v1600
    %1657 = vmatpush.bf16.msra.mxu0 %v1598
    %1658 = vmatpush.bf16.msra.mxu0 %v1596
    %1659 = vmatpush.bf16.msra.mxu0 %v1594
    %1660 = vmatpush.bf16.msra.mxu0 %v1592
    %1661 = vmatpush.bf16.msra.mxu0 %v1590
    %1662 = vmatmul.bf16.gmra.mxu0 %v1452
    %v1663 = vpop.f32.mrf.mxu0
    %v1664 = vadd.f32 %v1490, %v1663
    %v1665 = vpop.f32.mrf.mxu0
    %v1666 = vadd.f32 %v1490, %v1665
    %1667 = vdwg.mxu0
    %1668 = vmatpush.bf16.msra.mxu0 %v1620
    %1669 = vmatpush.bf16.msra.mxu0 %v1618
    %1670 = vmatpush.bf16.msra.mxu0 %v1616
    %1671 = vmatpush.bf16.msra.mxu0 %v1614
    %1672 = vmatpush.bf16.msra.mxu0 %v1612
    %1673 = vmatpush.bf16.msra.mxu0 %v1610
    %1674 = vmatpush.bf16.msra.mxu0 %v1608
    %1675 = vmatpush.bf16.msra.mxu0 %v1606
    %1676 = vmatmul.bf16.gmra.mxu0 %v1453
    %v1677 = vpop.f32.mrf.mxu0
    %v1678 = vadd.f32 %v1664, %v1677
    %v1679 = vpop.f32.mrf.mxu0
    %v1680 = vadd.f32 %v1666, %v1679
    %1681 = vdwg.mxu0
    %1682 = vmatpush.bf16.msra.mxu0 %v1605
    %1683 = vmatpush.bf16.msra.mxu0 %v1603
    %1684 = vmatpush.bf16.msra.mxu0 %v1601
    %1685 = vmatpush.bf16.msra.mxu0 %v1599
    %1686 = vmatpush.bf16.msra.mxu0 %v1597
    %1687 = vmatpush.bf16.msra.mxu0 %v1595
    %1688 = vmatpush.bf16.msra.mxu0 %v1593
    %1689 = vmatpush.bf16.msra.mxu0 %v1591
    %1690 = vmatmul.bf16.gmra.mxu0 %v1452
    %v1691 = vpop.f32.mrf.mxu0
    %v1692 = vadd.f32 %v1491, %v1691
    %v1693 = vpop.f32.mrf.mxu0
    %v1694 = vadd.f32 %v1491, %v1693
    %1695 = vdwg.mxu0
    %1696 = vmatpush.bf16.msra.mxu0 %v1621
    %1697 = vmatpush.bf16.msra.mxu0 %v1619
    %1698 = vmatpush.bf16.msra.mxu0 %v1617
    %1699 = vmatpush.bf16.msra.mxu0 %v1615
    %1700 = vmatpush.bf16.msra.mxu0 %v1613
    %1701 = vmatpush.bf16.msra.mxu0 %v1611
    %1702 = vmatpush.bf16.msra.mxu0 %v1609
    %1703 = vmatpush.bf16.msra.mxu0 %v1607
    %1704 = vmatmul.bf16.gmra.mxu0 %v1453
    %v1705 = vpop.f32.mrf.mxu0
    %v1706 = vadd.f32 %v1692, %v1705
    %v1707 = vpop.f32.mrf.mxu0
    %v1708 = vadd.f32 %v1694, %v1707
    %1709 = vdwg.mxu0
    %v1710 = vmax.f32 %v1678, 0.0
    %v1711 = vmax.f32 %v1706, 0.0
    %v1712 = vmax.f32 %v1680, 0.0
    %v1713 = vmax.f32 %v1708, 0.0
    %v1714 = vpack.c.bf16 %v1712, %v1710
    %v1715 = vpack.c.bf16 %v1713, %v1711
    %s1716 = scalar_lea.vmem [#allocation2], 1536
    %v1717 = vld [vmem:[%s1716] sm:$0xff]
    %v1718 = vld [vmem:[%s1716 + $0x8] sm:$0xff]
    %v1719 = vld [vmem:[%s1716 + $0x10] sm:$0xff]
    %v1720 = vld [vmem:[%s1716 + $0x18] sm:$0xff]
    %v1721 = vld [vmem:[%s1716 + $0x20] sm:$0xff]
    %v1722 = vld [vmem:[%s1716 + $0x28] sm:$0xff]
    %v1723 = vld [vmem:[%s1716 + $0x30] sm:$0xff]
    %v1724 = vld [vmem:[%s1716 + $0x38] sm:$0xff]
    %v1725 = vld [vmem:[%s1716 + $0x40] sm:$0xff]
    %v1726 = vld [vmem:[%s1716 + $0x48] sm:$0xff]
    %v1727 = vld [vmem:[%s1716 + $0x50] sm:$0xff]
    %v1728 = vld [vmem:[%s1716 + $0x58] sm:$0xff]
    %v1729 = vld [vmem:[%s1716 + $0x60] sm:$0xff]
    %v1730 = vld [vmem:[%s1716 + $0x68] sm:$0xff]
    %v1731 = vld [vmem:[%s1716 + $0x70] sm:$0xff]
    %v1732 = vld [vmem:[%s1716 + $0x78] sm:$0xff]
    %v1733 = vld [vmem:[%s1716 + $0x80] sm:$0xff]
    %v1734 = vld [vmem:[%s1716 + $0x88] sm:$0xff]
    %v1735 = vld [vmem:[%s1716 + $0x90] sm:$0xff]
    %v1736 = vld [vmem:[%s1716 + $0x98] sm:$0xff]
    %v1737 = vld [vmem:[%s1716 + $0xa0] sm:$0xff]
    %v1738 = vld [vmem:[%s1716 + $0xa8] sm:$0xff]
    %v1739 = vld [vmem:[%s1716 + $0xb0] sm:$0xff]
    %v1740 = vld [vmem:[%s1716 + $0xb8] sm:$0xff]
    %v1741 = vld [vmem:[%s1716 + $0xc0] sm:$0xff]
    %v1742 = vld [vmem:[%s1716 + $0xc8] sm:$0xff]
    %v1743 = vld [vmem:[%s1716 + $0xd0] sm:$0xff]
    %v1744 = vld [vmem:[%s1716 + $0xd8] sm:$0xff]
    %v1745 = vld [vmem:[%s1716 + $0xe0] sm:$0xff]
    %v1746 = vld [vmem:[%s1716 + $0xe8] sm:$0xff]
    %v1747 = vld [vmem:[%s1716 + $0xf0] sm:$0xff]
    %v1748 = vld [vmem:[%s1716 + $0xf8] sm:$0xff]
    %s1749 = scalar_lea.vmem [#allocation5], 7
    %v1750 = vld [vmem:[%s1749] ss:$8 sm:$0x3]
    %v1752 = vperm.slane %v1750, 0
    %v1753 = vperm.slane %v1750, 1
    %v1788 = vunpack.c.l.b16 %v1717
    %v1789 = vunpack.c.h.b16 %v1717
    %v1790 = vunpack.c.l.b16 %v1718
    %v1791 = vunpack.c.h.b16 %v1718
    %v1792 = vunpack.c.l.b16 %v1719
    %v1793 = vunpack.c.h.b16 %v1719
    %v1794 = vunpack.c.l.b16 %v1720
    %v1795 = vunpack.c.h.b16 %v1720
    %v1796 = vunpack.c.l.b16 %v1721
    %v1797 = vunpack.c.h.b16 %v1721
    %v1798 = vunpack.c.l.b16 %v1722
    %v1799 = vunpack.c.h.b16 %v1722
    %v1800 = vunpack.c.l.b16 %v1723
    %v1801 = vunpack.c.h.b16 %v1723
    %v1802 = vunpack.c.l.b16 %v1724
    %v1803 = vunpack.c.h.b16 %v1724
    %v1804 = vunpack.c.l.b16 %v1725
    %v1805 = vunpack.c.h.b16 %v1725
    %v1806 = vunpack.c.l.b16 %v1726
    %v1807 = vunpack.c.h.b16 %v1726
    %v1808 = vunpack.c.l.b16 %v1727
    %v1809 = vunpack.c.h.b16 %v1727
    %v1810 = vunpack.c.l.b16 %v1728
    %v1811 = vunpack.c.h.b16 %v1728
    %v1812 = vunpack.c.l.b16 %v1729
    %v1813 = vunpack.c.h.b16 %v1729
    %v1814 = vunpack.c.l.b16 %v1730
    %v1815 = vunpack.c.h.b16 %v1730
    %v1816 = vunpack.c.l.b16 %v1731
    %v1817 = vunpack.c.h.b16 %v1731
    %v1818 = vunpack.c.l.b16 %v1732
    %v1819 = vunpack.c.h.b16 %v1732
    %v1820 = vunpack.c.l.b16 %v1733
    %v1821 = vunpack.c.h.b16 %v1733
    %v1822 = vunpack.c.l.b16 %v1734
    %v1823 = vunpack.c.h.b16 %v1734
    %v1824 = vunpack.c.l.b16 %v1735
    %v1825 = vunpack.c.h.b16 %v1735
    %v1826 = vunpack.c.l.b16 %v1736
    %v1827 = vunpack.c.h.b16 %v1736
    %v1828 = vunpack.c.l.b16 %v1737
    %v1829 = vunpack.c.h.b16 %v1737
    %v1830 = vunpack.c.l.b16 %v1738
    %v1831 = vunpack.c.h.b16 %v1738
    %v1832 = vunpack.c.l.b16 %v1739
    %v1833 = vunpack.c.h.b16 %v1739
    %v1834 = vunpack.c.l.b16 %v1740
    %v1835 = vunpack.c.h.b16 %v1740
    %v1836 = vunpack.c.l.b16 %v1741
    %v1837 = vunpack.c.h.b16 %v1741
    %v1838 = vunpack.c.l.b16 %v1742
    %v1839 = vunpack.c.h.b16 %v1742
    %v1840 = vunpack.c.l.b16 %v1743
    %v1841 = vunpack.c.h.b16 %v1743
    %v1842 = vunpack.c.l.b16 %v1744
    %v1843 = vunpack.c.h.b16 %v1744
    %v1844 = vunpack.c.l.b16 %v1745
    %v1845 = vunpack.c.h.b16 %v1745
    %v1846 = vunpack.c.l.b16 %v1746
    %v1847 = vunpack.c.h.b16 %v1746
    %v1848 = vunpack.c.l.b16 %v1747
    %v1849 = vunpack.c.h.b16 %v1747
    %v1850 = vunpack.c.l.b16 %v1748
    %v1851 = vunpack.c.h.b16 %v1748
    %v1852 = vpack.c.b16 %v1790, %v1788
    %v1853 = vpack.c.b16 %v1791, %v1789
    %v1854 = vpack.c.b16 %v1794, %v1792
    %v1855 = vpack.c.b16 %v1795, %v1793
    %v1856 = vpack.c.b16 %v1798, %v1796
    %v1857 = vpack.c.b16 %v1799, %v1797
    %v1858 = vpack.c.b16 %v1802, %v1800
    %v1859 = vpack.c.b16 %v1803, %v1801
    %v1860 = vpack.c.b16 %v1806, %v1804
    %v1861 = vpack.c.b16 %v1807, %v1805
    %v1862 = vpack.c.b16 %v1810, %v1808
    %v1863 = vpack.c.b16 %v1811, %v1809
    %v1864 = vpack.c.b16 %v1814, %v1812
    %v1865 = vpack.c.b16 %v1815, %v1813
    %v1866 = vpack.c.b16 %v1818, %v1816
    %v1867 = vpack.c.b16 %v1819, %v1817
    %v1868 = vpack.c.b16 %v1822, %v1820
    %v1869 = vpack.c.b16 %v1823, %v1821
    %v1870 = vpack.c.b16 %v1826, %v1824
    %v1871 = vpack.c.b16 %v1827, %v1825
    %v1872 = vpack.c.b16 %v1830, %v1828
    %v1873 = vpack.c.b16 %v1831, %v1829
    %v1874 = vpack.c.b16 %v1834, %v1832
    %v1875 = vpack.c.b16 %v1835, %v1833
    %v1876 = vpack.c.b16 %v1838, %v1836
    %v1877 = vpack.c.b16 %v1839, %v1837
    %v1878 = vpack.c.b16 %v1842, %v1840
    %v1879 = vpack.c.b16 %v1843, %v1841
    %v1880 = vpack.c.b16 %v1846, %v1844
    %v1881 = vpack.c.b16 %v1847, %v1845
    %v1882 = vpack.c.b16 %v1850, %v1848
    %v1883 = vpack.c.b16 %v1851, %v1849
    %1916 = vmatpush.bf16.msra.mxu0 %v1866
    %1917 = vmatpush.bf16.msra.mxu0 %v1864
    %1918 = vmatpush.bf16.msra.mxu0 %v1862
    %1919 = vmatpush.bf16.msra.mxu0 %v1860
    %1920 = vmatpush.bf16.msra.mxu0 %v1858
    %1921 = vmatpush.bf16.msra.mxu0 %v1856
    %1922 = vmatpush.bf16.msra.mxu0 %v1854
    %1923 = vmatpush.bf16.msra.mxu0 %v1852
    %1924 = vmatmul.bf16.gmra.mxu0 %v1714
    %v1925 = vpop.f32.mrf.mxu0
    %v1926 = vadd.f32 %v1752, %v1925
    %v1927 = vpop.f32.mrf.mxu0
    %v1928 = vadd.f32 %v1752, %v1927
    %1929 = vdwg.mxu0
    %1930 = vmatpush.bf16.msra.mxu0 %v1882
    %1931 = vmatpush.bf16.msra.mxu0 %v1880
    %1932 = vmatpush.bf16.msra.mxu0 %v1878
    %1933 = vmatpush.bf16.msra.mxu0 %v1876
    %1934 = vmatpush.bf16.msra.mxu0 %v1874
    %1935 = vmatpush.bf16.msra.mxu0 %v1872
    %1936 = vmatpush.bf16.msra.mxu0 %v1870
    %1937 = vmatpush.bf16.msra.mxu0 %v1868
    %1938 = vmatmul.bf16.gmra.mxu0 %v1715
    %v1939 = vpop.f32.mrf.mxu0
    %v1940 = vadd.f32 %v1926, %v1939
    %v1941 = vpop.f32.mrf.mxu0
    %v1942 = vadd.f32 %v1928, %v1941
    %1943 = vdwg.mxu0
    %1944 = vmatpush.bf16.msra.mxu0 %v1867
    %1945 = vmatpush.bf16.msra.mxu0 %v1865
    %1946 = vmatpush.bf16.msra.mxu0 %v1863
    %1947 = vmatpush.bf16.msra.mxu0 %v1861
    %1948 = vmatpush.bf16.msra.mxu0 %v1859
    %1949 = vmatpush.bf16.msra.mxu0 %v1857
    %1950 = vmatpush.bf16.msra.mxu0 %v1855
    %1951 = vmatpush.bf16.msra.mxu0 %v1853
    %1952 = vmatmul.bf16.gmra.mxu0 %v1714
    %v1953 = vpop.f32.mrf.mxu0
    %v1954 = vadd.f32 %v1753, %v1953
    %v1955 = vpop.f32.mrf.mxu0
    %v1956 = vadd.f32 %v1753, %v1955
    %1957 = vdwg.mxu0
    %1958 = vmatpush.bf16.msra.mxu0 %v1883
    %1959 = vmatpush.bf16.msra.mxu0 %v1881
    %1960 = vmatpush.bf16.msra.mxu0 %v1879
    %1961 = vmatpush.bf16.msra.mxu0 %v1877
    %1962 = vmatpush.bf16.msra.mxu0 %v1875
    %1963 = vmatpush.bf16.msra.mxu0 %v1873
    %1964 = vmatpush.bf16.msra.mxu0 %v1871
    %1965 = vmatpush.bf16.msra.mxu0 %v1869
    %1966 = vmatmul.bf16.gmra.mxu0 %v1715
    %v1967 = vpop.f32.mrf.mxu0
    %v1968 = vadd.f32 %v1954, %v1967
    %v1969 = vpop.f32.mrf.mxu0
    %v1970 = vadd.f32 %v1956, %v1969
    %1971 = vdwg.mxu0
    %v1972 = vadd.f32 %v1448, %v1940
    %v1973 = vadd.f32 %v1449, %v1968
    %v1974 = vadd.f32 %v1450, %v1942
    %v1975 = vadd.f32 %v1451, %v1970
    %s1976 = scalar_lea.vmem [#allocation5], 16
    %v1977 = vld [vmem:[%s1976] ss:$8 sm:$0x3]
    %s1978 = scalar_lea.vmem [#allocation5], 17
    %v1979 = vld [vmem:[%s1978] ss:$8 sm:$0x3]
    %v1980 = vadd.f32 %v1972, %v1973
    %1981 = vadd.xlane.f32.xlu0 %v1980
    %v1982 = vpop.xlane.xlu0 %1981
    %v1983 = vadd.f32 %v1974, %v1975
    %1984 = vadd.xlane.f32.xlu0 %v1983
    %v1985 = vpop.xlane.xlu0 %1984
    %v1986 = vmul.f32 %v1982, %v1385
    %v1987 = vmul.f32 %v1985, %v1385
    %v1988 = vmul.f32 %v1972, %v1972
    %v1989 = vmul.f32 %v1973, %v1973
    %v1990 = vmul.f32 %v1974, %v1974
    %v1991 = vmul.f32 %v1975, %v1975
    %v1992 = vadd.f32 %v1988, %v1989
    %1993 = vadd.xlane.f32.xlu0 %v1992
    %v1994 = vpop.xlane.xlu0 %1993
    %v1995 = vadd.f32 %v1990, %v1991
    %1996 = vadd.xlane.f32.xlu0 %v1995
    %v1997 = vpop.xlane.xlu0 %1996
    %v1998 = vmul.f32 %v1994, %v1385
    %v1999 = vmul.f32 %v1997, %v1385
    %v2000 = vmul.f32 %v1986, %v1986
    %v2001 = vmul.f32 %v1987, %v1987
    %v2002 = vsub.f32 %v1998, %v2000
    %v2003 = vsub.f32 %v1999, %v2001
    %v2004 = vsub.f32 %v1972, %v1986
    %v2005 = vsub.f32 %v1973, %v1986
    %v2006 = vsub.f32 %v1974, %v1987
    %v2007 = vsub.f32 %v1975, %v1987
    %v2008 = vadd.f32 %v2002, 1e-05
    %v2009 = vadd.f32 %v2003, 1e-05
    %v2010 = vrsqrt.pop %v2008
    %v2011 = vmul.f32 %v2010, %v2008
    %v2012 = vmul.f32 %v2011, %v2010
    %v2013 = vmul.f32 0.5, %v2012
    %v2014 = vsub.f32 1.5, %v2013
    %v2015 = vmul.f32 %v2010, %v2014
    %vm2016 = vweird.f32 %v2008
    %vm2017 = vweird.f32 %v2010
    %vm2018 = vmor %vm2016, %vm2017
    %v2019 = vsel %vm2018, %v2010, %v2015
    %v2020 = vrsqrt.pop %v2009
    %v2021 = vmul.f32 %v2020, %v2009
    %v2022 = vmul.f32 %v2021, %v2020
    %v2023 = vmul.f32 0.5, %v2022
    %v2024 = vsub.f32 1.5, %v2023
    %v2025 = vmul.f32 %v2020, %v2024
    %vm2026 = vweird.f32 %v2009
    %vm2027 = vweird.f32 %v2020
    %vm2028 = vmor %vm2026, %vm2027
    %v2029 = vsel %vm2028, %v2020, %v2025
    %v2030 = vmul.f32 %v2004, %v2019
    %v2031 = vmul.f32 %v2005, %v2019
    %v2032 = vmul.f32 %v2006, %v2029
    %v2033 = vmul.f32 %v2007, %v2029
    %v2035 = vperm.slane %v1977, 0
    %v2036 = vperm.slane %v1977, 1
    %v2039 = vmul.f32 %v2030, %v2035
    %v2040 = vmul.f32 %v2031, %v2036
    %v2041 = vmul.f32 %v2032, %v2035
    %v2042 = vmul.f32 %v2033, %v2036
    %v2044 = vperm.slane %v1979, 0
    %v2045 = vperm.slane %v1979, 1
    %v2048 = vadd.f32 %v2039, %v2044
    %v2049 = vadd.f32 %v2040, %v2045
    %v2050 = vadd.f32 %v2041, %v2044
    %v2051 = vadd.f32 %v2042, %v2045
    %v2052 = vpack.c.bf16 %v2050, %v2048
    %v2053 = vpack.c.bf16 %v2051, %v2049
    %s2054 = scalar_lea.vmem [#allocation2], 1792
    %v2055 = vld [vmem:[%s2054] sm:$0xff]
    %v2056 = vld [vmem:[%s2054 + $0x8] sm:$0xff]
    %v2057 = vld [vmem:[%s2054 + $0x10] sm:$0xff]
    %v2058 = vld [vmem:[%s2054 + $0x18] sm:$0xff]
    %v2059 = vld [vmem:[%s2054 + $0x20] sm:$0xff]
    %v2060 = vld [vmem:[%s2054 + $0x28] sm:$0xff]
    %v2061 = vld [vmem:[%s2054 + $0x30] sm:$0xff]
    %v2062 = vld [vmem:[%s2054 + $0x38] sm:$0xff]
    %v2063 = vld [vmem:[%s2054 + $0x40] sm:$0xff]
    %v2064 = vld [vmem:[%s2054 + $0x48] sm:$0xff]
    %v2065 = vld [vmem:[%s2054 + $0x50] sm:$0xff]
    %v2066 = vld [vmem:[%s2054 + $0x58] sm:$0xff]
    %v2067 = vld [vmem:[%s2054 + $0x60] sm:$0xff]
    %v2068 = vld [vmem:[%s2054 + $0x68] sm:$0xff]
    %v2069 = vld [vmem:[%s2054 + $0x70] sm:$0xff]
    %v2070 = vld [vmem:[%s2054 + $0x78] sm:$0xff]
    %v2071 = vld [vmem:[%s2054 + $0x80] sm:$0xff]
    %v2072 = vld [vmem:[%s2054 + $0x88] sm:$0xff]
    %v2073 = vld [vmem:[%s2054 + $0x90] sm:$0xff]
    %v2074 = vld [vmem:[%s2054 + $0x98] sm:$0xff]
    %v2075 = vld [vmem:[%s2054 + $0xa0] sm:$0xff]
    %v2076 = vld [vmem:[%s2054 + $0xa8] sm:$0xff]
    %v2077 = vld [vmem:[%s2054 + $0xb0] sm:$0xff]
    %v2078 = vld [vmem:[%s2054 + $0xb8] sm:$0xff]
    %v2079 = vld [vmem:[%s2054 + $0xc0] sm:$0xff]
    %v2080 = vld [vmem:[%s2054 + $0xc8] sm:$0xff]
    %v2081 = vld [vmem:[%s2054 + $0xd0] sm:$0xff]
    %v2082 = vld [vmem:[%s2054 + $0xd8] sm:$0xff]
    %v2083 = vld [vmem:[%s2054 + $0xe0] sm:$0xff]
    %v2084 = vld [vmem:[%s2054 + $0xe8] sm:$0xff]
    %v2085 = vld [vmem:[%s2054 + $0xf0] sm:$0xff]
    %v2086 = vld [vmem:[%s2054 + $0xf8] sm:$0xff]
    %s2087 = scalar_lea.vmem [#allocation5], 18
    %v2088 = vld [vmem:[%s2087] ss:$8 sm:$0x3]
    %v2090 = vperm.slane %v2088, 0
    %v2091 = vperm.slane %v2088, 1
    %v2126 = vunpack.c.l.b16 %v2055
    %v2127 = vunpack.c.h.b16 %v2055
    %v2128 = vunpack.c.l.b16 %v2056
    %v2129 = vunpack.c.h.b16 %v2056
    %v2130 = vunpack.c.l.b16 %v2057
    %v2131 = vunpack.c.h.b16 %v2057
    %v2132 = vunpack.c.l.b16 %v2058
    %v2133 = vunpack.c.h.b16 %v2058
    %v2134 = vunpack.c.l.b16 %v2059
    %v2135 = vunpack.c.h.b16 %v2059
    %v2136 = vunpack.c.l.b16 %v2060
    %v2137 = vunpack.c.h.b16 %v2060
    %v2138 = vunpack.c.l.b16 %v2061
    %v2139 = vunpack.c.h.b16 %v2061
    %v2140 = vunpack.c.l.b16 %v2062
    %v2141 = vunpack.c.h.b16 %v2062
    %v2142 = vunpack.c.l.b16 %v2063
    %v2143 = vunpack.c.h.b16 %v2063
    %v2144 = vunpack.c.l.b16 %v2064
    %v2145 = vunpack.c.h.b16 %v2064
    %v2146 = vunpack.c.l.b16 %v2065
    %v2147 = vunpack.c.h.b16 %v2065
    %v2148 = vunpack.c.l.b16 %v2066
    %v2149 = vunpack.c.h.b16 %v2066
    %v2150 = vunpack.c.l.b16 %v2067
    %v2151 = vunpack.c.h.b16 %v2067
    %v2152 = vunpack.c.l.b16 %v2068
    %v2153 = vunpack.c.h.b16 %v2068
    %v2154 = vunpack.c.l.b16 %v2069
    %v2155 = vunpack.c.h.b16 %v2069
    %v2156 = vunpack.c.l.b16 %v2070
    %v2157 = vunpack.c.h.b16 %v2070
    %v2158 = vunpack.c.l.b16 %v2071
    %v2159 = vunpack.c.h.b16 %v2071
    %v2160 = vunpack.c.l.b16 %v2072
    %v2161 = vunpack.c.h.b16 %v2072
    %v2162 = vunpack.c.l.b16 %v2073
    %v2163 = vunpack.c.h.b16 %v2073
    %v2164 = vunpack.c.l.b16 %v2074
    %v2165 = vunpack.c.h.b16 %v2074
    %v2166 = vunpack.c.l.b16 %v2075
    %v2167 = vunpack.c.h.b16 %v2075
    %v2168 = vunpack.c.l.b16 %v2076
    %v2169 = vunpack.c.h.b16 %v2076
    %v2170 = vunpack.c.l.b16 %v2077
    %v2171 = vunpack.c.h.b16 %v2077
    %v2172 = vunpack.c.l.b16 %v2078
    %v2173 = vunpack.c.h.b16 %v2078
    %v2174 = vunpack.c.l.b16 %v2079
    %v2175 = vunpack.c.h.b16 %v2079
    %v2176 = vunpack.c.l.b16 %v2080
    %v2177 = vunpack.c.h.b16 %v2080
    %v2178 = vunpack.c.l.b16 %v2081
    %v2179 = vunpack.c.h.b16 %v2081
    %v2180 = vunpack.c.l.b16 %v2082
    %v2181 = vunpack.c.h.b16 %v2082
    %v2182 = vunpack.c.l.b16 %v2083
    %v2183 = vunpack.c.h.b16 %v2083
    %v2184 = vunpack.c.l.b16 %v2084
    %v2185 = vunpack.c.h.b16 %v2084
    %v2186 = vunpack.c.l.b16 %v2085
    %v2187 = vunpack.c.h.b16 %v2085
    %v2188 = vunpack.c.l.b16 %v2086
    %v2189 = vunpack.c.h.b16 %v2086
    %v2190 = vpack.c.b16 %v2128, %v2126
    %v2191 = vpack.c.b16 %v2129, %v2127
    %v2192 = vpack.c.b16 %v2132, %v2130
    %v2193 = vpack.c.b16 %v2133, %v2131
    %v2194 = vpack.c.b16 %v2136, %v2134
    %v2195 = vpack.c.b16 %v2137, %v2135
    %v2196 = vpack.c.b16 %v2140, %v2138
    %v2197 = vpack.c.b16 %v2141, %v2139
    %v2198 = vpack.c.b16 %v2144, %v2142
    %v2199 = vpack.c.b16 %v2145, %v2143
    %v2200 = vpack.c.b16 %v2148, %v2146
    %v2201 = vpack.c.b16 %v2149, %v2147
    %v2202 = vpack.c.b16 %v2152, %v2150
    %v2203 = vpack.c.b16 %v2153, %v2151
    %v2204 = vpack.c.b16 %v2156, %v2154
    %v2205 = vpack.c.b16 %v2157, %v2155
    %v2206 = vpack.c.b16 %v2160, %v2158
    %v2207 = vpack.c.b16 %v2161, %v2159
    %v2208 = vpack.c.b16 %v2164, %v2162
    %v2209 = vpack.c.b16 %v2165, %v2163
    %v2210 = vpack.c.b16 %v2168, %v2166
    %v2211 = vpack.c.b16 %v2169, %v2167
    %v2212 = vpack.c.b16 %v2172, %v2170
    %v2213 = vpack.c.b16 %v2173, %v2171
    %v2214 = vpack.c.b16 %v2176, %v2174
    %v2215 = vpack.c.b16 %v2177, %v2175
    %v2216 = vpack.c.b16 %v2180, %v2178
    %v2217 = vpack.c.b16 %v2181, %v2179
    %v2218 = vpack.c.b16 %v2184, %v2182
    %v2219 = vpack.c.b16 %v2185, %v2183
    %v2220 = vpack.c.b16 %v2188, %v2186
    %v2221 = vpack.c.b16 %v2189, %v2187
    %2254 = vmatpush.bf16.msra.mxu0 %v2204
    %2255 = vmatpush.bf16.msra.mxu0 %v2202
    %2256 = vmatpush.bf16.msra.mxu0 %v2200
    %2257 = vmatpush.bf16.msra.mxu0 %v2198
    %2258 = vmatpush.bf16.msra.mxu0 %v2196
    %2259 = vmatpush.bf16.msra.mxu0 %v2194
    %2260 = vmatpush.bf16.msra.mxu0 %v2192
    %2261 = vmatpush.bf16.msra.mxu0 %v2190
    %2262 = vmatmul.bf16.gmra.mxu0 %v2052
    %v2263 = vpop.f32.mrf.mxu0
    %v2264 = vadd.f32 %v2090, %v2263
    %v2265 = vpop.f32.mrf.mxu0
    %v2266 = vadd.f32 %v2090, %v2265
    %2267 = vdwg.mxu0
    %2268 = vmatpush.bf16.msra.mxu0 %v2220
    %2269 = vmatpush.bf16.msra.mxu0 %v2218
    %2270 = vmatpush.bf16.msra.mxu0 %v2216
    %2271 = vmatpush.bf16.msra.mxu0 %v2214
    %2272 = vmatpush.bf16.msra.mxu0 %v2212
    %2273 = vmatpush.bf16.msra.mxu0 %v2210
    %2274 = vmatpush.bf16.msra.mxu0 %v2208
    %2275 = vmatpush.bf16.msra.mxu0 %v2206
    %2276 = vmatmul.bf16.gmra.mxu0 %v2053
    %v2277 = vpop.f32.mrf.mxu0
    %v2278 = vadd.f32 %v2264, %v2277
    %v2279 = vpop.f32.mrf.mxu0
    %v2280 = vadd.f32 %v2266, %v2279
    %2281 = vdwg.mxu0
    %2282 = vmatpush.bf16.msra.mxu0 %v2205
    %2283 = vmatpush.bf16.msra.mxu0 %v2203
    %2284 = vmatpush.bf16.msra.mxu0 %v2201
    %2285 = vmatpush.bf16.msra.mxu0 %v2199
    %2286 = vmatpush.bf16.msra.mxu0 %v2197
    %2287 = vmatpush.bf16.msra.mxu0 %v2195
    %2288 = vmatpush.bf16.msra.mxu0 %v2193
    %2289 = vmatpush.bf16.msra.mxu0 %v2191
    %2290 = vmatmul.bf16.gmra.mxu0 %v2052
    %v2291 = vpop.f32.mrf.mxu0
    %v2292 = vadd.f32 %v2091, %v2291
    %v2293 = vpop.f32.mrf.mxu0
    %v2294 = vadd.f32 %v2091, %v2293
    %2295 = vdwg.mxu0
    %2296 = vmatpush.bf16.msra.mxu0 %v2221
    %2297 = vmatpush.bf16.msra.mxu0 %v2219
    %2298 = vmatpush.bf16.msra.mxu0 %v2217
    %2299 = vmatpush.bf16.msra.mxu0 %v2215
    %2300 = vmatpush.bf16.msra.mxu0 %v2213
    %2301 = vmatpush.bf16.msra.mxu0 %v2211
    %2302 = vmatpush.bf16.msra.mxu0 %v2209
    %2303 = vmatpush.bf16.msra.mxu0 %v2207
    %2304 = vmatmul.bf16.gmra.mxu0 %v2053
    %v2305 = vpop.f32.mrf.mxu0
    %v2306 = vadd.f32 %v2292, %v2305
    %v2307 = vpop.f32.mrf.mxu0
    %v2308 = vadd.f32 %v2294, %v2307
    %2309 = vdwg.mxu0
    %v2310 = vpack.c.bf16 %v2306, %v2278
    %v2311 = vpack.c.bf16 %v2308, %v2280
    %s2312 = scalar_lea.vmem [#allocation2], 2048
    %v2313 = vld [vmem:[%s2312] sm:$0xff]
    %v2314 = vld [vmem:[%s2312 + $0x8] sm:$0xff]
    %v2315 = vld [vmem:[%s2312 + $0x10] sm:$0xff]
    %v2316 = vld [vmem:[%s2312 + $0x18] sm:$0xff]
    %v2317 = vld [vmem:[%s2312 + $0x20] sm:$0xff]
    %v2318 = vld [vmem:[%s2312 + $0x28] sm:$0xff]
    %v2319 = vld [vmem:[%s2312 + $0x30] sm:$0xff]
    %v2320 = vld [vmem:[%s2312 + $0x38] sm:$0xff]
    %v2321 = vld [vmem:[%s2312 + $0x40] sm:$0xff]
    %v2322 = vld [vmem:[%s2312 + $0x48] sm:$0xff]
    %v2323 = vld [vmem:[%s2312 + $0x50] sm:$0xff]
    %v2324 = vld [vmem:[%s2312 + $0x58] sm:$0xff]
    %v2325 = vld [vmem:[%s2312 + $0x60] sm:$0xff]
    %v2326 = vld [vmem:[%s2312 + $0x68] sm:$0xff]
    %v2327 = vld [vmem:[%s2312 + $0x70] sm:$0xff]
    %v2328 = vld [vmem:[%s2312 + $0x78] sm:$0xff]
    %v2329 = vld [vmem:[%s2312 + $0x80] sm:$0xff]
    %v2330 = vld [vmem:[%s2312 + $0x88] sm:$0xff]
    %v2331 = vld [vmem:[%s2312 + $0x90] sm:$0xff]
    %v2332 = vld [vmem:[%s2312 + $0x98] sm:$0xff]
    %v2333 = vld [vmem:[%s2312 + $0xa0] sm:$0xff]
    %v2334 = vld [vmem:[%s2312 + $0xa8] sm:$0xff]
    %v2335 = vld [vmem:[%s2312 + $0xb0] sm:$0xff]
    %v2336 = vld [vmem:[%s2312 + $0xb8] sm:$0xff]
    %v2337 = vld [vmem:[%s2312 + $0xc0] sm:$0xff]
    %v2338 = vld [vmem:[%s2312 + $0xc8] sm:$0xff]
    %v2339 = vld [vmem:[%s2312 + $0xd0] sm:$0xff]
    %v2340 = vld [vmem:[%s2312 + $0xd8] sm:$0xff]
    %v2341 = vld [vmem:[%s2312 + $0xe0] sm:$0xff]
    %v2342 = vld [vmem:[%s2312 + $0xe8] sm:$0xff]
    %v2343 = vld [vmem:[%s2312 + $0xf0] sm:$0xff]
    %v2344 = vld [vmem:[%s2312 + $0xf8] sm:$0xff]
    %s2345 = scalar_lea.vmem [#allocation5], 19
    %v2346 = vld [vmem:[%s2345] ss:$8 sm:$0x3]
    %v2348 = vperm.slane %v2346, 0
    %v2349 = vperm.slane %v2346, 1
    %v2384 = vunpack.c.l.b16 %v2313
    %v2385 = vunpack.c.h.b16 %v2313
    %v2386 = vunpack.c.l.b16 %v2314
    %v2387 = vunpack.c.h.b16 %v2314
    %v2388 = vunpack.c.l.b16 %v2315
    %v2389 = vunpack.c.h.b16 %v2315
    %v2390 = vunpack.c.l.b16 %v2316
    %v2391 = vunpack.c.h.b16 %v2316
    %v2392 = vunpack.c.l.b16 %v2317
    %v2393 = vunpack.c.h.b16 %v2317
    %v2394 = vunpack.c.l.b16 %v2318
    %v2395 = vunpack.c.h.b16 %v2318
    %v2396 = vunpack.c.l.b16 %v2319
    %v2397 = vunpack.c.h.b16 %v2319
    %v2398 = vunpack.c.l.b16 %v2320
    %v2399 = vunpack.c.h.b16 %v2320
    %v2400 = vunpack.c.l.b16 %v2321
    %v2401 = vunpack.c.h.b16 %v2321
    %v2402 = vunpack.c.l.b16 %v2322
    %v2403 = vunpack.c.h.b16 %v2322
    %v2404 = vunpack.c.l.b16 %v2323
    %v2405 = vunpack.c.h.b16 %v2323
    %v2406 = vunpack.c.l.b16 %v2324
    %v2407 = vunpack.c.h.b16 %v2324
    %v2408 = vunpack.c.l.b16 %v2325
    %v2409 = vunpack.c.h.b16 %v2325
    %v2410 = vunpack.c.l.b16 %v2326
    %v2411 = vunpack.c.h.b16 %v2326
    %v2412 = vunpack.c.l.b16 %v2327
    %v2413 = vunpack.c.h.b16 %v2327
    %v2414 = vunpack.c.l.b16 %v2328
    %v2415 = vunpack.c.h.b16 %v2328
    %v2416 = vunpack.c.l.b16 %v2329
    %v2417 = vunpack.c.h.b16 %v2329
    %v2418 = vunpack.c.l.b16 %v2330
    %v2419 = vunpack.c.h.b16 %v2330
    %v2420 = vunpack.c.l.b16 %v2331
    %v2421 = vunpack.c.h.b16 %v2331
    %v2422 = vunpack.c.l.b16 %v2332
    %v2423 = vunpack.c.h.b16 %v2332
    %v2424 = vunpack.c.l.b16 %v2333
    %v2425 = vunpack.c.h.b16 %v2333
    %v2426 = vunpack.c.l.b16 %v2334
    %v2427 = vunpack.c.h.b16 %v2334
    %v2428 = vunpack.c.l.b16 %v2335
    %v2429 = vunpack.c.h.b16 %v2335
    %v2430 = vunpack.c.l.b16 %v2336
    %v2431 = vunpack.c.h.b16 %v2336
    %v2432 = vunpack.c.l.b16 %v2337
    %v2433 = vunpack.c.h.b16 %v2337
    %v2434 = vunpack.c.l.b16 %v2338
    %v2435 = vunpack.c.h.b16 %v2338
    %v2436 = vunpack.c.l.b16 %v2339
    %v2437 = vunpack.c.h.b16 %v2339
    %v2438 = vunpack.c.l.b16 %v2340
    %v2439 = vunpack.c.h.b16 %v2340
    %v2440 = vunpack.c.l.b16 %v2341
    %v2441 = vunpack.c.h.b16 %v2341
    %v2442 = vunpack.c.l.b16 %v2342
    %v2443 = vunpack.c.h.b16 %v2342
    %v2444 = vunpack.c.l.b16 %v2343
    %v2445 = vunpack.c.h.b16 %v2343
    %v2446 = vunpack.c.l.b16 %v2344
    %v2447 = vunpack.c.h.b16 %v2344
    %v2448 = vpack.c.b16 %v2386, %v2384
    %v2449 = vpack.c.b16 %v2387, %v2385
    %v2450 = vpack.c.b16 %v2390, %v2388
    %v2451 = vpack.c.b16 %v2391, %v2389
    %v2452 = vpack.c.b16 %v2394, %v2392
    %v2453 = vpack.c.b16 %v2395, %v2393
    %v2454 = vpack.c.b16 %v2398, %v2396
    %v2455 = vpack.c.b16 %v2399, %v2397
    %v2456 = vpack.c.b16 %v2402, %v2400
    %v2457 = vpack.c.b16 %v2403, %v2401
    %v2458 = vpack.c.b16 %v2406, %v2404
    %v2459 = vpack.c.b16 %v2407, %v2405
    %v2460 = vpack.c.b16 %v2410, %v2408
    %v2461 = vpack.c.b16 %v2411, %v2409
    %v2462 = vpack.c.b16 %v2414, %v2412
    %v2463 = vpack.c.b16 %v2415, %v2413
    %v2464 = vpack.c.b16 %v2418, %v2416
    %v2465 = vpack.c.b16 %v2419, %v2417
    %v2466 = vpack.c.b16 %v2422, %v2420
    %v2467 = vpack.c.b16 %v2423, %v2421
    %v2468 = vpack.c.b16 %v2426, %v2424
    %v2469 = vpack.c.b16 %v2427, %v2425
    %v2470 = vpack.c.b16 %v2430, %v2428
    %v2471 = vpack.c.b16 %v2431, %v2429
    %v2472 = vpack.c.b16 %v2434, %v2432
    %v2473 = vpack.c.b16 %v2435, %v2433
    %v2474 = vpack.c.b16 %v2438, %v2436
    %v2475 = vpack.c.b16 %v2439, %v2437
    %v2476 = vpack.c.b16 %v2442, %v2440
    %v2477 = vpack.c.b16 %v2443, %v2441
    %v2478 = vpack.c.b16 %v2446, %v2444
    %v2479 = vpack.c.b16 %v2447, %v2445
    %2512 = vmatpush.bf16.msra.mxu0 %v2462
    %2513 = vmatpush.bf16.msra.mxu0 %v2460
    %2514 = vmatpush.bf16.msra.mxu0 %v2458
    %2515 = vmatpush.bf16.msra.mxu0 %v2456
    %2516 = vmatpush.bf16.msra.mxu0 %v2454
    %2517 = vmatpush.bf16.msra.mxu0 %v2452
    %2518 = vmatpush.bf16.msra.mxu0 %v2450
    %2519 = vmatpush.bf16.msra.mxu0 %v2448
    %2520 = vmatmul.bf16.gmra.mxu0 %v2052
    %v2521 = vpop.f32.mrf.mxu0
    %v2522 = vadd.f32 %v2348, %v2521
    %v2523 = vpop.f32.mrf.mxu0
    %v2524 = vadd.f32 %v2348, %v2523
    %2525 = vdwg.mxu0
    %2526 = vmatpush.bf16.msra.mxu0 %v2478
    %2527 = vmatpush.bf16.msra.mxu0 %v2476
    %2528 = vmatpush.bf16.msra.mxu0 %v2474
    %2529 = vmatpush.bf16.msra.mxu0 %v2472
    %2530 = vmatpush.bf16.msra.mxu0 %v2470
    %2531 = vmatpush.bf16.msra.mxu0 %v2468
    %2532 = vmatpush.bf16.msra.mxu0 %v2466
    %2533 = vmatpush.bf16.msra.mxu0 %v2464
    %2534 = vmatmul.bf16.gmra.mxu0 %v2053
    %v2535 = vpop.f32.mrf.mxu0
    %v2536 = vadd.f32 %v2522, %v2535
    %v2537 = vpop.f32.mrf.mxu0
    %v2538 = vadd.f32 %v2524, %v2537
    %2539 = vdwg.mxu0
    %2540 = vmatpush.bf16.msra.mxu0 %v2463
    %2541 = vmatpush.bf16.msra.mxu0 %v2461
    %2542 = vmatpush.bf16.msra.mxu0 %v2459
    %2543 = vmatpush.bf16.msra.mxu0 %v2457
    %2544 = vmatpush.bf16.msra.mxu0 %v2455
    %2545 = vmatpush.bf16.msra.mxu0 %v2453
    %2546 = vmatpush.bf16.msra.mxu0 %v2451
    %2547 = vmatpush.bf16.msra.mxu0 %v2449
    %2548 = vmatmul.bf16.gmra.mxu0 %v2052
    %v2549 = vpop.f32.mrf.mxu0
    %v2550 = vadd.f32 %v2349, %v2549
    %v2551 = vpop.f32.mrf.mxu0
    %v2552 = vadd.f32 %v2349, %v2551
    %2553 = vdwg.mxu0
    %2554 = vmatpush.bf16.msra.mxu0 %v2479
    %2555 = vmatpush.bf16.msra.mxu0 %v2477
    %2556 = vmatpush.bf16.msra.mxu0 %v2475
    %2557 = vmatpush.bf16.msra.mxu0 %v2473
    %2558 = vmatpush.bf16.msra.mxu0 %v2471
    %2559 = vmatpush.bf16.msra.mxu0 %v2469
    %2560 = vmatpush.bf16.msra.mxu0 %v2467
    %2561 = vmatpush.bf16.msra.mxu0 %v2465
    %2562 = vmatmul.bf16.gmra.mxu0 %v2053
    %v2563 = vpop.f32.mrf.mxu0
    %v2564 = vadd.f32 %v2550, %v2563
    %v2565 = vpop.f32.mrf.mxu0
    %v2566 = vadd.f32 %v2552, %v2565
    %2567 = vdwg.mxu0
    %v2568 = vpack.c.bf16 %v2564, %v2536
    %v2569 = vpack.c.bf16 %v2566, %v2538
    %s2570 = scalar_lea.vmem [#allocation2], 2304
    %v2571 = vld [vmem:[%s2570] sm:$0xff]
    %v2572 = vld [vmem:[%s2570 + $0x8] sm:$0xff]
    %v2573 = vld [vmem:[%s2570 + $0x10] sm:$0xff]
    %v2574 = vld [vmem:[%s2570 + $0x18] sm:$0xff]
    %v2575 = vld [vmem:[%s2570 + $0x20] sm:$0xff]
    %v2576 = vld [vmem:[%s2570 + $0x28] sm:$0xff]
    %v2577 = vld [vmem:[%s2570 + $0x30] sm:$0xff]
    %v2578 = vld [vmem:[%s2570 + $0x38] sm:$0xff]
    %v2579 = vld [vmem:[%s2570 + $0x40] sm:$0xff]
    %v2580 = vld [vmem:[%s2570 + $0x48] sm:$0xff]
    %v2581 = vld [vmem:[%s2570 + $0x50] sm:$0xff]
    %v2582 = vld [vmem:[%s2570 + $0x58] sm:$0xff]
    %v2583 = vld [vmem:[%s2570 + $0x60] sm:$0xff]
    %v2584 = vld [vmem:[%s2570 + $0x68] sm:$0xff]
    %v2585 = vld [vmem:[%s2570 + $0x70] sm:$0xff]
    %v2586 = vld [vmem:[%s2570 + $0x78] sm:$0xff]
    %v2587 = vld [vmem:[%s2570 + $0x80] sm:$0xff]
    %v2588 = vld [vmem:[%s2570 + $0x88] sm:$0xff]
    %v2589 = vld [vmem:[%s2570 + $0x90] sm:$0xff]
    %v2590 = vld [vmem:[%s2570 + $0x98] sm:$0xff]
    %v2591 = vld [vmem:[%s2570 + $0xa0] sm:$0xff]
    %v2592 = vld [vmem:[%s2570 + $0xa8] sm:$0xff]
    %v2593 = vld [vmem:[%s2570 + $0xb0] sm:$0xff]
    %v2594 = vld [vmem:[%s2570 + $0xb8] sm:$0xff]
    %v2595 = vld [vmem:[%s2570 + $0xc0] sm:$0xff]
    %v2596 = vld [vmem:[%s2570 + $0xc8] sm:$0xff]
    %v2597 = vld [vmem:[%s2570 + $0xd0] sm:$0xff]
    %v2598 = vld [vmem:[%s2570 + $0xd8] sm:$0xff]
    %v2599 = vld [vmem:[%s2570 + $0xe0] sm:$0xff]
    %v2600 = vld [vmem:[%s2570 + $0xe8] sm:$0xff]
    %v2601 = vld [vmem:[%s2570 + $0xf0] sm:$0xff]
    %v2602 = vld [vmem:[%s2570 + $0xf8] sm:$0xff]
    %s2603 = scalar_lea.vmem [#allocation5], 20
    %v2604 = vld [vmem:[%s2603] ss:$8 sm:$0x3]
    %v2606 = vperm.slane %v2604, 0
    %v2607 = vperm.slane %v2604, 1
    %v2642 = vunpack.c.l.b16 %v2571
    %v2643 = vunpack.c.h.b16 %v2571
    %v2644 = vunpack.c.l.b16 %v2572
    %v2645 = vunpack.c.h.b16 %v2572
    %v2646 = vunpack.c.l.b16 %v2573
    %v2647 = vunpack.c.h.b16 %v2573
    %v2648 = vunpack.c.l.b16 %v2574
    %v2649 = vunpack.c.h.b16 %v2574
    %v2650 = vunpack.c.l.b16 %v2575
    %v2651 = vunpack.c.h.b16 %v2575
    %v2652 = vunpack.c.l.b16 %v2576
    %v2653 = vunpack.c.h.b16 %v2576
    %v2654 = vunpack.c.l.b16 %v2577
    %v2655 = vunpack.c.h.b16 %v2577
    %v2656 = vunpack.c.l.b16 %v2578
    %v2657 = vunpack.c.h.b16 %v2578
    %v2658 = vunpack.c.l.b16 %v2579
    %v2659 = vunpack.c.h.b16 %v2579
    %v2660 = vunpack.c.l.b16 %v2580
    %v2661 = vunpack.c.h.b16 %v2580
    %v2662 = vunpack.c.l.b16 %v2581
    %v2663 = vunpack.c.h.b16 %v2581
    %v2664 = vunpack.c.l.b16 %v2582
    %v2665 = vunpack.c.h.b16 %v2582
    %v2666 = vunpack.c.l.b16 %v2583
    %v2667 = vunpack.c.h.b16 %v2583
    %v2668 = vunpack.c.l.b16 %v2584
    %v2669 = vunpack.c.h.b16 %v2584
    %v2670 = vunpack.c.l.b16 %v2585
    %v2671 = vunpack.c.h.b16 %v2585
    %v2672 = vunpack.c.l.b16 %v2586
    %v2673 = vunpack.c.h.b16 %v2586
    %v2674 = vunpack.c.l.b16 %v2587
    %v2675 = vunpack.c.h.b16 %v2587
    %v2676 = vunpack.c.l.b16 %v2588
    %v2677 = vunpack.c.h.b16 %v2588
    %v2678 = vunpack.c.l.b16 %v2589
    %v2679 = vunpack.c.h.b16 %v2589
    %v2680 = vunpack.c.l.b16 %v2590
    %v2681 = vunpack.c.h.b16 %v2590
    %v2682 = vunpack.c.l.b16 %v2591
    %v2683 = vunpack.c.h.b16 %v2591
    %v2684 = vunpack.c.l.b16 %v2592
    %v2685 = vunpack.c.h.b16 %v2592
    %v2686 = vunpack.c.l.b16 %v2593
    %v2687 = vunpack.c.h.b16 %v2593
    %v2688 = vunpack.c.l.b16 %v2594
    %v2689 = vunpack.c.h.b16 %v2594
    %v2690 = vunpack.c.l.b16 %v2595
    %v2691 = vunpack.c.h.b16 %v2595
    %v2692 = vunpack.c.l.b16 %v2596
    %v2693 = vunpack.c.h.b16 %v2596
    %v2694 = vunpack.c.l.b16 %v2597
    %v2695 = vunpack.c.h.b16 %v2597
    %v2696 = vunpack.c.l.b16 %v2598
    %v2697 = vunpack.c.h.b16 %v2598
    %v2698 = vunpack.c.l.b16 %v2599
    %v2699 = vunpack.c.h.b16 %v2599
    %v2700 = vunpack.c.l.b16 %v2600
    %v2701 = vunpack.c.h.b16 %v2600
    %v2702 = vunpack.c.l.b16 %v2601
    %v2703 = vunpack.c.h.b16 %v2601
    %v2704 = vunpack.c.l.b16 %v2602
    %v2705 = vunpack.c.h.b16 %v2602
    %v2706 = vpack.c.b16 %v2644, %v2642
    %v2707 = vpack.c.b16 %v2645, %v2643
    %v2708 = vpack.c.b16 %v2648, %v2646
    %v2709 = vpack.c.b16 %v2649, %v2647
    %v2710 = vpack.c.b16 %v2652, %v2650
    %v2711 = vpack.c.b16 %v2653, %v2651
    %v2712 = vpack.c.b16 %v2656, %v2654
    %v2713 = vpack.c.b16 %v2657, %v2655
    %v2714 = vpack.c.b16 %v2660, %v2658
    %v2715 = vpack.c.b16 %v2661, %v2659
    %v2716 = vpack.c.b16 %v2664, %v2662
    %v2717 = vpack.c.b16 %v2665, %v2663
    %v2718 = vpack.c.b16 %v2668, %v2666
    %v2719 = vpack.c.b16 %v2669, %v2667
    %v2720 = vpack.c.b16 %v2672, %v2670
    %v2721 = vpack.c.b16 %v2673, %v2671
    %v2722 = vpack.c.b16 %v2676, %v2674
    %v2723 = vpack.c.b16 %v2677, %v2675
    %v2724 = vpack.c.b16 %v2680, %v2678
    %v2725 = vpack.c.b16 %v2681, %v2679
    %v2726 = vpack.c.b16 %v2684, %v2682
    %v2727 = vpack.c.b16 %v2685, %v2683
    %v2728 = vpack.c.b16 %v2688, %v2686
    %v2729 = vpack.c.b16 %v2689, %v2687
    %v2730 = vpack.c.b16 %v2692, %v2690
    %v2731 = vpack.c.b16 %v2693, %v2691
    %v2732 = vpack.c.b16 %v2696, %v2694
    %v2733 = vpack.c.b16 %v2697, %v2695
    %v2734 = vpack.c.b16 %v2700, %v2698
    %v2735 = vpack.c.b16 %v2701, %v2699
    %v2736 = vpack.c.b16 %v2704, %v2702
    %v2737 = vpack.c.b16 %v2705, %v2703
    %2770 = vmatpush.bf16.msra.mxu0 %v2720
    %2771 = vmatpush.bf16.msra.mxu0 %v2718
    %2772 = vmatpush.bf16.msra.mxu0 %v2716
    %2773 = vmatpush.bf16.msra.mxu0 %v2714
    %2774 = vmatpush.bf16.msra.mxu0 %v2712
    %2775 = vmatpush.bf16.msra.mxu0 %v2710
    %2776 = vmatpush.bf16.msra.mxu0 %v2708
    %2777 = vmatpush.bf16.msra.mxu0 %v2706
    %2778 = vmatmul.bf16.gmra.mxu0 %v2052
    %v2779 = vpop.f32.mrf.mxu0
    %v2780 = vadd.f32 %v2606, %v2779
    %v2781 = vpop.f32.mrf.mxu0
    %v2782 = vadd.f32 %v2606, %v2781
    %2783 = vdwg.mxu0
    %2784 = vmatpush.bf16.msra.mxu0 %v2736
    %2785 = vmatpush.bf16.msra.mxu0 %v2734
    %2786 = vmatpush.bf16.msra.mxu0 %v2732
    %2787 = vmatpush.bf16.msra.mxu0 %v2730
    %2788 = vmatpush.bf16.msra.mxu0 %v2728
    %2789 = vmatpush.bf16.msra.mxu0 %v2726
    %2790 = vmatpush.bf16.msra.mxu0 %v2724
    %2791 = vmatpush.bf16.msra.mxu0 %v2722
    %2792 = vmatmul.bf16.gmra.mxu0 %v2053
    %v2793 = vpop.f32.mrf.mxu0
    %v2794 = vadd.f32 %v2780, %v2793
    %v2795 = vpop.f32.mrf.mxu0
    %v2796 = vadd.f32 %v2782, %v2795
    %2797 = vdwg.mxu0
    %2798 = vmatpush.bf16.msra.mxu0 %v2721
    %2799 = vmatpush.bf16.msra.mxu0 %v2719
    %2800 = vmatpush.bf16.msra.mxu0 %v2717
    %2801 = vmatpush.bf16.msra.mxu0 %v2715
    %2802 = vmatpush.bf16.msra.mxu0 %v2713
    %2803 = vmatpush.bf16.msra.mxu0 %v2711
    %2804 = vmatpush.bf16.msra.mxu0 %v2709
    %2805 = vmatpush.bf16.msra.mxu0 %v2707
    %2806 = vmatmul.bf16.gmra.mxu0 %v2052
    %v2807 = vpop.f32.mrf.mxu0
    %v2808 = vadd.f32 %v2607, %v2807
    %v2809 = vpop.f32.mrf.mxu0
    %v2810 = vadd.f32 %v2607, %v2809
    %2811 = vdwg.mxu0
    %2812 = vmatpush.bf16.msra.mxu0 %v2737
    %2813 = vmatpush.bf16.msra.mxu0 %v2735
    %2814 = vmatpush.bf16.msra.mxu0 %v2733
    %2815 = vmatpush.bf16.msra.mxu0 %v2731
    %2816 = vmatpush.bf16.msra.mxu0 %v2729
    %2817 = vmatpush.bf16.msra.mxu0 %v2727
    %2818 = vmatpush.bf16.msra.mxu0 %v2725
    %2819 = vmatpush.bf16.msra.mxu0 %v2723
    %2820 = vmatmul.bf16.gmra.mxu0 %v2053
    %v2821 = vpop.f32.mrf.mxu0
    %v2822 = vadd.f32 %v2808, %v2821
    %v2823 = vpop.f32.mrf.mxu0
    %v2824 = vadd.f32 %v2810, %v2823
    %2825 = vdwg.mxu0
    %v2826 = vpack.c.bf16 %v2822, %v2794
    %v2827 = vpack.c.bf16 %v2824, %v2796
    %s2828 = scalar_lea.vmem [#allocation2], 2560
    %v2829 = vld [vmem:[%s2828] sm:$0xff]
    %v2830 = vld [vmem:[%s2828 + $0x8] sm:$0xff]
    %v2831 = vld [vmem:[%s2828 + $0x10] sm:$0xff]
    %v2832 = vld [vmem:[%s2828 + $0x18] sm:$0xff]
    %v2833 = vld [vmem:[%s2828 + $0x20] sm:$0xff]
    %v2834 = vld [vmem:[%s2828 + $0x28] sm:$0xff]
    %v2835 = vld [vmem:[%s2828 + $0x30] sm:$0xff]
    %v2836 = vld [vmem:[%s2828 + $0x38] sm:$0xff]
    %v2837 = vld [vmem:[%s2828 + $0x40] sm:$0xff]
    %v2838 = vld [vmem:[%s2828 + $0x48] sm:$0xff]
    %v2839 = vld [vmem:[%s2828 + $0x50] sm:$0xff]
    %v2840 = vld [vmem:[%s2828 + $0x58] sm:$0xff]
    %v2841 = vld [vmem:[%s2828 + $0x60] sm:$0xff]
    %v2842 = vld [vmem:[%s2828 + $0x68] sm:$0xff]
    %v2843 = vld [vmem:[%s2828 + $0x70] sm:$0xff]
    %v2844 = vld [vmem:[%s2828 + $0x78] sm:$0xff]
    %v2845 = vld [vmem:[%s2828 + $0x80] sm:$0xff]
    %v2846 = vld [vmem:[%s2828 + $0x88] sm:$0xff]
    %v2847 = vld [vmem:[%s2828 + $0x90] sm:$0xff]
    %v2848 = vld [vmem:[%s2828 + $0x98] sm:$0xff]
    %v2849 = vld [vmem:[%s2828 + $0xa0] sm:$0xff]
    %v2850 = vld [vmem:[%s2828 + $0xa8] sm:$0xff]
    %v2851 = vld [vmem:[%s2828 + $0xb0] sm:$0xff]
    %v2852 = vld [vmem:[%s2828 + $0xb8] sm:$0xff]
    %v2853 = vld [vmem:[%s2828 + $0xc0] sm:$0xff]
    %v2854 = vld [vmem:[%s2828 + $0xc8] sm:$0xff]
    %v2855 = vld [vmem:[%s2828 + $0xd0] sm:$0xff]
    %v2856 = vld [vmem:[%s2828 + $0xd8] sm:$0xff]
    %v2857 = vld [vmem:[%s2828 + $0xe0] sm:$0xff]
    %v2858 = vld [vmem:[%s2828 + $0xe8] sm:$0xff]
    %v2859 = vld [vmem:[%s2828 + $0xf0] sm:$0xff]
    %v2860 = vld [vmem:[%s2828 + $0xf8] sm:$0xff]
    %s2861 = scalar_lea.vmem [#allocation5], 21
    %v2862 = vld [vmem:[%s2861] ss:$8 sm:$0x3]
    %v2865 = vunpack.c.l.b16 %v2310
    %v2866 = vunpack.c.l.b16 %v2311
    %v2867 = vpack.c.b16 %v2866, %v2865
    %v2871 = vunpack.c.l.b16 %v2568
    %v2872 = vunpack.c.l.b16 %v2569
    %v2873 = vpack.c.b16 %v2872, %v2871
    %2875 = vmatpush.bf16.xpose.msra.mxu0 0
    %2876 = vmatpush.bf16.xpose.msra.mxu0 0
    %2877 = vmatpush.bf16.xpose.msra.mxu0 0
    %2878 = vmatpush.bf16.xpose.msra.mxu0 0
    %2879 = vmatpush.bf16.xpose.msra.mxu0 0
    %2880 = vmatpush.bf16.xpose.msra.mxu0 0
    %2881 = vmatpush.bf16.xpose.msra.mxu0 0
    %2882 = vmatpush.bf16.xpose.msra.mxu0 %v2873
    %2883 = vmatmul.bf16.gmra.mxu0 %v2867
    %v2884 = vpop.f32.mrf.mxu0
    %v2885 = vadd.f32 %v53, %v2884
    %v2886 = vpop.f32.mrf.mxu0
    %v2887 = vadd.f32 %v54, %v2886
    %2888 = vdwg.mxu0
    %v2889 = vsel %vm1021, %v2885, -inf
    %2890 = vmax.xlane.f32.xlu0 %v2889
    %v2891 = vpop.xlane.xlu0 %2890
    %v2892 = vsel %vm1021, %v2887, -inf
    %2893 = vmax.xlane.f32.xlu0 %v2892
    %v2894 = vpop.xlane.xlu0 %2893
    %v2895 = vsub.f32 %v2885, %v2891
    %v2896 = vsub.f32 %v2887, %v2894
    %v2897 = vmul.f32 %v2895, 1.442695
    %v2898 = vpow.pop %v2897
    %v2899 = vmul.f32 %v2896, 1.442695
    %v2900 = vpow.pop %v2899
    %v2901 = vsel %vm1021, %v2898, 0.0
    %2902 = vadd.xlane.f32.xlu0 %v2901
    %v2903 = vpop.xlane.xlu0 %2902
    %v2904 = vsel %vm1021, %v2900, 0.0
    %2905 = vadd.xlane.f32.xlu0 %v2904
    %v2906 = vpop.xlane.xlu0 %2905
    %v2907 = vrcp.pop %v2903
    %v2908 = vrcp.pop %v2906
    %v2909 = vmul.f32 %v2898, %v2907
    %v2910 = vmul.f32 %v2900, %v2908
    %v2911 = vpack.c.bf16 %v2910, %v2909
    %v2914 = vunpack.c.l.b16 %v2826
    %v2915 = vunpack.c.l.b16 %v2827
    %v2916 = vpack.c.b16 %v2915, %v2914
    %v2919 = vsel %vm1021, %v2911, 0
    %2921 = vmatpush.bf16.msra.mxu0 0
    %2922 = vmatpush.bf16.msra.mxu0 0
    %2923 = vmatpush.bf16.msra.mxu0 0
    %2924 = vmatpush.bf16.msra.mxu0 0
    %2925 = vmatpush.bf16.msra.mxu0 0
    %2926 = vmatpush.bf16.msra.mxu0 0
    %2927 = vmatpush.bf16.msra.mxu0 0
    %2928 = vmatpush.bf16.msra.mxu0 %v2916
    %2929 = vmatmul.bf16.gmra.mxu0 %v2919
    %v2930 = vpop.f32.mrf.mxu0
    %v2931 = vadd.f32 0.0, %v2930
    %v2932 = vpop.f32.mrf.mxu0
    %v2933 = vadd.f32 0.0, %v2932
    %2934 = vdwg.mxu0
    %v2935 = vpack.c.bf16 %v2933, %v2931
    %v2952 = vunpack.c.l.b16 %v2829
    %v2953 = vunpack.c.h.b16 %v2829
    %v2954 = vunpack.c.l.b16 %v2830
    %v2955 = vunpack.c.h.b16 %v2830
    %v2956 = vunpack.c.l.b16 %v2831
    %v2957 = vunpack.c.h.b16 %v2831
    %v2958 = vunpack.c.l.b16 %v2832
    %v2959 = vunpack.c.h.b16 %v2832
    %v2960 = vunpack.c.l.b16 %v2833
    %v2961 = vunpack.c.h.b16 %v2833
    %v2962 = vunpack.c.l.b16 %v2834
    %v2963 = vunpack.c.h.b16 %v2834
    %v2964 = vunpack.c.l.b16 %v2835
    %v2965 = vunpack.c.h.b16 %v2835
    %v2966 = vunpack.c.l.b16 %v2836
    %v2967 = vunpack.c.h.b16 %v2836
    %v2968 = vunpack.c.l.b16 %v2837
    %v2969 = vunpack.c.h.b16 %v2837
    %v2970 = vunpack.c.l.b16 %v2838
    %v2971 = vunpack.c.h.b16 %v2838
    %v2972 = vunpack.c.l.b16 %v2839
    %v2973 = vunpack.c.h.b16 %v2839
    %v2974 = vunpack.c.l.b16 %v2840
    %v2975 = vunpack.c.h.b16 %v2840
    %v2976 = vunpack.c.l.b16 %v2841
    %v2977 = vunpack.c.h.b16 %v2841
    %v2978 = vunpack.c.l.b16 %v2842
    %v2979 = vunpack.c.h.b16 %v2842
    %v2980 = vunpack.c.l.b16 %v2843
    %v2981 = vunpack.c.h.b16 %v2843
    %v2982 = vunpack.c.l.b16 %v2844
    %v2983 = vunpack.c.h.b16 %v2844
    %v2984 = vpack.c.b16 %v2954, %v2952
    %v2985 = vpack.c.b16 %v2955, %v2953
    %v2986 = vpack.c.b16 %v2958, %v2956
    %v2987 = vpack.c.b16 %v2959, %v2957
    %v2988 = vpack.c.b16 %v2962, %v2960
    %v2989 = vpack.c.b16 %v2963, %v2961
    %v2990 = vpack.c.b16 %v2966, %v2964
    %v2991 = vpack.c.b16 %v2967, %v2965
    %v2992 = vpack.c.b16 %v2970, %v2968
    %v2993 = vpack.c.b16 %v2971, %v2969
    %v2994 = vpack.c.b16 %v2974, %v2972
    %v2995 = vpack.c.b16 %v2975, %v2973
    %v2996 = vpack.c.b16 %v2978, %v2976
    %v2997 = vpack.c.b16 %v2979, %v2977
    %v2998 = vpack.c.b16 %v2982, %v2980
    %v2999 = vpack.c.b16 %v2983, %v2981
    %3016 = vmatpush.bf16.msra.mxu0 %v2998
    %3017 = vmatpush.bf16.msra.mxu0 %v2996
    %3018 = vmatpush.bf16.msra.mxu0 %v2994
    %3019 = vmatpush.bf16.msra.mxu0 %v2992
    %3020 = vmatpush.bf16.msra.mxu0 %v2990
    %3021 = vmatpush.bf16.msra.mxu0 %v2988
    %3022 = vmatpush.bf16.msra.mxu0 %v2986
    %3023 = vmatpush.bf16.msra.mxu0 %v2984
    %3024 = vmatmul.bf16.gmra.mxu0 %v2935
    %v3025 = vpop.f32.mrf.mxu0
    %v3026 = vadd.f32 0.0, %v3025
    %v3027 = vpop.f32.mrf.mxu0
    %v3028 = vadd.f32 0.0, %v3027
    %3029 = vdwg.mxu0
    %3030 = vmatpush.bf16.msra.mxu0 %v2999
    %3031 = vmatpush.bf16.msra.mxu0 %v2997
    %3032 = vmatpush.bf16.msra.mxu0 %v2995
    %3033 = vmatpush.bf16.msra.mxu0 %v2993
    %3034 = vmatpush.bf16.msra.mxu0 %v2991
    %3035 = vmatpush.bf16.msra.mxu0 %v2989
    %3036 = vmatpush.bf16.msra.mxu0 %v2987
    %3037 = vmatpush.bf16.msra.mxu0 %v2985
    %3038 = vmatmul.bf16.gmra.mxu0 %v2935
    %v3039 = vpop.f32.mrf.mxu0
    %v3040 = vadd.f32 0.0, %v3039
    %v3041 = vpop.f32.mrf.mxu0
    %v3042 = vadd.f32 0.0, %v3041
    %3043 = vdwg.mxu0
    %v3045 = vperm.slane %v2862, 0
    %v3046 = vperm.slane %v2862, 1
    %v3049 = vadd.f32 %v3045, %v3026
    %v3050 = vadd.f32 %v3046, %v3040
    %v3051 = vadd.f32 %v3045, %v3028
    %v3052 = vadd.f32 %v3046, %v3042
    %v3053 = vunpack.c.h.b16 %v2310
    %v3054 = vunpack.c.h.b16 %v2311
    %v3055 = vpack.c.b16 %v3054, %v3053
    %v3057 = vunpack.c.h.b16 %v2568
    %v3058 = vunpack.c.h.b16 %v2569
    %v3059 = vpack.c.b16 %v3058, %v3057
    %3061 = vmatpush.bf16.xpose.msra.mxu0 0
    %3062 = vmatpush.bf16.xpose.msra.mxu0 0
    %3063 = vmatpush.bf16.xpose.msra.mxu0 0
    %3064 = vmatpush.bf16.xpose.msra.mxu0 0
    %3065 = vmatpush.bf16.xpose.msra.mxu0 0
    %3066 = vmatpush.bf16.xpose.msra.mxu0 0
    %3067 = vmatpush.bf16.xpose.msra.mxu0 0
    %3068 = vmatpush.bf16.xpose.msra.mxu0 %v3059
    %3069 = vmatmul.bf16.gmra.mxu0 %v3055
    %v3070 = vpop.f32.mrf.mxu0
    %v3071 = vadd.f32 %v53, %v3070
    %v3072 = vpop.f32.mrf.mxu0
    %v3073 = vadd.f32 %v54, %v3072
    %3074 = vdwg.mxu0
    %v3075 = vsel %vm1021, %v3071, -inf
    %3076 = vmax.xlane.f32.xlu0 %v3075
    %v3077 = vpop.xlane.xlu0 %3076
    %v3078 = vsel %vm1021, %v3073, -inf
    %3079 = vmax.xlane.f32.xlu0 %v3078
    %v3080 = vpop.xlane.xlu0 %3079
    %v3081 = vsub.f32 %v3071, %v3077
    %v3082 = vsub.f32 %v3073, %v3080
    %v3083 = vmul.f32 %v3081, 1.442695
    %v3084 = vpow.pop %v3083
    %v3085 = vmul.f32 %v3082, 1.442695
    %v3086 = vpow.pop %v3085
    %v3087 = vsel %vm1021, %v3084, 0.0
    %3088 = vadd.xlane.f32.xlu0 %v3087
    %v3089 = vpop.xlane.xlu0 %3088
    %v3090 = vsel %vm1021, %v3086, 0.0
    %3091 = vadd.xlane.f32.xlu0 %v3090
    %v3092 = vpop.xlane.xlu0 %3091
    %v3093 = vrcp.pop %v3089
    %v3094 = vrcp.pop %v3092
    %v3095 = vmul.f32 %v3084, %v3093
    %v3096 = vmul.f32 %v3086, %v3094
    %v3097 = vpack.c.bf16 %v3096, %v3095
    %v3098 = vunpack.c.h.b16 %v2826
    %v3099 = vunpack.c.h.b16 %v2827
    %v3100 = vpack.c.b16 %v3099, %v3098
    %v3103 = vsel %vm1021, %v3097, 0
    %3105 = vmatpush.bf16.msra.mxu0 0
    %3106 = vmatpush.bf16.msra.mxu0 0
    %3107 = vmatpush.bf16.msra.mxu0 0
    %3108 = vmatpush.bf16.msra.mxu0 0
    %3109 = vmatpush.bf16.msra.mxu0 0
    %3110 = vmatpush.bf16.msra.mxu0 0
    %3111 = vmatpush.bf16.msra.mxu0 0
    %3112 = vmatpush.bf16.msra.mxu0 %v3100
    %3113 = vmatmul.bf16.gmra.mxu0 %v3103
    %v3114 = vpop.f32.mrf.mxu0
    %v3115 = vadd.f32 0.0, %v3114
    %v3116 = vpop.f32.mrf.mxu0
    %v3117 = vadd.f32 0.0, %v3116
    %3118 = vdwg.mxu0
    %v3119 = vpack.c.bf16 %v3117, %v3115
    %v3136 = vunpack.c.l.b16 %v2845
    %v3137 = vunpack.c.h.b16 %v2845
    %v3138 = vunpack.c.l.b16 %v2846
    %v3139 = vunpack.c.h.b16 %v2846
    %v3140 = vunpack.c.l.b16 %v2847
    %v3141 = vunpack.c.h.b16 %v2847
    %v3142 = vunpack.c.l.b16 %v2848
    %v3143 = vunpack.c.h.b16 %v2848
    %v3144 = vunpack.c.l.b16 %v2849
    %v3145 = vunpack.c.h.b16 %v2849
    %v3146 = vunpack.c.l.b16 %v2850
    %v3147 = vunpack.c.h.b16 %v2850
    %v3148 = vunpack.c.l.b16 %v2851
    %v3149 = vunpack.c.h.b16 %v2851
    %v3150 = vunpack.c.l.b16 %v2852
    %v3151 = vunpack.c.h.b16 %v2852
    %v3152 = vunpack.c.l.b16 %v2853
    %v3153 = vunpack.c.h.b16 %v2853
    %v3154 = vunpack.c.l.b16 %v2854
    %v3155 = vunpack.c.h.b16 %v2854
    %v3156 = vunpack.c.l.b16 %v2855
    %v3157 = vunpack.c.h.b16 %v2855
    %v3158 = vunpack.c.l.b16 %v2856
    %v3159 = vunpack.c.h.b16 %v2856
    %v3160 = vunpack.c.l.b16 %v2857
    %v3161 = vunpack.c.h.b16 %v2857
    %v3162 = vunpack.c.l.b16 %v2858
    %v3163 = vunpack.c.h.b16 %v2858
    %v3164 = vunpack.c.l.b16 %v2859
    %v3165 = vunpack.c.h.b16 %v2859
    %v3166 = vunpack.c.l.b16 %v2860
    %v3167 = vunpack.c.h.b16 %v2860
    %v3168 = vpack.c.b16 %v3138, %v3136
    %v3169 = vpack.c.b16 %v3139, %v3137
    %v3170 = vpack.c.b16 %v3142, %v3140
    %v3171 = vpack.c.b16 %v3143, %v3141
    %v3172 = vpack.c.b16 %v3146, %v3144
    %v3173 = vpack.c.b16 %v3147, %v3145
    %v3174 = vpack.c.b16 %v3150, %v3148
    %v3175 = vpack.c.b16 %v3151, %v3149
    %v3176 = vpack.c.b16 %v3154, %v3152
    %v3177 = vpack.c.b16 %v3155, %v3153
    %v3178 = vpack.c.b16 %v3158, %v3156
    %v3179 = vpack.c.b16 %v3159, %v3157
    %v3180 = vpack.c.b16 %v3162, %v3160
    %v3181 = vpack.c.b16 %v3163, %v3161
    %v3182 = vpack.c.b16 %v3166, %v3164
    %v3183 = vpack.c.b16 %v3167, %v3165
    %3200 = vmatpush.bf16.msra.mxu0 %v3182
    %3201 = vmatpush.bf16.msra.mxu0 %v3180
    %3202 = vmatpush.bf16.msra.mxu0 %v3178
    %3203 = vmatpush.bf16.msra.mxu0 %v3176
    %3204 = vmatpush.bf16.msra.mxu0 %v3174
    %3205 = vmatpush.bf16.msra.mxu0 %v3172
    %3206 = vmatpush.bf16.msra.mxu0 %v3170
    %3207 = vmatpush.bf16.msra.mxu0 %v3168
    %3208 = vmatmul.bf16.gmra.mxu0 %v3119
    %v3209 = vpop.f32.mrf.mxu0
    %v3210 = vadd.f32 0.0, %v3209
    %v3211 = vpop.f32.mrf.mxu0
    %v3212 = vadd.f32 0.0, %v3211
    %3213 = vdwg.mxu0
    %3214 = vmatpush.bf16.msra.mxu0 %v3183
    %3215 = vmatpush.bf16.msra.mxu0 %v3181
    %3216 = vmatpush.bf16.msra.mxu0 %v3179
    %3217 = vmatpush.bf16.msra.mxu0 %v3177
    %3218 = vmatpush.bf16.msra.mxu0 %v3175
    %3219 = vmatpush.bf16.msra.mxu0 %v3173
    %3220 = vmatpush.bf16.msra.mxu0 %v3171
    %3221 = vmatpush.bf16.msra.mxu0 %v3169
    %3222 = vmatmul.bf16.gmra.mxu0 %v3119
    %v3223 = vpop.f32.mrf.mxu0
    %v3224 = vadd.f32 0.0, %v3223
    %v3225 = vpop.f32.mrf.mxu0
    %v3226 = vadd.f32 0.0, %v3225
    %3227 = vdwg.mxu0
    %v3228 = vadd.f32 %v3049, %v3210
    %v3229 = vadd.f32 %v3050, %v3224
    %v3230 = vadd.f32 %v3051, %v3212
    %v3231 = vadd.f32 %v3052, %v3226
    %v3232 = vadd.f32 %v2048, %v3228
    %v3233 = vadd.f32 %v2049, %v3229
    %v3234 = vadd.f32 %v2050, %v3230
    %v3235 = vadd.f32 %v2051, %v3231
    %s3236 = scalar_lea.vmem [#allocation5], 22
    %v3237 = vld [vmem:[%s3236] ss:$8 sm:$0x3]
    %s3238 = scalar_lea.vmem [#allocation5], 23
    %v3239 = vld [vmem:[%s3238] ss:$8 sm:$0x3]
    %v3240 = vadd.f32 %v3232, %v3233
    %3241 = vadd.xlane.f32.xlu0 %v3240
    %v3242 = vpop.xlane.xlu0 %3241
    %v3243 = vadd.f32 %v3234, %v3235
    %3244 = vadd.xlane.f32.xlu0 %v3243
    %v3245 = vpop.xlane.xlu0 %3244
    %v3246 = vmul.f32 %v3242, %v1385
    %v3247 = vmul.f32 %v3245, %v1385
    %v3248 = vmul.f32 %v3232, %v3232
    %v3249 = vmul.f32 %v3233, %v3233
    %v3250 = vmul.f32 %v3234, %v3234
    %v3251 = vmul.f32 %v3235, %v3235
    %v3252 = vadd.f32 %v3248, %v3249
    %3253 = vadd.xlane.f32.xlu0 %v3252
    %v3254 = vpop.xlane.xlu0 %3253
    %v3255 = vadd.f32 %v3250, %v3251
    %3256 = vadd.xlane.f32.xlu0 %v3255
    %v3257 = vpop.xlane.xlu0 %3256
    %v3258 = vmul.f32 %v3254, %v1385
    %v3259 = vmul.f32 %v3257, %v1385
    %v3260 = vmul.f32 %v3246, %v3246
    %v3261 = vmul.f32 %v3247, %v3247
    %v3262 = vsub.f32 %v3258, %v3260
    %v3263 = vsub.f32 %v3259, %v3261
    %v3264 = vsub.f32 %v3232, %v3246
    %v3265 = vsub.f32 %v3233, %v3246
    %v3266 = vsub.f32 %v3234, %v3247
    %v3267 = vsub.f32 %v3235, %v3247
    %v3268 = vadd.f32 %v3262, 1e-05
    %v3269 = vadd.f32 %v3263, 1e-05
    %v3270 = vrsqrt.pop %v3268
    %v3271 = vmul.f32 %v3270, %v3268
    %v3272 = vmul.f32 %v3271, %v3270
    %v3273 = vmul.f32 0.5, %v3272
    %v3274 = vsub.f32 1.5, %v3273
    %v3275 = vmul.f32 %v3270, %v3274
    %vm3276 = vweird.f32 %v3268
    %vm3277 = vweird.f32 %v3270
    %vm3278 = vmor %vm3276, %vm3277
    %v3279 = vsel %vm3278, %v3270, %v3275
    %v3280 = vrsqrt.pop %v3269
    %v3281 = vmul.f32 %v3280, %v3269
    %v3282 = vmul.f32 %v3281, %v3280
    %v3283 = vmul.f32 0.5, %v3282
    %v3284 = vsub.f32 1.5, %v3283
    %v3285 = vmul.f32 %v3280, %v3284
    %vm3286 = vweird.f32 %v3269
    %vm3287 = vweird.f32 %v3280
    %vm3288 = vmor %vm3286, %vm3287
    %v3289 = vsel %vm3288, %v3280, %v3285
    %v3290 = vmul.f32 %v3264, %v3279
    %v3291 = vmul.f32 %v3265, %v3279
    %v3292 = vmul.f32 %v3266, %v3289
    %v3293 = vmul.f32 %v3267, %v3289
    %v3295 = vperm.slane %v3237, 0
    %v3296 = vperm.slane %v3237, 1
    %v3299 = vmul.f32 %v3290, %v3295
    %v3300 = vmul.f32 %v3291, %v3296
    %v3301 = vmul.f32 %v3292, %v3295
    %v3302 = vmul.f32 %v3293, %v3296
    %v3304 = vperm.slane %v3239, 0
    %v3305 = vperm.slane %v3239, 1
    %v3308 = vadd.f32 %v3299, %v3304
    %v3309 = vadd.f32 %v3300, %v3305
    %v3310 = vadd.f32 %v3301, %v3304
    %v3311 = vadd.f32 %v3302, %v3305
    %v3312 = vpack.c.bf16 %v3310, %v3308
    %v3313 = vpack.c.bf16 %v3311, %v3309
    %s3314 = scalar_lea.vmem [#allocation2], 2816
    %v3315 = vld [vmem:[%s3314] sm:$0xff]
    %v3316 = vld [vmem:[%s3314 + $0x8] sm:$0xff]
    %v3317 = vld [vmem:[%s3314 + $0x10] sm:$0xff]
    %v3318 = vld [vmem:[%s3314 + $0x18] sm:$0xff]
    %v3319 = vld [vmem:[%s3314 + $0x20] sm:$0xff]
    %v3320 = vld [vmem:[%s3314 + $0x28] sm:$0xff]
    %v3321 = vld [vmem:[%s3314 + $0x30] sm:$0xff]
    %v3322 = vld [vmem:[%s3314 + $0x38] sm:$0xff]
    %v3323 = vld [vmem:[%s3314 + $0x40] sm:$0xff]
    %v3324 = vld [vmem:[%s3314 + $0x48] sm:$0xff]
    %v3325 = vld [vmem:[%s3314 + $0x50] sm:$0xff]
    %v3326 = vld [vmem:[%s3314 + $0x58] sm:$0xff]
    %v3327 = vld [vmem:[%s3314 + $0x60] sm:$0xff]
    %v3328 = vld [vmem:[%s3314 + $0x68] sm:$0xff]
    %v3329 = vld [vmem:[%s3314 + $0x70] sm:$0xff]
    %v3330 = vld [vmem:[%s3314 + $0x78] sm:$0xff]
    %v3331 = vld [vmem:[%s3314 + $0x80] sm:$0xff]
    %v3332 = vld [vmem:[%s3314 + $0x88] sm:$0xff]
    %v3333 = vld [vmem:[%s3314 + $0x90] sm:$0xff]
    %v3334 = vld [vmem:[%s3314 + $0x98] sm:$0xff]
    %v3335 = vld [vmem:[%s3314 + $0xa0] sm:$0xff]
    %v3336 = vld [vmem:[%s3314 + $0xa8] sm:$0xff]
    %v3337 = vld [vmem:[%s3314 + $0xb0] sm:$0xff]
    %v3338 = vld [vmem:[%s3314 + $0xb8] sm:$0xff]
    %v3339 = vld [vmem:[%s3314 + $0xc0] sm:$0xff]
    %v3340 = vld [vmem:[%s3314 + $0xc8] sm:$0xff]
    %v3341 = vld [vmem:[%s3314 + $0xd0] sm:$0xff]
    %v3342 = vld [vmem:[%s3314 + $0xd8] sm:$0xff]
    %v3343 = vld [vmem:[%s3314 + $0xe0] sm:$0xff]
    %v3344 = vld [vmem:[%s3314 + $0xe8] sm:$0xff]
    %v3345 = vld [vmem:[%s3314 + $0xf0] sm:$0xff]
    %v3346 = vld [vmem:[%s3314 + $0xf8] sm:$0xff]
    %s3347 = scalar_lea.vmem [#allocation5], 32
    %v3348 = vld [vmem:[%s3347] ss:$8 sm:$0x3]
    %v3350 = vperm.slane %v3348, 0
    %v3351 = vperm.slane %v3348, 1
    %v3386 = vunpack.c.l.b16 %v3315
    %v3387 = vunpack.c.h.b16 %v3315
    %v3388 = vunpack.c.l.b16 %v3316
    %v3389 = vunpack.c.h.b16 %v3316
    %v3390 = vunpack.c.l.b16 %v3317
    %v3391 = vunpack.c.h.b16 %v3317
    %v3392 = vunpack.c.l.b16 %v3318
    %v3393 = vunpack.c.h.b16 %v3318
    %v3394 = vunpack.c.l.b16 %v3319
    %v3395 = vunpack.c.h.b16 %v3319
    %v3396 = vunpack.c.l.b16 %v3320
    %v3397 = vunpack.c.h.b16 %v3320
    %v3398 = vunpack.c.l.b16 %v3321
    %v3399 = vunpack.c.h.b16 %v3321
    %v3400 = vunpack.c.l.b16 %v3322
    %v3401 = vunpack.c.h.b16 %v3322
    %v3402 = vunpack.c.l.b16 %v3323
    %v3403 = vunpack.c.h.b16 %v3323
    %v3404 = vunpack.c.l.b16 %v3324
    %v3405 = vunpack.c.h.b16 %v3324
    %v3406 = vunpack.c.l.b16 %v3325
    %v3407 = vunpack.c.h.b16 %v3325
    %v3408 = vunpack.c.l.b16 %v3326
    %v3409 = vunpack.c.h.b16 %v3326
    %v3410 = vunpack.c.l.b16 %v3327
    %v3411 = vunpack.c.h.b16 %v3327
    %v3412 = vunpack.c.l.b16 %v3328
    %v3413 = vunpack.c.h.b16 %v3328
    %v3414 = vunpack.c.l.b16 %v3329
    %v3415 = vunpack.c.h.b16 %v3329
    %v3416 = vunpack.c.l.b16 %v3330
    %v3417 = vunpack.c.h.b16 %v3330
    %v3418 = vunpack.c.l.b16 %v3331
    %v3419 = vunpack.c.h.b16 %v3331
    %v3420 = vunpack.c.l.b16 %v3332
    %v3421 = vunpack.c.h.b16 %v3332
    %v3422 = vunpack.c.l.b16 %v3333
    %v3423 = vunpack.c.h.b16 %v3333
    %v3424 = vunpack.c.l.b16 %v3334
    %v3425 = vunpack.c.h.b16 %v3334
    %v3426 = vunpack.c.l.b16 %v3335
    %v3427 = vunpack.c.h.b16 %v3335
    %v3428 = vunpack.c.l.b16 %v3336
    %v3429 = vunpack.c.h.b16 %v3336
    %v3430 = vunpack.c.l.b16 %v3337
    %v3431 = vunpack.c.h.b16 %v3337
    %v3432 = vunpack.c.l.b16 %v3338
    %v3433 = vunpack.c.h.b16 %v3338
    %v3434 = vunpack.c.l.b16 %v3339
    %v3435 = vunpack.c.h.b16 %v3339
    %v3436 = vunpack.c.l.b16 %v3340
    %v3437 = vunpack.c.h.b16 %v3340
    %v3438 = vunpack.c.l.b16 %v3341
    %v3439 = vunpack.c.h.b16 %v3341
    %v3440 = vunpack.c.l.b16 %v3342
    %v3441 = vunpack.c.h.b16 %v3342
    %v3442 = vunpack.c.l.b16 %v3343
    %v3443 = vunpack.c.h.b16 %v3343
    %v3444 = vunpack.c.l.b16 %v3344
    %v3445 = vunpack.c.h.b16 %v3344
    %v3446 = vunpack.c.l.b16 %v3345
    %v3447 = vunpack.c.h.b16 %v3345
    %v3448 = vunpack.c.l.b16 %v3346
    %v3449 = vunpack.c.h.b16 %v3346
    %v3450 = vpack.c.b16 %v3388, %v3386
    %v3451 = vpack.c.b16 %v3389, %v3387
    %v3452 = vpack.c.b16 %v3392, %v3390
    %v3453 = vpack.c.b16 %v3393, %v3391
    %v3454 = vpack.c.b16 %v3396, %v3394
    %v3455 = vpack.c.b16 %v3397, %v3395
    %v3456 = vpack.c.b16 %v3400, %v3398
    %v3457 = vpack.c.b16 %v3401, %v3399
    %v3458 = vpack.c.b16 %v3404, %v3402
    %v3459 = vpack.c.b16 %v3405, %v3403
    %v3460 = vpack.c.b16 %v3408, %v3406
    %v3461 = vpack.c.b16 %v3409, %v3407
    %v3462 = vpack.c.b16 %v3412, %v3410
    %v3463 = vpack.c.b16 %v3413, %v3411
    %v3464 = vpack.c.b16 %v3416, %v3414
    %v3465 = vpack.c.b16 %v3417, %v3415
    %v3466 = vpack.c.b16 %v3420, %v3418
    %v3467 = vpack.c.b16 %v3421, %v3419
    %v3468 = vpack.c.b16 %v3424, %v3422
    %v3469 = vpack.c.b16 %v3425, %v3423
    %v3470 = vpack.c.b16 %v3428, %v3426
    %v3471 = vpack.c.b16 %v3429, %v3427
    %v3472 = vpack.c.b16 %v3432, %v3430
    %v3473 = vpack.c.b16 %v3433, %v3431
    %v3474 = vpack.c.b16 %v3436, %v3434
    %v3475 = vpack.c.b16 %v3437, %v3435
    %v3476 = vpack.c.b16 %v3440, %v3438
    %v3477 = vpack.c.b16 %v3441, %v3439
    %v3478 = vpack.c.b16 %v3444, %v3442
    %v3479 = vpack.c.b16 %v3445, %v3443
    %v3480 = vpack.c.b16 %v3448, %v3446
    %v3481 = vpack.c.b16 %v3449, %v3447
    %3514 = vmatpush.bf16.msra.mxu0 %v3464
    %3515 = vmatpush.bf16.msra.mxu0 %v3462
    %3516 = vmatpush.bf16.msra.mxu0 %v3460
    %3517 = vmatpush.bf16.msra.mxu0 %v3458
    %3518 = vmatpush.bf16.msra.mxu0 %v3456
    %3519 = vmatpush.bf16.msra.mxu0 %v3454
    %3520 = vmatpush.bf16.msra.mxu0 %v3452
    %3521 = vmatpush.bf16.msra.mxu0 %v3450
    %3522 = vmatmul.bf16.gmra.mxu0 %v3312
    %v3523 = vpop.f32.mrf.mxu0
    %v3524 = vadd.f32 %v3350, %v3523
    %v3525 = vpop.f32.mrf.mxu0
    %v3526 = vadd.f32 %v3350, %v3525
    %3527 = vdwg.mxu0
    %3528 = vmatpush.bf16.msra.mxu0 %v3480
    %3529 = vmatpush.bf16.msra.mxu0 %v3478
    %3530 = vmatpush.bf16.msra.mxu0 %v3476
    %3531 = vmatpush.bf16.msra.mxu0 %v3474
    %3532 = vmatpush.bf16.msra.mxu0 %v3472
    %3533 = vmatpush.bf16.msra.mxu0 %v3470
    %3534 = vmatpush.bf16.msra.mxu0 %v3468
    %3535 = vmatpush.bf16.msra.mxu0 %v3466
    %3536 = vmatmul.bf16.gmra.mxu0 %v3313
    %v3537 = vpop.f32.mrf.mxu0
    %v3538 = vadd.f32 %v3524, %v3537
    %v3539 = vpop.f32.mrf.mxu0
    %v3540 = vadd.f32 %v3526, %v3539
    %3541 = vdwg.mxu0
    %3542 = vmatpush.bf16.msra.mxu0 %v3465
    %3543 = vmatpush.bf16.msra.mxu0 %v3463
    %3544 = vmatpush.bf16.msra.mxu0 %v3461
    %3545 = vmatpush.bf16.msra.mxu0 %v3459
    %3546 = vmatpush.bf16.msra.mxu0 %v3457
    %3547 = vmatpush.bf16.msra.mxu0 %v3455
    %3548 = vmatpush.bf16.msra.mxu0 %v3453
    %3549 = vmatpush.bf16.msra.mxu0 %v3451
    %3550 = vmatmul.bf16.gmra.mxu0 %v3312
    %v3551 = vpop.f32.mrf.mxu0
    %v3552 = vadd.f32 %v3351, %v3551
    %v3553 = vpop.f32.mrf.mxu0
    %v3554 = vadd.f32 %v3351, %v3553
    %3555 = vdwg.mxu0
    %3556 = vmatpush.bf16.msra.mxu0 %v3481
    %3557 = vmatpush.bf16.msra.mxu0 %v3479
    %3558 = vmatpush.bf16.msra.mxu0 %v3477
    %3559 = vmatpush.bf16.msra.mxu0 %v3475
    %3560 = vmatpush.bf16.msra.mxu0 %v3473
    %3561 = vmatpush.bf16.msra.mxu0 %v3471
    %3562 = vmatpush.bf16.msra.mxu0 %v3469
    %3563 = vmatpush.bf16.msra.mxu0 %v3467
    %3564 = vmatmul.bf16.gmra.mxu0 %v3313
    %v3565 = vpop.f32.mrf.mxu0
    %v3566 = vadd.f32 %v3552, %v3565
    %v3567 = vpop.f32.mrf.mxu0
    %v3568 = vadd.f32 %v3554, %v3567
    %3569 = vdwg.mxu0
    %v3570 = vmax.f32 %v3538, 0.0
    %v3571 = vmax.f32 %v3566, 0.0
    %v3572 = vmax.f32 %v3540, 0.0
    %v3573 = vmax.f32 %v3568, 0.0
    %v3574 = vpack.c.bf16 %v3572, %v3570
    %v3575 = vpack.c.bf16 %v3573, %v3571
    %s3576 = scalar_lea.vmem [#allocation2], 3072
    %v3577 = vld [vmem:[%s3576] sm:$0xff]
    %v3578 = vld [vmem:[%s3576 + $0x8] sm:$0xff]
    %v3579 = vld [vmem:[%s3576 + $0x10] sm:$0xff]
    %v3580 = vld [vmem:[%s3576 + $0x18] sm:$0xff]
    %v3581 = vld [vmem:[%s3576 + $0x20] sm:$0xff]
    %v3582 = vld [vmem:[%s3576 + $0x28] sm:$0xff]
    %v3583 = vld [vmem:[%s3576 + $0x30] sm:$0xff]
    %v3584 = vld [vmem:[%s3576 + $0x38] sm:$0xff]
    %v3585 = vld [vmem:[%s3576 + $0x40] sm:$0xff]
    %v3586 = vld [vmem:[%s3576 + $0x48] sm:$0xff]
    %v3587 = vld [vmem:[%s3576 + $0x50] sm:$0xff]
    %v3588 = vld [vmem:[%s3576 + $0x58] sm:$0xff]
    %v3589 = vld [vmem:[%s3576 + $0x60] sm:$0xff]
    %v3590 = vld [vmem:[%s3576 + $0x68] sm:$0xff]
    %v3591 = vld [vmem:[%s3576 + $0x70] sm:$0xff]
    %v3592 = vld [vmem:[%s3576 + $0x78] sm:$0xff]
    %v3593 = vld [vmem:[%s3576 + $0x80] sm:$0xff]
    %v3594 = vld [vmem:[%s3576 + $0x88] sm:$0xff]
    %v3595 = vld [vmem:[%s3576 + $0x90] sm:$0xff]
    %v3596 = vld [vmem:[%s3576 + $0x98] sm:$0xff]
    %v3597 = vld [vmem:[%s3576 + $0xa0] sm:$0xff]
    %v3598 = vld [vmem:[%s3576 + $0xa8] sm:$0xff]
    %v3599 = vld [vmem:[%s3576 + $0xb0] sm:$0xff]
    %v3600 = vld [vmem:[%s3576 + $0xb8] sm:$0xff]
    %v3601 = vld [vmem:[%s3576 + $0xc0] sm:$0xff]
    %v3602 = vld [vmem:[%s3576 + $0xc8] sm:$0xff]
    %v3603 = vld [vmem:[%s3576 + $0xd0] sm:$0xff]
    %v3604 = vld [vmem:[%s3576 + $0xd8] sm:$0xff]
    %v3605 = vld [vmem:[%s3576 + $0xe0] sm:$0xff]
    %v3606 = vld [vmem:[%s3576 + $0xe8] sm:$0xff]
    %v3607 = vld [vmem:[%s3576 + $0xf0] sm:$0xff]
    %v3608 = vld [vmem:[%s3576 + $0xf8] sm:$0xff]
    %s3609 = scalar_lea.vmem [#allocation5], 33
    %v3610 = vld [vmem:[%s3609] ss:$8 sm:$0x3]
    %v3612 = vperm.slane %v3610, 0
    %v3613 = vperm.slane %v3610, 1
    %v3648 = vunpack.c.l.b16 %v3577
    %v3649 = vunpack.c.h.b16 %v3577
    %v3650 = vunpack.c.l.b16 %v3578
    %v3651 = vunpack.c.h.b16 %v3578
    %v3652 = vunpack.c.l.b16 %v3579
    %v3653 = vunpack.c.h.b16 %v3579
    %v3654 = vunpack.c.l.b16 %v3580
    %v3655 = vunpack.c.h.b16 %v3580
    %v3656 = vunpack.c.l.b16 %v3581
    %v3657 = vunpack.c.h.b16 %v3581
    %v3658 = vunpack.c.l.b16 %v3582
    %v3659 = vunpack.c.h.b16 %v3582
    %v3660 = vunpack.c.l.b16 %v3583
    %v3661 = vunpack.c.h.b16 %v3583
    %v3662 = vunpack.c.l.b16 %v3584
    %v3663 = vunpack.c.h.b16 %v3584
    %v3664 = vunpack.c.l.b16 %v3585
    %v3665 = vunpack.c.h.b16 %v3585
    %v3666 = vunpack.c.l.b16 %v3586
    %v3667 = vunpack.c.h.b16 %v3586
    %v3668 = vunpack.c.l.b16 %v3587
    %v3669 = vunpack.c.h.b16 %v3587
    %v3670 = vunpack.c.l.b16 %v3588
    %v3671 = vunpack.c.h.b16 %v3588
    %v3672 = vunpack.c.l.b16 %v3589
    %v3673 = vunpack.c.h.b16 %v3589
    %v3674 = vunpack.c.l.b16 %v3590
    %v3675 = vunpack.c.h.b16 %v3590
    %v3676 = vunpack.c.l.b16 %v3591
    %v3677 = vunpack.c.h.b16 %v3591
    %v3678 = vunpack.c.l.b16 %v3592
    %v3679 = vunpack.c.h.b16 %v3592
    %v3680 = vunpack.c.l.b16 %v3593
    %v3681 = vunpack.c.h.b16 %v3593
    %v3682 = vunpack.c.l.b16 %v3594
    %v3683 = vunpack.c.h.b16 %v3594
    %v3684 = vunpack.c.l.b16 %v3595
    %v3685 = vunpack.c.h.b16 %v3595
    %v3686 = vunpack.c.l.b16 %v3596
    %v3687 = vunpack.c.h.b16 %v3596
    %v3688 = vunpack.c.l.b16 %v3597
    %v3689 = vunpack.c.h.b16 %v3597
    %v3690 = vunpack.c.l.b16 %v3598
    %v3691 = vunpack.c.h.b16 %v3598
    %v3692 = vunpack.c.l.b16 %v3599
    %v3693 = vunpack.c.h.b16 %v3599
    %v3694 = vunpack.c.l.b16 %v3600
    %v3695 = vunpack.c.h.b16 %v3600
    %v3696 = vunpack.c.l.b16 %v3601
    %v3697 = vunpack.c.h.b16 %v3601
    %v3698 = vunpack.c.l.b16 %v3602
    %v3699 = vunpack.c.h.b16 %v3602
    %v3700 = vunpack.c.l.b16 %v3603
    %v3701 = vunpack.c.h.b16 %v3603
    %v3702 = vunpack.c.l.b16 %v3604
    %v3703 = vunpack.c.h.b16 %v3604
    %v3704 = vunpack.c.l.b16 %v3605
    %v3705 = vunpack.c.h.b16 %v3605
    %v3706 = vunpack.c.l.b16 %v3606
    %v3707 = vunpack.c.h.b16 %v3606
    %v3708 = vunpack.c.l.b16 %v3607
    %v3709 = vunpack.c.h.b16 %v3607
    %v3710 = vunpack.c.l.b16 %v3608
    %v3711 = vunpack.c.h.b16 %v3608
    %v3712 = vpack.c.b16 %v3650, %v3648
    %v3713 = vpack.c.b16 %v3651, %v3649
    %v3714 = vpack.c.b16 %v3654, %v3652
    %v3715 = vpack.c.b16 %v3655, %v3653
    %v3716 = vpack.c.b16 %v3658, %v3656
    %v3717 = vpack.c.b16 %v3659, %v3657
    %v3718 = vpack.c.b16 %v3662, %v3660
    %v3719 = vpack.c.b16 %v3663, %v3661
    %v3720 = vpack.c.b16 %v3666, %v3664
    %v3721 = vpack.c.b16 %v3667, %v3665
    %v3722 = vpack.c.b16 %v3670, %v3668
    %v3723 = vpack.c.b16 %v3671, %v3669
    %v3724 = vpack.c.b16 %v3674, %v3672
    %v3725 = vpack.c.b16 %v3675, %v3673
    %v3726 = vpack.c.b16 %v3678, %v3676
    %v3727 = vpack.c.b16 %v3679, %v3677
    %v3728 = vpack.c.b16 %v3682, %v3680
    %v3729 = vpack.c.b16 %v3683, %v3681
    %v3730 = vpack.c.b16 %v3686, %v3684
    %v3731 = vpack.c.b16 %v3687, %v3685
    %v3732 = vpack.c.b16 %v3690, %v3688
    %v3733 = vpack.c.b16 %v3691, %v3689
    %v3734 = vpack.c.b16 %v3694, %v3692
    %v3735 = vpack.c.b16 %v3695, %v3693
    %v3736 = vpack.c.b16 %v3698, %v3696
    %v3737 = vpack.c.b16 %v3699, %v3697
    %v3738 = vpack.c.b16 %v3702, %v3700
    %v3739 = vpack.c.b16 %v3703, %v3701
    %v3740 = vpack.c.b16 %v3706, %v3704
    %v3741 = vpack.c.b16 %v3707, %v3705
    %v3742 = vpack.c.b16 %v3710, %v3708
    %v3743 = vpack.c.b16 %v3711, %v3709
    %3776 = vmatpush.bf16.msra.mxu0 %v3726
    %3777 = vmatpush.bf16.msra.mxu0 %v3724
    %3778 = vmatpush.bf16.msra.mxu0 %v3722
    %3779 = vmatpush.bf16.msra.mxu0 %v3720
    %3780 = vmatpush.bf16.msra.mxu0 %v3718
    %3781 = vmatpush.bf16.msra.mxu0 %v3716
    %3782 = vmatpush.bf16.msra.mxu0 %v3714
    %3783 = vmatpush.bf16.msra.mxu0 %v3712
    %3784 = vmatmul.bf16.gmra.mxu0 %v3574
    %v3785 = vpop.f32.mrf.mxu0
    %v3786 = vadd.f32 %v3612, %v3785
    %v3787 = vpop.f32.mrf.mxu0
    %v3788 = vadd.f32 %v3612, %v3787
    %3789 = vdwg.mxu0
    %3790 = vmatpush.bf16.msra.mxu0 %v3742
    %3791 = vmatpush.bf16.msra.mxu0 %v3740
    %3792 = vmatpush.bf16.msra.mxu0 %v3738
    %3793 = vmatpush.bf16.msra.mxu0 %v3736
    %3794 = vmatpush.bf16.msra.mxu0 %v3734
    %3795 = vmatpush.bf16.msra.mxu0 %v3732
    %3796 = vmatpush.bf16.msra.mxu0 %v3730
    %3797 = vmatpush.bf16.msra.mxu0 %v3728
    %3798 = vmatmul.bf16.gmra.mxu0 %v3575
    %v3799 = vpop.f32.mrf.mxu0
    %v3800 = vadd.f32 %v3786, %v3799
    %v3801 = vpop.f32.mrf.mxu0
    %v3802 = vadd.f32 %v3788, %v3801
    %3803 = vdwg.mxu0
    %3804 = vmatpush.bf16.msra.mxu0 %v3727
    %3805 = vmatpush.bf16.msra.mxu0 %v3725
    %3806 = vmatpush.bf16.msra.mxu0 %v3723
    %3807 = vmatpush.bf16.msra.mxu0 %v3721
    %3808 = vmatpush.bf16.msra.mxu0 %v3719
    %3809 = vmatpush.bf16.msra.mxu0 %v3717
    %3810 = vmatpush.bf16.msra.mxu0 %v3715
    %3811 = vmatpush.bf16.msra.mxu0 %v3713
    %3812 = vmatmul.bf16.gmra.mxu0 %v3574
    %v3813 = vpop.f32.mrf.mxu0
    %v3814 = vadd.f32 %v3613, %v3813
    %v3815 = vpop.f32.mrf.mxu0
    %v3816 = vadd.f32 %v3613, %v3815
    %3817 = vdwg.mxu0
    %3818 = vmatpush.bf16.msra.mxu0 %v3743
    %3819 = vmatpush.bf16.msra.mxu0 %v3741
    %3820 = vmatpush.bf16.msra.mxu0 %v3739
    %3821 = vmatpush.bf16.msra.mxu0 %v3737
    %3822 = vmatpush.bf16.msra.mxu0 %v3735
    %3823 = vmatpush.bf16.msra.mxu0 %v3733
    %3824 = vmatpush.bf16.msra.mxu0 %v3731
    %3825 = vmatpush.bf16.msra.mxu0 %v3729
    %3826 = vmatmul.bf16.gmra.mxu0 %v3575
    %v3827 = vpop.f32.mrf.mxu0
    %v3828 = vadd.f32 %v3814, %v3827
    %v3829 = vpop.f32.mrf.mxu0
    %v3830 = vadd.f32 %v3816, %v3829
    %3831 = vdwg.mxu0
    %v3832 = vadd.f32 %v3308, %v3800
    %v3833 = vadd.f32 %v3309, %v3828
    %v3834 = vadd.f32 %v3310, %v3802
    %v3835 = vadd.f32 %v3311, %v3830
    %s3836 = scalar_lea.vmem [#allocation5], 34
    %v3837 = vld [vmem:[%s3836] ss:$8 sm:$0x3]
    %s3838 = scalar_lea.vmem [#allocation5], 35
    %v3839 = vld [vmem:[%s3838] ss:$8 sm:$0x3]
    %v3840 = vadd.f32 %v3832, %v3833
    %3841 = vadd.xlane.f32.xlu0 %v3840
    %v3842 = vpop.xlane.xlu0 %3841
    %v3843 = vadd.f32 %v3834, %v3835
    %3844 = vadd.xlane.f32.xlu0 %v3843
    %v3845 = vpop.xlane.xlu0 %3844
    %v3846 = vmul.f32 %v3842, %v1385
    %v3847 = vmul.f32 %v3845, %v1385
    %v3848 = vmul.f32 %v3832, %v3832
    %v3849 = vmul.f32 %v3833, %v3833
    %v3850 = vmul.f32 %v3834, %v3834
    %v3851 = vmul.f32 %v3835, %v3835
    %v3852 = vadd.f32 %v3848, %v3849
    %3853 = vadd.xlane.f32.xlu0 %v3852
    %v3854 = vpop.xlane.xlu0 %3853
    %v3855 = vadd.f32 %v3850, %v3851
    %3856 = vadd.xlane.f32.xlu0 %v3855
    %v3857 = vpop.xlane.xlu0 %3856
    %v3858 = vmul.f32 %v3854, %v1385
    %v3859 = vmul.f32 %v3857, %v1385
    %v3860 = vmul.f32 %v3846, %v3846
    %v3861 = vmul.f32 %v3847, %v3847
    %v3862 = vsub.f32 %v3858, %v3860
    %v3863 = vsub.f32 %v3859, %v3861
    %v3864 = vsub.f32 %v3832, %v3846
    %v3865 = vsub.f32 %v3833, %v3846
    %v3866 = vsub.f32 %v3834, %v3847
    %v3867 = vsub.f32 %v3835, %v3847
    %v3868 = vadd.f32 %v3862, 1e-05
    %v3869 = vadd.f32 %v3863, 1e-05
    %v3870 = vrsqrt.pop %v3868
    %v3871 = vmul.f32 %v3870, %v3868
    %v3872 = vmul.f32 %v3871, %v3870
    %v3873 = vmul.f32 0.5, %v3872
    %v3874 = vsub.f32 1.5, %v3873
    %v3875 = vmul.f32 %v3870, %v3874
    %vm3876 = vweird.f32 %v3868
    %vm3877 = vweird.f32 %v3870
    %vm3878 = vmor %vm3876, %vm3877
    %v3879 = vsel %vm3878, %v3870, %v3875
    %v3880 = vrsqrt.pop %v3869
    %v3881 = vmul.f32 %v3880, %v3869
    %v3882 = vmul.f32 %v3881, %v3880
    %v3883 = vmul.f32 0.5, %v3882
    %v3884 = vsub.f32 1.5, %v3883
    %v3885 = vmul.f32 %v3880, %v3884
    %vm3886 = vweird.f32 %v3869
    %vm3887 = vweird.f32 %v3880
    %vm3888 = vmor %vm3886, %vm3887
    %v3889 = vsel %vm3888, %v3880, %v3885
    %v3890 = vmul.f32 %v3864, %v3879
    %v3891 = vmul.f32 %v3865, %v3879
    %v3892 = vmul.f32 %v3866, %v3889
    %v3893 = vmul.f32 %v3867, %v3889
    %v3895 = vperm.slane %v3837, 0
    %v3896 = vperm.slane %v3837, 1
    %v3899 = vmul.f32 %v3890, %v3895
    %v3900 = vmul.f32 %v3891, %v3896
    %v3901 = vmul.f32 %v3892, %v3895
    %v3902 = vmul.f32 %v3893, %v3896
    %v3904 = vperm.slane %v3839, 0
    %v3905 = vperm.slane %v3839, 1
    %v3908 = vadd.f32 %v3899, %v3904
    %v3909 = vadd.f32 %v3900, %v3905
    %v3910 = vadd.f32 %v3901, %v3904
    %v3911 = vadd.f32 %v3902, %v3905
    %v3912 = vadd.f32 %v167, %v3908
    %v3913 = vadd.f32 %v181, %v3909
    %v3914 = vadd.f32 %v169, %v3910
    %v3915 = vadd.f32 %v183, %v3911
    %v3916 = vpack.c.bf16 %v3914, %v3912
    %v3917 = vpack.c.bf16 %v3915, %v3913
    %s3918 = scalar_lea.vmem [#allocation2], 3328
    %v3919 = vld [vmem:[%s3918] sm:$0xff]
    %v3920 = vld [vmem:[%s3918 + $0x8] sm:$0xff]
    %v3921 = vld [vmem:[%s3918 + $0x10] sm:$0xff]
    %v3922 = vld [vmem:[%s3918 + $0x18] sm:$0xff]
    %v3923 = vld [vmem:[%s3918 + $0x20] sm:$0xff]
    %v3924 = vld [vmem:[%s3918 + $0x28] sm:$0xff]
    %v3925 = vld [vmem:[%s3918 + $0x30] sm:$0xff]
    %v3926 = vld [vmem:[%s3918 + $0x38] sm:$0xff]
    %v3927 = vld [vmem:[%s3918 + $0x40] sm:$0xff]
    %v3928 = vld [vmem:[%s3918 + $0x48] sm:$0xff]
    %v3929 = vld [vmem:[%s3918 + $0x50] sm:$0xff]
    %v3930 = vld [vmem:[%s3918 + $0x58] sm:$0xff]
    %v3931 = vld [vmem:[%s3918 + $0x60] sm:$0xff]
    %v3932 = vld [vmem:[%s3918 + $0x68] sm:$0xff]
    %v3933 = vld [vmem:[%s3918 + $0x70] sm:$0xff]
    %v3934 = vld [vmem:[%s3918 + $0x78] sm:$0xff]
    %v3935 = vld [vmem:[%s3918 + $0x80] sm:$0xff]
    %v3936 = vld [vmem:[%s3918 + $0x88] sm:$0xff]
    %v3937 = vld [vmem:[%s3918 + $0x90] sm:$0xff]
    %v3938 = vld [vmem:[%s3918 + $0x98] sm:$0xff]
    %v3939 = vld [vmem:[%s3918 + $0xa0] sm:$0xff]
    %v3940 = vld [vmem:[%s3918 + $0xa8] sm:$0xff]
    %v3941 = vld [vmem:[%s3918 + $0xb0] sm:$0xff]
    %v3942 = vld [vmem:[%s3918 + $0xb8] sm:$0xff]
    %v3943 = vld [vmem:[%s3918 + $0xc0] sm:$0xff]
    %v3944 = vld [vmem:[%s3918 + $0xc8] sm:$0xff]
    %v3945 = vld [vmem:[%s3918 + $0xd0] sm:$0xff]
    %v3946 = vld [vmem:[%s3918 + $0xd8] sm:$0xff]
    %v3947 = vld [vmem:[%s3918 + $0xe0] sm:$0xff]
    %v3948 = vld [vmem:[%s3918 + $0xe8] sm:$0xff]
    %v3949 = vld [vmem:[%s3918 + $0xf0] sm:$0xff]
    %v3950 = vld [vmem:[%s3918 + $0xf8] sm:$0xff]
    %s3951 = scalar_lea.vmem [#allocation5], 36
    %v3952 = vld [vmem:[%s3951] ss:$8 sm:$0x3]
    %v3954 = vperm.slane %v3952, 0
    %v3988 = vunpack.c.l.b16 %v3919
    %v3989 = vunpack.c.l.b16 %v3920
    %v3990 = vunpack.c.l.b16 %v3921
    %v3991 = vunpack.c.l.b16 %v3922
    %v3992 = vunpack.c.l.b16 %v3923
    %v3993 = vunpack.c.l.b16 %v3924
    %v3994 = vunpack.c.l.b16 %v3925
    %v3995 = vunpack.c.l.b16 %v3926
    %v3996 = vunpack.c.l.b16 %v3927
    %v3997 = vunpack.c.l.b16 %v3928
    %v3998 = vunpack.c.l.b16 %v3929
    %v3999 = vunpack.c.l.b16 %v3930
    %v4000 = vunpack.c.l.b16 %v3931
    %v4001 = vunpack.c.l.b16 %v3932
    %v4002 = vunpack.c.l.b16 %v3933
    %v4003 = vunpack.c.l.b16 %v3934
    %v4004 = vunpack.c.l.b16 %v3935
    %v4005 = vunpack.c.l.b16 %v3936
    %v4006 = vunpack.c.l.b16 %v3937
    %v4007 = vunpack.c.l.b16 %v3938
    %v4008 = vunpack.c.l.b16 %v3939
    %v4009 = vunpack.c.l.b16 %v3940
    %v4010 = vunpack.c.l.b16 %v3941
    %v4011 = vunpack.c.l.b16 %v3942
    %v4012 = vunpack.c.l.b16 %v3943
    %v4013 = vunpack.c.l.b16 %v3944
    %v4014 = vunpack.c.l.b16 %v3945
    %v4015 = vunpack.c.l.b16 %v3946
    %v4016 = vunpack.c.l.b16 %v3947
    %v4017 = vunpack.c.l.b16 %v3948
    %v4018 = vunpack.c.l.b16 %v3949
    %v4019 = vunpack.c.l.b16 %v3950
    %v4020 = vpack.c.b16 %v3989, %v3988
    %v4021 = vpack.c.b16 %v3991, %v3990
    %v4022 = vpack.c.b16 %v3993, %v3992
    %v4023 = vpack.c.b16 %v3995, %v3994
    %v4024 = vpack.c.b16 %v3997, %v3996
    %v4025 = vpack.c.b16 %v3999, %v3998
    %v4026 = vpack.c.b16 %v4001, %v4000
    %v4027 = vpack.c.b16 %v4003, %v4002
    %v4028 = vpack.c.b16 %v4005, %v4004
    %v4029 = vpack.c.b16 %v4007, %v4006
    %v4030 = vpack.c.b16 %v4009, %v4008
    %v4031 = vpack.c.b16 %v4011, %v4010
    %v4032 = vpack.c.b16 %v4013, %v4012
    %v4033 = vpack.c.b16 %v4015, %v4014
    %v4034 = vpack.c.b16 %v4017, %v4016
    %v4035 = vpack.c.b16 %v4019, %v4018
    %4052 = vmatpush.bf16.msra.mxu0 %v4027
    %4053 = vmatpush.bf16.msra.mxu0 %v4026
    %4054 = vmatpush.bf16.msra.mxu0 %v4025
    %4055 = vmatpush.bf16.msra.mxu0 %v4024
    %4056 = vmatpush.bf16.msra.mxu0 %v4023
    %4057 = vmatpush.bf16.msra.mxu0 %v4022
    %4058 = vmatpush.bf16.msra.mxu0 %v4021
    %4059 = vmatpush.bf16.msra.mxu0 %v4020
    %4060 = vmatmul.bf16.gmra.mxu0 %v3916
    %v4061 = vpop.f32.mrf.mxu0
    %v4062 = vadd.f32 %v3954, %v4061
    %v4063 = vpop.f32.mrf.mxu0
    %v4064 = vadd.f32 %v3954, %v4063
    %4065 = vdwg.mxu0
    %4066 = vmatpush.bf16.msra.mxu0 %v4035
    %4067 = vmatpush.bf16.msra.mxu0 %v4034
    %4068 = vmatpush.bf16.msra.mxu0 %v4033
    %4069 = vmatpush.bf16.msra.mxu0 %v4032
    %4070 = vmatpush.bf16.msra.mxu0 %v4031
    %4071 = vmatpush.bf16.msra.mxu0 %v4030
    %4072 = vmatpush.bf16.msra.mxu0 %v4029
    %4073 = vmatpush.bf16.msra.mxu0 %v4028
    %4074 = vmatmul.bf16.gmra.mxu0 %v3917
    %v4075 = vpop.f32.mrf.mxu0
    %v4076 = vadd.f32 %v4062, %v4075
    %v4077 = vpop.f32.mrf.mxu0
    %v4078 = vadd.f32 %v4064, %v4077
    %4079 = vdwg.mxu0
    %4080 = vst [vmem:[#allocation7] sm:$0xff] %v4076
    %4081 = vst [vmem:[#allocation7 + $0x8] sm:$0xff] %v4078
    // Predicated region
    $region26: #{_forward_jit.1} parent=1 // pred_check
      _
    $region27: #{_forward_jit.1} parent=1 // pred_check_branch
      %4083 = sbr.rel (0) target = $region29
    $region28: #{_forward_jit.1} parent=1 // pred_region
      %4085 = vsyncadd [#allocation4], 0
      %s4086 = sshll.u32 [#allocation7], 4
      %s4087 = int_to_ptr.vmem [resolvable:$true] %s4086
      %s4088 = sshll.u32 %s4, 4
      %s4089 = int_to_ptr.hbm [resolvable:$true] %s4088
      %4094 = dma.vmem_to_hbm [thread:$0]  %s4087, 256, %s4089, [#allocation4], 128, 128, 8
    $region29: #{_forward_jit.1} parent=1 // pred_fallthru
      _
    // Predicated region
    $region30: #{_forward_jit.1} parent=1 // pred_check
      _
    $region31: #{_forward_jit.1} parent=1 // pred_check_branch
      %4096 = sbr.rel (0) target = $region33
    $region32: #{_forward_jit.1} parent=1 // pred_region
      %4098 = dma.done [#allocation4], 256
    $region33: #{_forward_jit.1} parent=1 // pred_fallthru
      _
    %4099 = vsyncpa [#allocation3], 1
    %4100 = vsyncpa [#allocation6], 1
    %4101 = vsyncpa [#allocation4], 1

</llo_original>
